<compile_context>
chip_gen: v6e
topology: v6e:2x2x1
jax: 0.10.0
libtpu: 0.0.40
codegen_flags: <defaults>
</compile_context>

<pallas_src>
import jax
import jax.numpy as jnp
from jax.experimental import pallas as pl
from jax.experimental.pallas import tpu as pltpu


def mult_vae_kernel(x_ref, z_ref,
                    w1_ref, b1_ref, w2_ref, b2_ref,
                    wd1_ref, bd1_ref, wd2_ref, bd2_ref,
                    mu_ref, ls_ref, pi_ref):
    x = x_ref[...]                        # (TB, N)  bf16 (binary values, exact)
    z = z_ref[...]                        # (TB, K)  f32
    k = z.shape[1]

    # Fused encoder layer 1: tanh(x @ [w1_mu | w1_sg] + [b1_mu | b1_sg])  -> (TB, 2H)
    h = jnp.tanh(
        jnp.dot(x, w1_ref[...], preferred_element_type=jnp.float32) + b1_ref[...])

    # Fused encoder layer 2 (block-diagonal weights): -> (TB, 2K) = [mu | log_sigmas]
    enc = jnp.dot(h.astype(jnp.bfloat16), w2_ref[...],
                  preferred_element_type=jnp.float32) + b2_ref[...]
    mu = enc[:, :k]
    log_sigmas = enc[:, k:]

    # Reparameterization: z * sigma + mu, sigma = exp(0.5 * log_sigmas) (one EUP op).
    scaled_z = z * jnp.exp(0.5 * log_sigmas) + mu

    # Decoder: Linear(K -> H) + Tanh, then Linear(H -> n_items)
    h_d = jnp.tanh(
        jnp.dot(scaled_z.astype(jnp.bfloat16), wd1_ref[...],
                preferred_element_type=jnp.float32) + bd1_ref[...])
    pi = jnp.dot(h_d.astype(jnp.bfloat16), wd2_ref[...],
                 preferred_element_type=jnp.float32) + bd2_ref[...]

    mu_ref[...] = mu
    ls_ref[...] = log_sigmas
    pi_ref[...] = pi


def mult_vae_forward(x, z, fused, *, tile_b=128):
    """x: (B, n_items) dense bf16 (binary); z: (B, k) f32 noise; fused: packed bf16 weights."""
    B, N = x.shape
    K = z.shape[1]

    tile_b = int(min(tile_b, B))
    Bp = pl.cdiv(B, tile_b) * tile_b
    if Bp != B:                                  # ragged batch -> zero-pad, slice after
        x = jnp.pad(x, ((0, Bp - B), (0, 0)))
        z = jnp.pad(z, ((0, Bp - B), (0, 0)))
    grid = (Bp // tile_b,)

    w1, b1, w2, b2 = fused["w1_enc"], fused["b1_enc"], fused["w2_enc"], fused["b2_enc"]
    wd1, bd1, wd2, bd2 = fused["wd1"], fused["bd1"], fused["wd2"], fused["bd2"]

    def batch_spec(feat):
        return pl.BlockSpec((tile_b, feat), lambda i: (i, 0))

    def full_spec(shape):
        return pl.BlockSpec(shape, lambda i: (0, 0))

    out_shapes = (
        jax.ShapeDtypeStruct((Bp, K), jnp.float32),   # mu
        jax.ShapeDtypeStruct((Bp, K), jnp.float32),   # log_sigmas
        jax.ShapeDtypeStruct((Bp, N), jnp.float32),   # pi_not_normalized
    )

    in_specs = [
        batch_spec(N),                 # x
        batch_spec(K),                 # z
        full_spec(w1.shape), full_spec(b1.shape),
        full_spec(w2.shape), full_spec(b2.shape),
        full_spec(wd1.shape), full_spec(bd1.shape),
        full_spec(wd2.shape), full_spec(bd2.shape),
    ]
    out_specs = (batch_spec(K), batch_spec(K), batch_spec(N))

    mu, ls, pi = pl.pallas_call(
        mult_vae_kernel,
        out_shape=out_shapes,
        grid=grid,
        in_specs=in_specs,
        out_specs=out_specs,
        compiler_params=pltpu.CompilerParams(
            dimension_semantics=("parallel",),
            vmem_limit_bytes=64 * 1024 * 1024),
    )(x, z, w1, b1, w2, b2, wd1, bd1, wd2, bd2)

    if Bp != B:
        mu, ls, pi = mu[:B], ls[:B], pi[:B]
    return mu, ls, pi


def init_params(key, n_items, hidden, k):
    """Deterministic PyTorch-Linear-style init; weights stored as [in, out], f32."""
    def linear(key, fan_in, fan_out):
        kw, kb = jax.random.split(key)
        bound = 1.0 / jnp.sqrt(fan_in)
        w = jax.random.uniform(kw, (fan_in, fan_out), jnp.float32, -bound, bound)
        b = jax.random.uniform(kb, (1, fan_out), jnp.float32, -bound, bound)
        return w, b

    keys = jax.random.split(key, 6)
    w1m, b1m = linear(keys[0], n_items, hidden)   # Encoder_mu.dense_network
    w2m, b2m = linear(keys[1], hidden, k)         # Encoder_mu.out_layer
    w1s, b1s = linear(keys[2], n_items, hidden)   # Encoder_sigma.dense_network
    w2s, b2s = linear(keys[3], hidden, k)         # Encoder_sigma.out_layer
    wd1, bd1 = linear(keys[4], k, hidden)         # Decoder.dense_network
    wd2, bd2 = linear(keys[5], hidden, n_items)   # Decoder.out_layer
    return dict(w1_mu=w1m, b1_mu=b1m, w2_mu=w2m, b2_mu=b2m,
                w1_sg=w1s, b1_sg=b1s, w2_sg=w2s, b2_sg=b2s,
                wd1=wd1, bd1=bd1, wd2=wd2, bd2=bd2)


def pack_params(p):
    """Fuse the two encoder branches (concat layer-1, block-diag layer-2); cast weights bf16."""
    H = p["w1_mu"].shape[1]
    K = p["w2_mu"].shape[1]
    zeros = jnp.zeros((H, K), jnp.float32)
    w1 = jnp.concatenate([p["w1_mu"], p["w1_sg"]], axis=1).astype(jnp.bfloat16)   # [N, 2H]
    b1 = jnp.concatenate([p["b1_mu"], p["b1_sg"]], axis=1)                        # [1, 2H] f32
    w2 = jnp.block([[p["w2_mu"], zeros],
                    [zeros, p["w2_sg"]]]).astype(jnp.bfloat16)                    # [2H, 2K]
    b2 = jnp.concatenate([p["b2_mu"], p["b2_sg"]], axis=1)                        # [1, 2K] f32
    return dict(w1_enc=w1, b1_enc=b1, w2_enc=w2, b2_enc=b2,
                wd1=p["wd1"].astype(jnp.bfloat16), bd1=p["bd1"],
                wd2=p["wd2"].astype(jnp.bfloat16), bd2=p["bd2"])


def reference_forward(x, z, p):
    """Pure-JAX reference on the UNFUSED params, with matching bf16 weight/activation casts."""
    f32, bf16 = jnp.float32, jnp.bfloat16
    w1m, w1s = p["w1_mu"].astype(bf16), p["w1_sg"].astype(bf16)
    w2m, w2s = p["w2_mu"].astype(bf16), p["w2_sg"].astype(bf16)
    wd1, wd2 = p["wd1"].astype(bf16), p["wd2"].astype(bf16)

    h_mu = jnp.tanh(jnp.dot(x, w1m, preferred_element_type=f32) + p["b1_mu"])
    mu = jnp.dot(h_mu.astype(bf16), w2m, preferred_element_type=f32) + p["b2_mu"]
    h_sg = jnp.tanh(jnp.dot(x, w1s, preferred_element_type=f32) + p["b1_sg"])
    ls = jnp.dot(h_sg.astype(bf16), w2s, preferred_element_type=f32) + p["b2_sg"]
    sz = z * jnp.exp(0.5 * ls) + mu
    hd = jnp.tanh(jnp.dot(sz.astype(bf16), wd1, preferred_element_type=f32) + p["bd1"])
    pi = jnp.dot(hd.astype(bf16), wd2, preferred_element_type=f32) + p["bd2"]
    return mu, ls, pi


if __name__ == "__main__":
    # Small synthetic config (all dims multiples of 128): n_items=512, hidden=256, k=128,
    # batch=256 -> two 128-row batch tiles (keeps both v7x TensorCores busy).
    B, N_ITEMS, HIDDEN, K = 256, 512, 256, 128

    key = jax.random.PRNGKey(0)
    k_params, k_x, k_z = jax.random.split(key, 3)

    params = init_params(k_params, N_ITEMS, HIDDEN, K)
    fused = pack_params(params)

    # Dense stand-in for the sparse user-item matrix (binary implicit feedback, exact in bf16).
    x = (jax.random.uniform(k_x, (B, N_ITEMS)) < 0.05).astype(jnp.bfloat16)
    # Reparameterization noise (the Variable(torch.randn(...)) in the PyTorch forward).
    z = jax.random.normal(k_z, (B, K), dtype=jnp.float32)

    mu, log_sigmas, pi = mult_vae_forward(x, z, fused, tile_b=128)
    jax.block_until_ready((mu, log_sigmas, pi))

    mu_r, ls_r, pi_r = reference_forward(x, z, params)
    assert jnp.allclose(mu, mu_r, atol=1e-2, rtol=1e-2)
    assert jnp.allclose(log_sigmas, ls_r, atol=1e-2, rtol=1e-2)
    assert jnp.allclose(pi, pi_r, atol=1e-2, rtol=1e-2)

    print("KERNEL_OK")
</pallas_src>

<mosaic_0001>
module attributes {stable_mosaic.version = 11 : i64} {
  func.func @mult_vae_kernel(%arg0: i32, %arg1: memref<128x512xbf16, #tpu.memory_space<vmem>>, %arg2: memref<128x128xf32, #tpu.memory_space<vmem>>, %arg3: memref<512x512xbf16, #tpu.memory_space<vmem>>, %arg4: memref<1x512xf32, #tpu.memory_space<vmem>>, %arg5: memref<512x256xbf16, #tpu.memory_space<vmem>>, %arg6: memref<1x256xf32, #tpu.memory_space<vmem>>, %arg7: memref<128x256xbf16, #tpu.memory_space<vmem>>, %arg8: memref<1x256xf32, #tpu.memory_space<vmem>>, %arg9: memref<256x512xbf16, #tpu.memory_space<vmem>>, %arg10: memref<1x512xf32, #tpu.memory_space<vmem>>, %arg11: memref<128x128xf32, #tpu.memory_space<vmem>>, %arg12: memref<128x128xf32, #tpu.memory_space<vmem>>, %arg13: memref<128x512xf32, #tpu.memory_space<vmem>>) attributes {dimension_semantics = [#tpu.dimension_semantics<parallel>], iteration_bounds = array<i64: 2>, scalar_prefetch = 0 : i64, scratch_operands = 0 : i64, tpu.core_type = #tpu.core_type<tc>, window_params = [{transform_indices = @transform_0, window_bounds = array<i64: 128, 512>}, {transform_indices = @transform_1, window_bounds = array<i64: 128, 128>}, {pipeline_mode = #tpu.pipeline_mode<synchronous>, transform_indices = @transform_2, window_bounds = array<i64: 512, 512>}, {pipeline_mode = #tpu.pipeline_mode<synchronous>, transform_indices = @transform_3, window_bounds = array<i64: 1, 512>}, {pipeline_mode = #tpu.pipeline_mode<synchronous>, transform_indices = @transform_4, window_bounds = array<i64: 512, 256>}, {pipeline_mode = #tpu.pipeline_mode<synchronous>, transform_indices = @transform_5, window_bounds = array<i64: 1, 256>}, {pipeline_mode = #tpu.pipeline_mode<synchronous>, transform_indices = @transform_6, window_bounds = array<i64: 128, 256>}, {pipeline_mode = #tpu.pipeline_mode<synchronous>, transform_indices = @transform_7, window_bounds = array<i64: 1, 256>}, {pipeline_mode = #tpu.pipeline_mode<synchronous>, transform_indices = @transform_8, window_bounds = array<i64: 256, 512>}, {pipeline_mode = #tpu.pipeline_mode<synchronous>, transform_indices = @transform_9, window_bounds = array<i64: 1, 512>}, {transform_indices = @transform_10, window_bounds = array<i64: 128, 128>}, {transform_indices = @transform_11, window_bounds = array<i64: 128, 128>}, {transform_indices = @transform_12, window_bounds = array<i64: 128, 512>}]} {
    %c0 = arith.constant 0 : index
    %c0_0 = arith.constant 0 : index
    %0 = vector.load %arg1[%c0, %c0_0] : memref<128x512xbf16, #tpu.memory_space<vmem>>, vector<128x512xbf16>
    %c0_1 = arith.constant 0 : index
    %c0_2 = arith.constant 0 : index
    %1 = vector.load %arg2[%c0_1, %c0_2] : memref<128x128xf32, #tpu.memory_space<vmem>>, vector<128x128xf32>
    %c0_3 = arith.constant 0 : index
    %c0_4 = arith.constant 0 : index
    %2 = vector.load %arg3[%c0_3, %c0_4] : memref<512x512xbf16, #tpu.memory_space<vmem>>, vector<512x512xbf16>
    %cst = arith.constant dense<0.000000e+00> : vector<128x512xf32>
    %3 = tpu.matmul %0, %2, %cst {dimension_numbers = #tpu.dot_dimension_numbers<[1], [0], [0], [1], [0, 0, 1, 1], [], []>} : vector<128x512xbf16>, vector<512x512xbf16>, vector<128x512xf32> -> vector<128x512xf32>
    %c0_5 = arith.constant 0 : index
    %c0_6 = arith.constant 0 : index
    %4 = vector.load %arg4[%c0_5, %c0_6] : memref<1x512xf32, #tpu.memory_space<vmem>>, vector<1x512xf32>
    %5 = vector.broadcast %4 : vector<1x512xf32> to vector<128x512xf32>
    %6 = arith.addf %3, %5 : vector<128x512xf32>
    %7 = math.tanh %6 : vector<128x512xf32>
    %8 = arith.truncf %7 : vector<128x512xf32> to vector<128x512xbf16>
    %c0_7 = arith.constant 0 : index
    %c0_8 = arith.constant 0 : index
    %9 = vector.load %arg5[%c0_7, %c0_8] : memref<512x256xbf16, #tpu.memory_space<vmem>>, vector<512x256xbf16>
    %cst_9 = arith.constant dense<0.000000e+00> : vector<128x256xf32>
    %10 = tpu.matmul %8, %9, %cst_9 {dimension_numbers = #tpu.dot_dimension_numbers<[1], [0], [0], [1], [0, 0, 1, 1], [], []>} : vector<128x512xbf16>, vector<512x256xbf16>, vector<128x256xf32> -> vector<128x256xf32>
    %c0_10 = arith.constant 0 : index
    %c0_11 = arith.constant 0 : index
    %11 = vector.load %arg6[%c0_10, %c0_11] : memref<1x256xf32, #tpu.memory_space<vmem>>, vector<1x256xf32>
    %12 = vector.broadcast %11 : vector<1x256xf32> to vector<128x256xf32>
    %13 = arith.addf %10, %12 : vector<128x256xf32>
    %14 = vector.extract_strided_slice %13 {offsets = [0, 0], sizes = [128, 128], strides = [1, 1]} : vector<128x256xf32> to vector<128x128xf32>
    %15 = vector.extract_strided_slice %13 {offsets = [0, 128], sizes = [128, 128], strides = [1, 1]} : vector<128x256xf32> to vector<128x128xf32>
    %cst_12 = arith.constant 5.000000e-01 : f32
    %16 = vector.broadcast %cst_12 : f32 to vector<128x128xf32>
    %17 = arith.mulf %16, %15 : vector<128x128xf32>
    %18 = math.exp %17 : vector<128x128xf32>
    %19 = arith.mulf %1, %18 : vector<128x128xf32>
    %20 = arith.addf %19, %14 : vector<128x128xf32>
    %21 = arith.truncf %20 : vector<128x128xf32> to vector<128x128xbf16>
    %c0_13 = arith.constant 0 : index
    %c0_14 = arith.constant 0 : index
    %22 = vector.load %arg7[%c0_13, %c0_14] : memref<128x256xbf16, #tpu.memory_space<vmem>>, vector<128x256xbf16>
    %cst_15 = arith.constant dense<0.000000e+00> : vector<128x256xf32>
    %23 = tpu.matmul %21, %22, %cst_15 {dimension_numbers = #tpu.dot_dimension_numbers<[1], [0], [0], [1], [0, 0, 1, 1], [], []>} : vector<128x128xbf16>, vector<128x256xbf16>, vector<128x256xf32> -> vector<128x256xf32>
    %c0_16 = arith.constant 0 : index
    %c0_17 = arith.constant 0 : index
    %24 = vector.load %arg8[%c0_16, %c0_17] : memref<1x256xf32, #tpu.memory_space<vmem>>, vector<1x256xf32>
    %25 = vector.broadcast %24 : vector<1x256xf32> to vector<128x256xf32>
    %26 = arith.addf %23, %25 : vector<128x256xf32>
    %27 = math.tanh %26 : vector<128x256xf32>
    %28 = arith.truncf %27 : vector<128x256xf32> to vector<128x256xbf16>
    %c0_18 = arith.constant 0 : index
    %c0_19 = arith.constant 0 : index
    %29 = vector.load %arg9[%c0_18, %c0_19] : memref<256x512xbf16, #tpu.memory_space<vmem>>, vector<256x512xbf16>
    %cst_20 = arith.constant dense<0.000000e+00> : vector<128x512xf32>
    %30 = tpu.matmul %28, %29, %cst_20 {dimension_numbers = #tpu.dot_dimension_numbers<[1], [0], [0], [1], [0, 0, 1, 1], [], []>} : vector<128x256xbf16>, vector<256x512xbf16>, vector<128x512xf32> -> vector<128x512xf32>
    %c0_21 = arith.constant 0 : index
    %c0_22 = arith.constant 0 : index
    %31 = vector.load %arg10[%c0_21, %c0_22] : memref<1x512xf32, #tpu.memory_space<vmem>>, vector<1x512xf32>
    %32 = vector.broadcast %31 : vector<1x512xf32> to vector<128x512xf32>
    %33 = arith.addf %30, %32 : vector<128x512xf32>
    %c0_23 = arith.constant 0 : index
    %c0_24 = arith.constant 0 : index
    %34 = vector.load %arg11[%c0_23, %c0_24] : memref<128x128xf32, #tpu.memory_space<vmem>>, vector<128x128xf32>
    tpu.vector_store %arg11[%c0_23, %c0_24], %14 {strides = array<i32>} : memref<128x128xf32, #tpu.memory_space<vmem>>, vector<128x128xf32>,
    %c0_25 = arith.constant 0 : index
    %c0_26 = arith.constant 0 : index
    %35 = vector.load %arg12[%c0_25, %c0_26] : memref<128x128xf32, #tpu.memory_space<vmem>>, vector<128x128xf32>
    tpu.vector_store %arg12[%c0_25, %c0_26], %15 {strides = array<i32>} : memref<128x128xf32, #tpu.memory_space<vmem>>, vector<128x128xf32>,
    %c0_27 = arith.constant 0 : index
    %c0_28 = arith.constant 0 : index
    %36 = vector.load %arg13[%c0_27, %c0_28] : memref<128x512xf32, #tpu.memory_space<vmem>>, vector<128x512xf32>
    tpu.vector_store %arg13[%c0_27, %c0_28], %33 {strides = array<i32>} : memref<128x512xf32, #tpu.memory_space<vmem>>, vector<128x512xf32>,
    return
  }
  func.func @transform_0(%arg0: i32) -> (i32, i32) {
    %c0_i32 = arith.constant 0 : i32
    %c0_i32_0 = arith.constant 0 : i32
    return %arg0, %c0_i32 : i32, i32
  }
  func.func @transform_1(%arg0: i32) -> (i32, i32) {
    %c0_i32 = arith.constant 0 : i32
    %c0_i32_0 = arith.constant 0 : i32
    return %arg0, %c0_i32 : i32, i32
  }
  func.func @transform_2(%arg0: i32) -> (i32, i32) {
    %c0_i32 = arith.constant 0 : i32
    %c0_i32_0 = arith.constant 0 : i32
    %c0_i32_1 = arith.constant 0 : i32
    return %c0_i32, %c0_i32_0 : i32, i32
  }
  func.func @transform_3(%arg0: i32) -> (i32, i32) {
    %c0_i32 = arith.constant 0 : i32
    %c0_i32_0 = arith.constant 0 : i32
    %c0_i32_1 = arith.constant 0 : i32
    return %c0_i32, %c0_i32_0 : i32, i32
  }
  func.func @transform_4(%arg0: i32) -> (i32, i32) {
    %c0_i32 = arith.constant 0 : i32
    %c0_i32_0 = arith.constant 0 : i32
    %c0_i32_1 = arith.constant 0 : i32
    return %c0_i32, %c0_i32_0 : i32, i32
  }
  func.func @transform_5(%arg0: i32) -> (i32, i32) {
    %c0_i32 = arith.constant 0 : i32
    %c0_i32_0 = arith.constant 0 : i32
    %c0_i32_1 = arith.constant 0 : i32
    return %c0_i32, %c0_i32_0 : i32, i32
  }
  func.func @transform_6(%arg0: i32) -> (i32, i32) {
    %c0_i32 = arith.constant 0 : i32
    %c0_i32_0 = arith.constant 0 : i32
    %c0_i32_1 = arith.constant 0 : i32
    return %c0_i32, %c0_i32_0 : i32, i32
  }
  func.func @transform_7(%arg0: i32) -> (i32, i32) {
    %c0_i32 = arith.constant 0 : i32
    %c0_i32_0 = arith.constant 0 : i32
    %c0_i32_1 = arith.constant 0 : i32
    return %c0_i32, %c0_i32_0 : i32, i32
  }
  func.func @transform_8(%arg0: i32) -> (i32, i32) {
    %c0_i32 = arith.constant 0 : i32
    %c0_i32_0 = arith.constant 0 : i32
    %c0_i32_1 = arith.constant 0 : i32
    return %c0_i32, %c0_i32_0 : i32, i32
  }
  func.func @transform_9(%arg0: i32) -> (i32, i32) {
    %c0_i32 = arith.constant 0 : i32
    %c0_i32_0 = arith.constant 0 : i32
    %c0_i32_1 = arith.constant 0 : i32
    return %c0_i32, %c0_i32_0 : i32, i32
  }
  func.func @transform_10(%arg0: i32) -> (i32, i32) {
    %c0_i32 = arith.constant 0 : i32
    %c0_i32_0 = arith.constant 0 : i32
    return %arg0, %c0_i32 : i32, i32
  }
  func.func @transform_11(%arg0: i32) -> (i32, i32) {
    %c0_i32 = arith.constant 0 : i32
    %c0_i32_0 = arith.constant 0 : i32
    return %arg0, %c0_i32 : i32, i32
  }
  func.func @transform_12(%arg0: i32) -> (i32, i32) {
    %c0_i32 = arith.constant 0 : i32
    %c0_i32_0 = arith.constant 0 : i32
    return %arg0, %c0_i32 : i32, i32
  }
}

</mosaic_0001>

<llo_original>
// kernel: tpu_custom_call.1
$region0: #{tpu_custom_call.1}
  #allocation0 [shape = 'u32[]', space=smem, size = 0x4, offset = 0x4, fixed_abs, tag = 'smem constant byte address 0x4 - core index']
  #allocation1 [shape = 'u32[144,128]{1,0:T(1,128)}', space=vmem, size = 0x12000, scoped, tag = 'internal scratch']
  %s0 = inlined_call_operand.hbm [shape: bf16[256,512], index: 0, kind: input, shape index: {}]
  %s1 = inlined_call_operand.hbm [shape: f32[256,128], index: 1, kind: input, shape index: {}]
  %s2 = inlined_call_operand.hbm [shape: bf16[512,512], index: 2, kind: input, shape index: {}]
  %s3 = inlined_call_operand.vmem [shape: f32[1,512], index: 3, kind: input, shape index: {}]
  %s4 = inlined_call_operand.hbm [shape: bf16[512,256], index: 4, kind: input, shape index: {}]
  %s5 = inlined_call_operand.hbm [shape: f32[1,256], index: 5, kind: input, shape index: {}]
  %s6 = inlined_call_operand.hbm [shape: bf16[128,256], index: 6, kind: input, shape index: {}]
  %s7 = inlined_call_operand.vmem [shape: f32[1,256], index: 7, kind: input, shape index: {}]
  %s8 = inlined_call_operand.hbm [shape: bf16[256,512], index: 8, kind: input, shape index: {}]
  %s9 = inlined_call_operand.vmem [shape: f32[1,512], index: 9, kind: input, shape index: {}]
  %s10 = inlined_call_operand.hbm [shape: f32[256,128], index: 10, kind: output, shape index: {0}]
  %s11 = inlined_call_operand.hbm [shape: f32[256,128], index: 11, kind: output, shape index: {1}]
  %s12 = inlined_call_operand.hbm [shape: f32[256,512], index: 12, kind: output, shape index: {2}]
  %13 = xla_tuple %s10, %s11, %s12
  %s14 = sld [smem:[#allocation0]]
  $region117: #{tpu_custom_call.1} parent=0
    _
  %s16 = ssub.s32 1, %s14
  %s17 = scalar_select 0, %s16, %s14
  $region1: #{tpu_custom_call.1} parent=0
    #allocation2 [shape = 'u8[262144]{0}', space=vmem, size = 0x40000, scoped, tag = 'input window, operand 0']
    #allocation3 [shape = 's32[2]{0}', space=sflag, size = 0x8, scoped, tag = 'scoped memory for tpu_custom_call.1']
    #allocation4 [shape = 's32[2]{0}', space=sflag, size = 0x8, scoped, tag = 'scoped memory for tpu_custom_call.1']
    #allocation5 [shape = 'u8[131072]{0}', space=vmem, size = 0x20000, scoped, tag = 'input window, operand 1']
    #allocation6 [shape = 's32[2]{0}', space=sflag, size = 0x8, scoped, tag = 'scoped memory for tpu_custom_call.1']
    #allocation7 [shape = 'u8[524288]{0}', space=vmem, size = 0x80000, scoped, tag = 'input window, operand 2, single buffered']
    #allocation8 [shape = 'u8[262144]{0}', space=vmem, size = 0x40000, scoped, tag = 'input window, operand 4, single buffered']
    #allocation9 [shape = 's32[1]{0}', space=sflag, size = 0x4, scoped, tag = 'scoped memory for tpu_custom_call.1']
    #allocation10 [shape = 'u8[1024]{0}', space=vmem, size = 0x400, scoped, tag = 'input window, operand 5, single buffered']
    #allocation11 [shape = 'u8[65536]{0}', space=vmem, size = 0x10000, scoped, tag = 'input window, operand 6, single buffered']
    #allocation12 [shape = 's32[1]{0}', space=sflag, size = 0x4, scoped, tag = 'scoped memory for tpu_custom_call.1']
    #allocation13 [shape = 'u8[262144]{0}', space=vmem, size = 0x40000, scoped, tag = 'input window, operand 8, single buffered']
    #allocation14 [shape = 'u8[131072]{0}', space=vmem, size = 0x20000, scoped, tag = 'output window, operand 0']
    #allocation15 [shape = 'u8[131072]{0}', space=vmem, size = 0x20000, scoped, tag = 'output window, operand 1']
    #allocation16 [shape = 's32[2]{0}', space=sflag, size = 0x8, scoped, tag = 'scoped memory for tpu_custom_call.1']
    #allocation17 [shape = 'u8[524288]{0}', space=vmem, size = 0x80000, scoped, tag = 'output window, operand 2']
    %18 = vsyncpa [#allocation3], 0
    %s19 = scalar_lea.sflag [#allocation3], 1
    %20 = vsyncpa %s19, 0
    %21 = vsyncpa [#allocation6], 0
    %s22 = scalar_lea.sflag [#allocation6], 1
    %23 = vsyncpa %s22, 0
    %24 = vsyncpa [#allocation9], 0
    %25 = vsyncpa [#allocation12], 0
    %26 = vsyncpa [#allocation4], 0
    %s27 = scalar_lea.sflag [#allocation4], 1
    %28 = vsyncpa %s27, 0
    %29 = vsyncpa [#allocation16], 0
    %s30 = scalar_lea.sflag [#allocation16], 1
    %31 = vsyncpa %s30, 0
    loop: start=0, step=1, limit=4
    $region2: #{tpu_custom_call.1} parent=1 // loop_pre_header
      _
    $region3: #{tpu_custom_call.1} parent=1 // loop_header
      %s33 = sphi 0, %s37
      %p34 = scmp.ge.s32.totalorder %s33, 4
      %s43 = sphi 0, %s45
      %s46 = sphi 0, %s43
      %s47 = sphi 0, %s46
      %s63 = sphi 0, %s47
      %s69 = sphi 0, %s71
      %s72 = sphi 0, %s69
      %s73 = sphi 0, %s72
      %s89 = sphi 0, %s73
      %s93 = sphi 0, %s93
      %s95 = sphi 0, %s93
      %s96 = sphi 0, %s95
      %s110 = sphi 0, %s96
      %s114 = sphi 0, %s114
      %s116 = sphi 0, %s114
      %s117 = sphi 0, %s116
      %s131 = sphi 0, %s117
      %s135 = sphi 0, %s135
      %s137 = sphi 0, %s135
      %s138 = sphi 0, %s137
      %s152 = sphi 0, %s138
      %s156 = sphi 0, %s156
      %s158 = sphi 0, %s156
      %s159 = sphi 0, %s158
      %s173 = sphi 0, %s159
      %s177 = sphi 0, %s177
      %s179 = sphi 0, %s177
      %s180 = sphi 0, %s179
      %s194 = sphi 0, %s180
      %s198 = sphi 0, %s198
      %s200 = sphi 0, %s198
      %s201 = sphi 0, %s200
      %s215 = sphi 0, %s201
      %s219 = sphi 0, %s219
      %s221 = sphi 0, %s219
      %s222 = sphi 0, %s221
      %s236 = sphi 0, %s222
      %s240 = sphi 0, %s240
      %s242 = sphi 0, %s240
      %s243 = sphi 0, %s242
      %s257 = sphi 0, %s243
      %s263 = sphi 0, %s265
      %s266 = sphi 0, %s263
      %s267 = sphi 0, %s266
      %s283 = sphi 0, %s267
      %s289 = sphi 0, %s291
      %s292 = sphi 0, %s289
      %s293 = sphi 0, %s292
      %s309 = sphi 0, %s293
      %s315 = sphi 0, %s317
      %s318 = sphi 0, %s315
      %s319 = sphi 0, %s318
      %s335 = sphi 0, %s319
    $region4: #{tpu_custom_call.1} parent=1 // loop_header_branch
      %36 = sbr.rel (%p34) target = $region8
    $region5: #{tpu_custom_call.1} parent=1 // loop_body
      %s38 = ssub.s32 %s33, 1
      %s39 = ssub.s32 %s33, 2
      %s40 = sadd.s32 %s33, 1
      %s41 = ssub.s32 %s33, %s40
      %p42 = scmp.eq.s32.totalorder %s41, 0
      %s44 = sadd.s32 %s43, 1
      %s45 = scalar_select %p42, %s43, %s44
      %p48 = pneg %p42
      %p49 = scmp.eq.s32.totalorder %s33, 1
      %p50 = por %p48, %p49
      %p51 = scmp.ne.s32.totalorder %s43, %s46
      %p52 = scmp.eq.s32.totalorder %s33, 0
      %p53 = por %p51, %p52
      %p54 = scmp.ne.s32.totalorder %s43, %s46
      %p55 = scmp.eq.s32.totalorder %s38, 1
      %p56 = por %p54, %p55
      %p57 = scmp.ne.s32.totalorder %s46, %s47
      %p58 = scmp.eq.s32.totalorder %s38, 0
      %p59 = por %p57, %p58
      %p60 = scmp.ne.s32.totalorder %s46, %s47
      %p61 = scmp.eq.s32.totalorder %s39, 1
      %p62 = por %p60, %p61
      %p64 = scmp.ne.s32.totalorder %s47, %s63
      %p65 = scmp.eq.s32.totalorder %s39, 0
      %p66 = por %p64, %p65
      %s67 = ssub.s32 %s33, %s40
      %p68 = scmp.eq.s32.totalorder %s67, 0
      %s70 = sadd.s32 %s69, 1
      %s71 = scalar_select %p68, %s69, %s70
      %p74 = pneg %p68
      %p75 = scmp.eq.s32.totalorder %s33, 1
      %p76 = por %p74, %p75
      %p77 = scmp.ne.s32.totalorder %s69, %s72
      %p78 = scmp.eq.s32.totalorder %s33, 0
      %p79 = por %p77, %p78
      %p80 = scmp.ne.s32.totalorder %s69, %s72
      %p81 = scmp.eq.s32.totalorder %s38, 1
      %p82 = por %p80, %p81
      %p83 = scmp.ne.s32.totalorder %s72, %s73
      %p84 = scmp.eq.s32.totalorder %s38, 0
      %p85 = por %p83, %p84
      %p86 = scmp.ne.s32.totalorder %s72, %s73
      %p87 = scmp.eq.s32.totalorder %s39, 1
      %p88 = por %p86, %p87
      %p90 = scmp.ne.s32.totalorder %s73, %s89
      %p91 = scmp.eq.s32.totalorder %s39, 0
      %p92 = por %p90, %p91
      %s94 = sadd.s32 %s93, 1
      %p97 = scmp.eq.s32.totalorder %s33, 1
      %p98 = scmp.ne.s32.totalorder %s93, %s95
      %p99 = scmp.eq.s32.totalorder %s33, 0
      %p100 = por %p98, %p99
      %p101 = scmp.ne.s32.totalorder %s93, %s95
      %p102 = scmp.eq.s32.totalorder %s38, 1
      %p103 = por %p101, %p102
      %p104 = scmp.ne.s32.totalorder %s95, %s96
      %p105 = scmp.eq.s32.totalorder %s38, 0
      %p106 = por %p104, %p105
      %p107 = scmp.ne.s32.totalorder %s95, %s96
      %p108 = scmp.eq.s32.totalorder %s39, 1
      %p109 = por %p107, %p108
      %p111 = scmp.ne.s32.totalorder %s96, %s110
      %p112 = scmp.eq.s32.totalorder %s39, 0
      %p113 = por %p111, %p112
      %s115 = sadd.s32 %s114, 1
      %p118 = scmp.eq.s32.totalorder %s33, 1
      %p119 = scmp.ne.s32.totalorder %s114, %s116
      %p120 = scmp.eq.s32.totalorder %s33, 0
      %p121 = por %p119, %p120
      %p122 = scmp.ne.s32.totalorder %s114, %s116
      %p123 = scmp.eq.s32.totalorder %s38, 1
      %p124 = por %p122, %p123
      %p125 = scmp.ne.s32.totalorder %s116, %s117
      %p126 = scmp.eq.s32.totalorder %s38, 0
      %p127 = por %p125, %p126
      %p128 = scmp.ne.s32.totalorder %s116, %s117
      %p129 = scmp.eq.s32.totalorder %s39, 1
      %p130 = por %p128, %p129
      %p132 = scmp.ne.s32.totalorder %s117, %s131
      %p133 = scmp.eq.s32.totalorder %s39, 0
      %p134 = por %p132, %p133
      %s136 = sadd.s32 %s135, 1
      %p139 = scmp.eq.s32.totalorder %s33, 1
      %p140 = scmp.ne.s32.totalorder %s135, %s137
      %p141 = scmp.eq.s32.totalorder %s33, 0
      %p142 = por %p140, %p141
      %p143 = scmp.ne.s32.totalorder %s135, %s137
      %p144 = scmp.eq.s32.totalorder %s38, 1
      %p145 = por %p143, %p144
      %p146 = scmp.ne.s32.totalorder %s137, %s138
      %p147 = scmp.eq.s32.totalorder %s38, 0
      %p148 = por %p146, %p147
      %p149 = scmp.ne.s32.totalorder %s137, %s138
      %p150 = scmp.eq.s32.totalorder %s39, 1
      %p151 = por %p149, %p150
      %p153 = scmp.ne.s32.totalorder %s138, %s152
      %p154 = scmp.eq.s32.totalorder %s39, 0
      %p155 = por %p153, %p154
      %s157 = sadd.s32 %s156, 1
      %p160 = scmp.eq.s32.totalorder %s33, 1
      %p161 = scmp.ne.s32.totalorder %s156, %s158
      %p162 = scmp.eq.s32.totalorder %s33, 0
      %p163 = por %p161, %p162
      %p164 = scmp.ne.s32.totalorder %s156, %s158
      %p165 = scmp.eq.s32.totalorder %s38, 1
      %p166 = por %p164, %p165
      %p167 = scmp.ne.s32.totalorder %s158, %s159
      %p168 = scmp.eq.s32.totalorder %s38, 0
      %p169 = por %p167, %p168
      %p170 = scmp.ne.s32.totalorder %s158, %s159
      %p171 = scmp.eq.s32.totalorder %s39, 1
      %p172 = por %p170, %p171
      %p174 = scmp.ne.s32.totalorder %s159, %s173
      %p175 = scmp.eq.s32.totalorder %s39, 0
      %p176 = por %p174, %p175
      %s178 = sadd.s32 %s177, 1
      %p181 = scmp.eq.s32.totalorder %s33, 1
      %p182 = scmp.ne.s32.totalorder %s177, %s179
      %p183 = scmp.eq.s32.totalorder %s33, 0
      %p184 = por %p182, %p183
      %p185 = scmp.ne.s32.totalorder %s177, %s179
      %p186 = scmp.eq.s32.totalorder %s38, 1
      %p187 = por %p185, %p186
      %p188 = scmp.ne.s32.totalorder %s179, %s180
      %p189 = scmp.eq.s32.totalorder %s38, 0
      %p190 = por %p188, %p189
      %p191 = scmp.ne.s32.totalorder %s179, %s180
      %p192 = scmp.eq.s32.totalorder %s39, 1
      %p193 = por %p191, %p192
      %p195 = scmp.ne.s32.totalorder %s180, %s194
      %p196 = scmp.eq.s32.totalorder %s39, 0
      %p197 = por %p195, %p196
      %s199 = sadd.s32 %s198, 1
      %p202 = scmp.eq.s32.totalorder %s33, 1
      %p203 = scmp.ne.s32.totalorder %s198, %s200
      %p204 = scmp.eq.s32.totalorder %s33, 0
      %p205 = por %p203, %p204
      %p206 = scmp.ne.s32.totalorder %s198, %s200
      %p207 = scmp.eq.s32.totalorder %s38, 1
      %p208 = por %p206, %p207
      %p209 = scmp.ne.s32.totalorder %s200, %s201
      %p210 = scmp.eq.s32.totalorder %s38, 0
      %p211 = por %p209, %p210
      %p212 = scmp.ne.s32.totalorder %s200, %s201
      %p213 = scmp.eq.s32.totalorder %s39, 1
      %p214 = por %p212, %p213
      %p216 = scmp.ne.s32.totalorder %s201, %s215
      %p217 = scmp.eq.s32.totalorder %s39, 0
      %p218 = por %p216, %p217
      %s220 = sadd.s32 %s219, 1
      %p223 = scmp.eq.s32.totalorder %s33, 1
      %p224 = scmp.ne.s32.totalorder %s219, %s221
      %p225 = scmp.eq.s32.totalorder %s33, 0
      %p226 = por %p224, %p225
      %p227 = scmp.ne.s32.totalorder %s219, %s221
      %p228 = scmp.eq.s32.totalorder %s38, 1
      %p229 = por %p227, %p228
      %p230 = scmp.ne.s32.totalorder %s221, %s222
      %p231 = scmp.eq.s32.totalorder %s38, 0
      %p232 = por %p230, %p231
      %p233 = scmp.ne.s32.totalorder %s221, %s222
      %p234 = scmp.eq.s32.totalorder %s39, 1
      %p235 = por %p233, %p234
      %p237 = scmp.ne.s32.totalorder %s222, %s236
      %p238 = scmp.eq.s32.totalorder %s39, 0
      %p239 = por %p237, %p238
      %s241 = sadd.s32 %s240, 1
      %p244 = scmp.eq.s32.totalorder %s33, 1
      %p245 = scmp.ne.s32.totalorder %s240, %s242
      %p246 = scmp.eq.s32.totalorder %s33, 0
      %p247 = por %p245, %p246
      %p248 = scmp.ne.s32.totalorder %s240, %s242
      %p249 = scmp.eq.s32.totalorder %s38, 1
      %p250 = por %p248, %p249
      %p251 = scmp.ne.s32.totalorder %s242, %s243
      %p252 = scmp.eq.s32.totalorder %s38, 0
      %p253 = por %p251, %p252
      %p254 = scmp.ne.s32.totalorder %s242, %s243
      %p255 = scmp.eq.s32.totalorder %s39, 1
      %p256 = por %p254, %p255
      %p258 = scmp.ne.s32.totalorder %s243, %s257
      %p259 = scmp.eq.s32.totalorder %s39, 0
      %p260 = por %p258, %p259
      %s261 = ssub.s32 %s33, %s40
      %p262 = scmp.eq.s32.totalorder %s261, 0
      %s264 = sadd.s32 %s263, 1
      %s265 = scalar_select %p262, %s263, %s264
      %p268 = pneg %p262
      %p269 = scmp.eq.s32.totalorder %s33, 1
      %p270 = por %p268, %p269
      %p271 = scmp.ne.s32.totalorder %s263, %s266
      %p272 = scmp.eq.s32.totalorder %s33, 0
      %p273 = por %p271, %p272
      %p274 = scmp.ne.s32.totalorder %s263, %s266
      %p275 = scmp.eq.s32.totalorder %s38, 1
      %p276 = por %p274, %p275
      %p277 = scmp.ne.s32.totalorder %s266, %s267
      %p278 = scmp.eq.s32.totalorder %s38, 0
      %p279 = por %p277, %p278
      %p280 = scmp.ne.s32.totalorder %s266, %s267
      %p281 = scmp.eq.s32.totalorder %s39, 1
      %p282 = por %p280, %p281
      %p284 = scmp.ne.s32.totalorder %s267, %s283
      %p285 = scmp.eq.s32.totalorder %s39, 0
      %p286 = por %p284, %p285
      %s287 = ssub.s32 %s33, %s40
      %p288 = scmp.eq.s32.totalorder %s287, 0
      %s290 = sadd.s32 %s289, 1
      %s291 = scalar_select %p288, %s289, %s290
      %p294 = pneg %p288
      %p295 = scmp.eq.s32.totalorder %s33, 1
      %p296 = por %p294, %p295
      %p297 = scmp.ne.s32.totalorder %s289, %s292
      %p298 = scmp.eq.s32.totalorder %s33, 0
      %p299 = por %p297, %p298
      %p300 = scmp.ne.s32.totalorder %s289, %s292
      %p301 = scmp.eq.s32.totalorder %s38, 1
      %p302 = por %p300, %p301
      %p303 = scmp.ne.s32.totalorder %s292, %s293
      %p304 = scmp.eq.s32.totalorder %s38, 0
      %p305 = por %p303, %p304
      %p306 = scmp.ne.s32.totalorder %s292, %s293
      %p307 = scmp.eq.s32.totalorder %s39, 1
      %p308 = por %p306, %p307
      %p310 = scmp.ne.s32.totalorder %s293, %s309
      %p311 = scmp.eq.s32.totalorder %s39, 0
      %p312 = por %p310, %p311
      %s313 = ssub.s32 %s33, %s40
      %p314 = scmp.eq.s32.totalorder %s313, 0
      %s316 = sadd.s32 %s315, 1
      %s317 = scalar_select %p314, %s315, %s316
      %p320 = pneg %p314
      %p321 = scmp.eq.s32.totalorder %s33, 1
      %p322 = por %p320, %p321
      %p323 = scmp.ne.s32.totalorder %s315, %s318
      %p324 = scmp.eq.s32.totalorder %s33, 0
      %p325 = por %p323, %p324
      %p326 = scmp.ne.s32.totalorder %s315, %s318
      %p327 = scmp.eq.s32.totalorder %s38, 1
      %p328 = por %p326, %p327
      %p329 = scmp.ne.s32.totalorder %s318, %s319
      %p330 = scmp.eq.s32.totalorder %s38, 0
      %p331 = por %p329, %p330
      %p332 = scmp.ne.s32.totalorder %s318, %s319
      %p333 = scmp.eq.s32.totalorder %s39, 1
      %p334 = por %p332, %p333
      %p336 = scmp.ne.s32.totalorder %s319, %s335
      %p337 = scmp.eq.s32.totalorder %s39, 0
      %p338 = por %p336, %p337
      %p339 = scmp.le.s32.totalorder 1, %s33
      %p340 = scmp.lt.s32.totalorder %s33, 3
      %p341 = pnand %p339, %p340
      %p342 = pneg %p341
      // Predicated region
      $region9: #{tpu_custom_call.1} parent=5 // pred_check
        _
      $region10: #{tpu_custom_call.1} parent=5 // pred_check_branch
        %344 = sbr.rel (%p341) target = $region12
      $region11: #{tpu_custom_call.1} parent=5 // pred_region
        %s345 = ssub.s32 %s33, 1
        // Predicated region
        $region13: #{tpu_custom_call.1} parent=11 // pred_check
          %p346 = pneg %p106
        $region14: #{tpu_custom_call.1} parent=11 // pred_check_branch
          %348 = sbr.rel (%p346) target = $region16
        $region15: #{tpu_custom_call.1} parent=11 // pred_region
          %s350 = ssub.s32 16384, 16384
          %351 = vsyncadd [#allocation6], %s350
          %s352 = sshll.u32 [#allocation7], 4
          %s353 = int_to_ptr.vmem [resolvable:$true] %s352
          %358 = dma.hbm_to_vmem [thread:$0]  %s2, 16384, %s353, [#allocation6], 256, 256, 16
        $region16: #{tpu_custom_call.1} parent=11 // pred_fallthru
          _
        // Predicated region
        $region17: #{tpu_custom_call.1} parent=11 // pred_check
          %p359 = pneg %p127
        $region18: #{tpu_custom_call.1} parent=11 // pred_check_branch
          %361 = sbr.rel (%p359) target = $region20
        $region19: #{tpu_custom_call.1} parent=11 // pred_region
          _
        $region20: #{tpu_custom_call.1} parent=11 // pred_fallthru
          _
        // Predicated region
        $region21: #{tpu_custom_call.1} parent=11 // pred_check
          %p362 = pneg %p148
        $region22: #{tpu_custom_call.1} parent=11 // pred_check_branch
          %364 = sbr.rel (%p362) target = $region24
        $region23: #{tpu_custom_call.1} parent=11 // pred_region
          %s366 = ssub.s32 8192, 8192
          %367 = vsyncadd [#allocation9], %s366
          %s368 = sshll.u32 [#allocation8], 4
          %s369 = int_to_ptr.vmem [resolvable:$true] %s368
          %374 = dma.hbm_to_vmem [thread:$0]  %s4, 8192, %s369, [#allocation9], 128, 128, 8
        $region24: #{tpu_custom_call.1} parent=11 // pred_fallthru
          _
        // Predicated region
        $region25: #{tpu_custom_call.1} parent=11 // pred_check
          %p375 = pneg %p169
        $region26: #{tpu_custom_call.1} parent=11 // pred_check_branch
          %377 = sbr.rel (%p375) target = $region28
        $region27: #{tpu_custom_call.1} parent=11 // pred_region
          %s379 = ssub.s32 32, 32
          %380 = vsyncadd [#allocation9], %s379
          %s382 = sshll.u32 [#allocation10], 4
          %s383 = int_to_ptr.vmem [resolvable:$true] %s382
          %385 = dma.hbm_to_vmem [thread:$0]  %s5, 32, %s383, [#allocation9]
        $region28: #{tpu_custom_call.1} parent=11 // pred_fallthru
          _
        // Predicated region
        $region29: #{tpu_custom_call.1} parent=11 // pred_check
          %p386 = pneg %p190
        $region30: #{tpu_custom_call.1} parent=11 // pred_check_branch
          %388 = sbr.rel (%p386) target = $region32
        $region31: #{tpu_custom_call.1} parent=11 // pred_region
          %s390 = ssub.s32 2048, 2048
          %391 = vsyncadd [#allocation12], %s390
          %s392 = sshll.u32 [#allocation11], 4
          %s393 = int_to_ptr.vmem [resolvable:$true] %s392
          %398 = dma.hbm_to_vmem [thread:$0]  %s6, 2048, %s393, [#allocation12], 128, 128, 8
        $region32: #{tpu_custom_call.1} parent=11 // pred_fallthru
          _
        // Predicated region
        $region33: #{tpu_custom_call.1} parent=11 // pred_check
          %p399 = pneg %p211
        $region34: #{tpu_custom_call.1} parent=11 // pred_check_branch
          %401 = sbr.rel (%p399) target = $region36
        $region35: #{tpu_custom_call.1} parent=11 // pred_region
          _
        $region36: #{tpu_custom_call.1} parent=11 // pred_fallthru
          _
        // Predicated region
        $region37: #{tpu_custom_call.1} parent=11 // pred_check
          %p402 = pneg %p232
        $region38: #{tpu_custom_call.1} parent=11 // pred_check_branch
          %404 = sbr.rel (%p402) target = $region40
        $region39: #{tpu_custom_call.1} parent=11 // pred_region
          %s406 = ssub.s32 8192, 8192
          %407 = vsyncadd [#allocation12], %s406
          %s408 = sshll.u32 [#allocation13], 4
          %s409 = int_to_ptr.vmem [resolvable:$true] %s408
          %414 = dma.hbm_to_vmem [thread:$0]  %s8, 8192, %s409, [#allocation12], 256, 256, 16
        $region40: #{tpu_custom_call.1} parent=11 // pred_fallthru
          _
        // Predicated region
        $region41: #{tpu_custom_call.1} parent=11 // pred_check
          %p415 = pneg %p253
        $region42: #{tpu_custom_call.1} parent=11 // pred_check_branch
          %417 = sbr.rel (%p415) target = $region44
        $region43: #{tpu_custom_call.1} parent=11 // pred_region
          _
        $region44: #{tpu_custom_call.1} parent=11 // pred_fallthru
          _
      $region12: #{tpu_custom_call.1} parent=5 // pred_fallthru
        _
      %p418 = scmp.lt.s32.totalorder %s33, 2
      // Predicated region
      $region45: #{tpu_custom_call.1} parent=5 // pred_check
        %p419 = pneg %p418
      $region46: #{tpu_custom_call.1} parent=5 // pred_check_branch
        %421 = sbr.rel (%p419) target = $region48
      $region47: #{tpu_custom_call.1} parent=5 // pred_region
        // Predicated region
        $region49: #{tpu_custom_call.1} parent=47 // pred_check
          %p422 = pneg %p53
        $region50: #{tpu_custom_call.1} parent=47 // pred_check_branch
          %424 = sbr.rel (%p422) target = $region52
        $region51: #{tpu_custom_call.1} parent=47 // pred_region
          %s425 = sand.u32 %s43, 1
          %s426 = scalar_lea.sflag [#allocation3], %s425
          %s427 = sand.u32 %s43, 1
          %s428 = smul.addr %s427, 256
          %s429 = scalar_lea.vmem [#allocation2], %s428
          %s430 = smul.u32 16, %s33
          %s432 = ssub.s32 4096, 4096
          %433 = vsyncadd %s426, %s432
          %s434 = smul.addr %s430, 4
          %s435 = smul.addr %s434, 64
          %s436 = scalar_lea.hbm %s0, %s435
          %s437 = sshll.u32 %s429, 4
          %s438 = int_to_ptr.vmem [resolvable:$true] %s437
          %443 = dma.hbm_to_vmem [thread:$0]  %s436, 4096, %s438, %s426, 256, 256, 16
        $region52: #{tpu_custom_call.1} parent=47 // pred_fallthru
          _
        // Predicated region
        $region53: #{tpu_custom_call.1} parent=47 // pred_check
          %p444 = pneg %p79
        $region54: #{tpu_custom_call.1} parent=47 // pred_check_branch
          %446 = sbr.rel (%p444) target = $region56
        $region55: #{tpu_custom_call.1} parent=47 // pred_region
          %s447 = sand.u32 %s33, 1
          %s448 = scalar_lea.sflag [#allocation6], %s447
          %s449 = sand.u32 %s69, 1
          %s450 = smul.addr %s449, 128
          %s451 = scalar_lea.vmem [#allocation5], %s450
          %s452 = smul.u32 16, %s33
          %s454 = ssub.s32 2048, 2048
          %455 = vsyncadd %s448, %s454
          %s456 = smul.addr %s452, 128
          %s457 = scalar_lea.hbm %s1, %s456
          %s458 = sshll.u32 %s451, 4
          %s459 = int_to_ptr.vmem [resolvable:$true] %s458
          %464 = dma.hbm_to_vmem [thread:$0]  %s457, 2048, %s459, %s448, 128, 128, 8
        $region56: #{tpu_custom_call.1} parent=47 // pred_fallthru
          _
      $region48: #{tpu_custom_call.1} parent=5 // pred_fallthru
        _
      %p465 = scmp.le.s32.totalorder 1, %s33
      %p466 = scmp.lt.s32.totalorder %s33, 3
      %p467 = pnand %p465, %p466
      %p468 = pneg %p467
      // Predicated region
      $region57: #{tpu_custom_call.1} parent=5 // pred_check
        _
      $region58: #{tpu_custom_call.1} parent=5 // pred_check_branch
        %470 = sbr.rel (%p467) target = $region60
      $region59: #{tpu_custom_call.1} parent=5 // pred_region
        %s471 = ssub.s32 %s33, 1
        %s472 = sand.u32 %s46, 1
        %s473 = scalar_lea.sflag [#allocation3], %s472
        %s474 = sand.u32 %s46, 1
        %s475 = smul.addr %s474, 256
        %s476 = scalar_lea.vmem [#allocation2], %s475
        // Predicated region
        $region61: #{tpu_custom_call.1} parent=59 // pred_check
          %p477 = pneg %p59
        $region62: #{tpu_custom_call.1} parent=59 // pred_check_branch
          %479 = sbr.rel (%p477) target = $region64
        $region63: #{tpu_custom_call.1} parent=59 // pred_region
          %480 = dma.done %s473, 4096
        $region64: #{tpu_custom_call.1} parent=59 // pred_fallthru
          _
        %s481 = sand.u32 %s38, 1
        %s482 = scalar_lea.sflag [#allocation6], %s481
        %s483 = sand.u32 %s72, 1
        %s484 = smul.addr %s483, 128
        %s485 = scalar_lea.vmem [#allocation5], %s484
        // Predicated region
        $region65: #{tpu_custom_call.1} parent=59 // pred_check
          %p486 = pneg %p85
        $region66: #{tpu_custom_call.1} parent=59 // pred_check_branch
          %488 = sbr.rel (%p486) target = $region68
        $region67: #{tpu_custom_call.1} parent=59 // pred_region
          %489 = dma.done %s482, 2048
        $region68: #{tpu_custom_call.1} parent=59 // pred_fallthru
          _
        // Predicated region
        $region69: #{tpu_custom_call.1} parent=59 // pred_check
          %p490 = pneg %p106
        $region70: #{tpu_custom_call.1} parent=59 // pred_check_branch
          %492 = sbr.rel (%p490) target = $region72
        $region71: #{tpu_custom_call.1} parent=59 // pred_region
          %493 = dma.done [#allocation6], 16384
        $region72: #{tpu_custom_call.1} parent=59 // pred_fallthru
          _
        // Predicated region
        $region73: #{tpu_custom_call.1} parent=59 // pred_check
          %p494 = pneg %p148
        $region74: #{tpu_custom_call.1} parent=59 // pred_check_branch
          %496 = sbr.rel (%p494) target = $region76
        $region75: #{tpu_custom_call.1} parent=59 // pred_region
          %497 = dma.done [#allocation9], 8192
        $region76: #{tpu_custom_call.1} parent=59 // pred_fallthru
          _
        // Predicated region
        $region77: #{tpu_custom_call.1} parent=59 // pred_check
          %p498 = pneg %p169
        $region78: #{tpu_custom_call.1} parent=59 // pred_check_branch
          %500 = sbr.rel (%p498) target = $region80
        $region79: #{tpu_custom_call.1} parent=59 // pred_region
          %501 = dma.done [#allocation9], 32
        $region80: #{tpu_custom_call.1} parent=59 // pred_fallthru
          _
        // Predicated region
        $region81: #{tpu_custom_call.1} parent=59 // pred_check
          %p502 = pneg %p190
        $region82: #{tpu_custom_call.1} parent=59 // pred_check_branch
          %504 = sbr.rel (%p502) target = $region84
        $region83: #{tpu_custom_call.1} parent=59 // pred_region
          %505 = dma.done [#allocation12], 2048
        $region84: #{tpu_custom_call.1} parent=59 // pred_fallthru
          _
        // Predicated region
        $region85: #{tpu_custom_call.1} parent=59 // pred_check
          %p506 = pneg %p232
        $region86: #{tpu_custom_call.1} parent=59 // pred_check_branch
          %508 = sbr.rel (%p506) target = $region88
        $region87: #{tpu_custom_call.1} parent=59 // pred_region
          %509 = dma.done [#allocation12], 8192
        $region88: #{tpu_custom_call.1} parent=59 // pred_fallthru
          _
        %s510 = sand.u32 %s46, 1
        %s511 = scalar_lea.sflag [#allocation3], %s510
        %s512 = sand.u32 %s46, 1
        %s513 = smul.addr %s512, 256
        %s514 = scalar_lea.vmem [#allocation2], %s513
        %p515 = pneg %p59
        %p516 = pneg %p56
        %s517 = sand.u32 %s38, 1
        %s518 = scalar_lea.sflag [#allocation6], %s517
        %s519 = sand.u32 %s72, 1
        %s520 = smul.addr %s519, 128
        %s521 = scalar_lea.vmem [#allocation5], %s520
        %p522 = pneg %p85
        %p523 = pneg %p82
        %p524 = pneg %p106
        %p525 = pneg %p103
        %p526 = pneg %p127
        %p527 = pneg %p124
        %p528 = pneg %p148
        %p529 = pneg %p145
        %p530 = pneg %p169
        %p531 = pneg %p166
        %p532 = pneg %p190
        %p533 = pneg %p187
        %p534 = pneg %p211
        %p535 = pneg %p208
        %p536 = pneg %p232
        %p537 = pneg %p229
        %p538 = pneg %p253
        %p539 = pneg %p250
        %p540 = pneg %p279
        %p541 = pneg %p276
        %s542 = sand.u32 %s266, 1
        %s543 = scalar_lea.sflag [#allocation4], %s542
        %s544 = sand.u32 %s266, 1
        %s545 = smul.addr %s544, 128
        %s546 = scalar_lea.vmem [#allocation14], %s545
        %p547 = pneg %p305
        %p548 = pneg %p302
        %s549 = sand.u32 %s38, 1
        %s550 = scalar_lea.sflag [#allocation16], %s549
        %s551 = sand.u32 %s292, 1
        %s552 = smul.addr %s551, 128
        %s553 = scalar_lea.vmem [#allocation15], %s552
        %p554 = pneg %p331
        %p555 = pneg %p328
        %s556 = sand.u32 %s38, 1
        %s557 = scalar_lea.sflag [#allocation16], %s556
        %s558 = sand.u32 %s318, 1
        %s559 = smul.addr %s558, 512
        %s560 = scalar_lea.vmem [#allocation17], %s559
        %s561 = smul.u32 16, %s38
        %s562 = smul.u32 16, %s38
        %s563 = smul.u32 16, %s38
        %s564 = smul.u32 16, %s38
        %s565 = smul.u32 16, %s38
        %v567 = vld [vmem:[%s476] sm:$0xff]
        %v568 = vld [vmem:[%s476 + $0x8] sm:$0xff]
        %v569 = vld [vmem:[%s476 + $0x10] sm:$0xff]
        %v570 = vld [vmem:[%s476 + $0x18] sm:$0xff]
        %v571 = vld [vmem:[%s476 + $0x20] sm:$0xff]
        %v572 = vld [vmem:[%s476 + $0x28] sm:$0xff]
        %v573 = vld [vmem:[%s476 + $0x30] sm:$0xff]
        %v574 = vld [vmem:[%s476 + $0x38] sm:$0xff]
        %v575 = vld [vmem:[%s476 + $0x40] sm:$0xff]
        %v576 = vld [vmem:[%s476 + $0x48] sm:$0xff]
        %v577 = vld [vmem:[%s476 + $0x50] sm:$0xff]
        %v578 = vld [vmem:[%s476 + $0x58] sm:$0xff]
        %v579 = vld [vmem:[%s476 + $0x60] sm:$0xff]
        %v580 = vld [vmem:[%s476 + $0x68] sm:$0xff]
        %v581 = vld [vmem:[%s476 + $0x70] sm:$0xff]
        %v582 = vld [vmem:[%s476 + $0x78] sm:$0xff]
        %v583 = vld [vmem:[%s476 + $0x80] sm:$0xff]
        %v584 = vld [vmem:[%s476 + $0x88] sm:$0xff]
        %v585 = vld [vmem:[%s476 + $0x90] sm:$0xff]
        %v586 = vld [vmem:[%s476 + $0x98] sm:$0xff]
        %v587 = vld [vmem:[%s476 + $0xa0] sm:$0xff]
        %v588 = vld [vmem:[%s476 + $0xa8] sm:$0xff]
        %v589 = vld [vmem:[%s476 + $0xb0] sm:$0xff]
        %v590 = vld [vmem:[%s476 + $0xb8] sm:$0xff]
        %v591 = vld [vmem:[%s476 + $0xc0] sm:$0xff]
        %v592 = vld [vmem:[%s476 + $0xc8] sm:$0xff]
        %v593 = vld [vmem:[%s476 + $0xd0] sm:$0xff]
        %v594 = vld [vmem:[%s476 + $0xd8] sm:$0xff]
        %v595 = vld [vmem:[%s476 + $0xe0] sm:$0xff]
        %v596 = vld [vmem:[%s476 + $0xe8] sm:$0xff]
        %v597 = vld [vmem:[%s476 + $0xf0] sm:$0xff]
        %v598 = vld [vmem:[%s476 + $0xf8] sm:$0xff]
        %v599 = vld [vmem:[%s485] sm:$0xff]
        %v600 = vld [vmem:[%s485 + $0x8] sm:$0xff]
        %v601 = vld [vmem:[%s485 + $0x10] sm:$0xff]
        %v602 = vld [vmem:[%s485 + $0x18] sm:$0xff]
        %v603 = vld [vmem:[%s485 + $0x20] sm:$0xff]
        %v604 = vld [vmem:[%s485 + $0x28] sm:$0xff]
        %v605 = vld [vmem:[%s485 + $0x30] sm:$0xff]
        %v606 = vld [vmem:[%s485 + $0x38] sm:$0xff]
        %v607 = vld [vmem:[%s485 + $0x40] sm:$0xff]
        %v608 = vld [vmem:[%s485 + $0x48] sm:$0xff]
        %v609 = vld [vmem:[%s485 + $0x50] sm:$0xff]
        %v610 = vld [vmem:[%s485 + $0x58] sm:$0xff]
        %v611 = vld [vmem:[%s485 + $0x60] sm:$0xff]
        %v612 = vld [vmem:[%s485 + $0x68] sm:$0xff]
        %v613 = vld [vmem:[%s485 + $0x70] sm:$0xff]
        %v614 = vld [vmem:[%s485 + $0x78] sm:$0xff]
        %v615 = vld [vmem:[#allocation7] sm:$0xff]
        %v616 = vld [vmem:[#allocation7 + $0x8] sm:$0xff]
        %v617 = vld [vmem:[#allocation7 + $0x10] sm:$0xff]
        %v618 = vld [vmem:[#allocation7 + $0x18] sm:$0xff]
        %v619 = vld [vmem:[#allocation7 + $0x20] sm:$0xff]
        %v620 = vld [vmem:[#allocation7 + $0x28] sm:$0xff]
        %v621 = vld [vmem:[#allocation7 + $0x30] sm:$0xff]
        %v622 = vld [vmem:[#allocation7 + $0x38] sm:$0xff]
        %v623 = vld [vmem:[#allocation7 + $0x40] sm:$0xff]
        %v624 = vld [vmem:[#allocation7 + $0x48] sm:$0xff]
        %v625 = vld [vmem:[#allocation7 + $0x50] sm:$0xff]
        %v626 = vld [vmem:[#allocation7 + $0x58] sm:$0xff]
        %v627 = vld [vmem:[#allocation7 + $0x60] sm:$0xff]
        %v628 = vld [vmem:[#allocation7 + $0x68] sm:$0xff]
        %v629 = vld [vmem:[#allocation7 + $0x70] sm:$0xff]
        %v630 = vld [vmem:[#allocation7 + $0x78] sm:$0xff]
        %v631 = vld [vmem:[#allocation7 + $0x80] sm:$0xff]
        %v632 = vld [vmem:[#allocation7 + $0x88] sm:$0xff]
        %v633 = vld [vmem:[#allocation7 + $0x90] sm:$0xff]
        %v634 = vld [vmem:[#allocation7 + $0x98] sm:$0xff]
        %v635 = vld [vmem:[#allocation7 + $0xa0] sm:$0xff]
        %v636 = vld [vmem:[#allocation7 + $0xa8] sm:$0xff]
        %v637 = vld [vmem:[#allocation7 + $0xb0] sm:$0xff]
        %v638 = vld [vmem:[#allocation7 + $0xb8] sm:$0xff]
        %v639 = vld [vmem:[#allocation7 + $0xc0] sm:$0xff]
        %v640 = vld [vmem:[#allocation7 + $0xc8] sm:$0xff]
        %v641 = vld [vmem:[#allocation7 + $0xd0] sm:$0xff]
        %v642 = vld [vmem:[#allocation7 + $0xd8] sm:$0xff]
        %v643 = vld [vmem:[#allocation7 + $0xe0] sm:$0xff]
        %v644 = vld [vmem:[#allocation7 + $0xe8] sm:$0xff]
        %v645 = vld [vmem:[#allocation7 + $0xf0] sm:$0xff]
        %v646 = vld [vmem:[#allocation7 + $0xf8] sm:$0xff]
        %v647 = vld [vmem:[#allocation7 + $0x100] sm:$0xff]
        %v648 = vld [vmem:[#allocation7 + $0x108] sm:$0xff]
        %v649 = vld [vmem:[#allocation7 + $0x110] sm:$0xff]
        %v650 = vld [vmem:[#allocation7 + $0x118] sm:$0xff]
        %v651 = vld [vmem:[#allocation7 + $0x120] sm:$0xff]
        %v652 = vld [vmem:[#allocation7 + $0x128] sm:$0xff]
        %v653 = vld [vmem:[#allocation7 + $0x130] sm:$0xff]
        %v654 = vld [vmem:[#allocation7 + $0x138] sm:$0xff]
        %v655 = vld [vmem:[#allocation7 + $0x140] sm:$0xff]
        %v656 = vld [vmem:[#allocation7 + $0x148] sm:$0xff]
        %v657 = vld [vmem:[#allocation7 + $0x150] sm:$0xff]
        %v658 = vld [vmem:[#allocation7 + $0x158] sm:$0xff]
        %v659 = vld [vmem:[#allocation7 + $0x160] sm:$0xff]
        %v660 = vld [vmem:[#allocation7 + $0x168] sm:$0xff]
        %v661 = vld [vmem:[#allocation7 + $0x170] sm:$0xff]
        %v662 = vld [vmem:[#allocation7 + $0x178] sm:$0xff]
        %v663 = vld [vmem:[#allocation7 + $0x180] sm:$0xff]
        %v664 = vld [vmem:[#allocation7 + $0x188] sm:$0xff]
        %v665 = vld [vmem:[#allocation7 + $0x190] sm:$0xff]
        %v666 = vld [vmem:[#allocation7 + $0x198] sm:$0xff]
        %v667 = vld [vmem:[#allocation7 + $0x1a0] sm:$0xff]
        %v668 = vld [vmem:[#allocation7 + $0x1a8] sm:$0xff]
        %v669 = vld [vmem:[#allocation7 + $0x1b0] sm:$0xff]
        %v670 = vld [vmem:[#allocation7 + $0x1b8] sm:$0xff]
        %v671 = vld [vmem:[#allocation7 + $0x1c0] sm:$0xff]
        %v672 = vld [vmem:[#allocation7 + $0x1c8] sm:$0xff]
        %v673 = vld [vmem:[#allocation7 + $0x1d0] sm:$0xff]
        %v674 = vld [vmem:[#allocation7 + $0x1d8] sm:$0xff]
        %v675 = vld [vmem:[#allocation7 + $0x1e0] sm:$0xff]
        %v676 = vld [vmem:[#allocation7 + $0x1e8] sm:$0xff]
        %v677 = vld [vmem:[#allocation7 + $0x1f0] sm:$0xff]
        %v678 = vld [vmem:[#allocation7 + $0x1f8] sm:$0xff]
        %v679 = vld [vmem:[#allocation7 + $0x200] sm:$0xff]
        %v680 = vld [vmem:[#allocation7 + $0x208] sm:$0xff]
        %v681 = vld [vmem:[#allocation7 + $0x210] sm:$0xff]
        %v682 = vld [vmem:[#allocation7 + $0x218] sm:$0xff]
        %v683 = vld [vmem:[#allocation7 + $0x220] sm:$0xff]
        %v684 = vld [vmem:[#allocation7 + $0x228] sm:$0xff]
        %v685 = vld [vmem:[#allocation7 + $0x230] sm:$0xff]
        %v686 = vld [vmem:[#allocation7 + $0x238] sm:$0xff]
        %v687 = vld [vmem:[#allocation7 + $0x240] sm:$0xff]
        %v688 = vld [vmem:[#allocation7 + $0x248] sm:$0xff]
        %v689 = vld [vmem:[#allocation7 + $0x250] sm:$0xff]
        %v690 = vld [vmem:[#allocation7 + $0x258] sm:$0xff]
        %v691 = vld [vmem:[#allocation7 + $0x260] sm:$0xff]
        %v692 = vld [vmem:[#allocation7 + $0x268] sm:$0xff]
        %v693 = vld [vmem:[#allocation7 + $0x270] sm:$0xff]
        %v694 = vld [vmem:[#allocation7 + $0x278] sm:$0xff]
        %v695 = vld [vmem:[#allocation7 + $0x280] sm:$0xff]
        %v696 = vld [vmem:[#allocation7 + $0x288] sm:$0xff]
        %v697 = vld [vmem:[#allocation7 + $0x290] sm:$0xff]
        %v698 = vld [vmem:[#allocation7 + $0x298] sm:$0xff]
        %v699 = vld [vmem:[#allocation7 + $0x2a0] sm:$0xff]
        %v700 = vld [vmem:[#allocation7 + $0x2a8] sm:$0xff]
        %v701 = vld [vmem:[#allocation7 + $0x2b0] sm:$0xff]
        %v702 = vld [vmem:[#allocation7 + $0x2b8] sm:$0xff]
        %v703 = vld [vmem:[#allocation7 + $0x2c0] sm:$0xff]
        %v704 = vld [vmem:[#allocation7 + $0x2c8] sm:$0xff]
        %v705 = vld [vmem:[#allocation7 + $0x2d0] sm:$0xff]
        %v706 = vld [vmem:[#allocation7 + $0x2d8] sm:$0xff]
        %v707 = vld [vmem:[#allocation7 + $0x2e0] sm:$0xff]
        %v708 = vld [vmem:[#allocation7 + $0x2e8] sm:$0xff]
        %v709 = vld [vmem:[#allocation7 + $0x2f0] sm:$0xff]
        %v710 = vld [vmem:[#allocation7 + $0x2f8] sm:$0xff]
        %v711 = vld [vmem:[#allocation7 + $0x300] sm:$0xff]
        %v712 = vld [vmem:[#allocation7 + $0x308] sm:$0xff]
        %v713 = vld [vmem:[#allocation7 + $0x310] sm:$0xff]
        %v714 = vld [vmem:[#allocation7 + $0x318] sm:$0xff]
        %v715 = vld [vmem:[#allocation7 + $0x320] sm:$0xff]
        %v716 = vld [vmem:[#allocation7 + $0x328] sm:$0xff]
        %v717 = vld [vmem:[#allocation7 + $0x330] sm:$0xff]
        %v718 = vld [vmem:[#allocation7 + $0x338] sm:$0xff]
        %v719 = vld [vmem:[#allocation7 + $0x340] sm:$0xff]
        %v720 = vld [vmem:[#allocation7 + $0x348] sm:$0xff]
        %v721 = vld [vmem:[#allocation7 + $0x350] sm:$0xff]
        %v722 = vld [vmem:[#allocation7 + $0x358] sm:$0xff]
        %v723 = vld [vmem:[#allocation7 + $0x360] sm:$0xff]
        %v724 = vld [vmem:[#allocation7 + $0x368] sm:$0xff]
        %v725 = vld [vmem:[#allocation7 + $0x370] sm:$0xff]
        %v726 = vld [vmem:[#allocation7 + $0x378] sm:$0xff]
        %v727 = vld [vmem:[#allocation7 + $0x380] sm:$0xff]
        %v728 = vld [vmem:[#allocation7 + $0x388] sm:$0xff]
        %v729 = vld [vmem:[#allocation7 + $0x390] sm:$0xff]
        %v730 = vld [vmem:[#allocation7 + $0x398] sm:$0xff]
        %v731 = vld [vmem:[#allocation7 + $0x3a0] sm:$0xff]
        %v732 = vld [vmem:[#allocation7 + $0x3a8] sm:$0xff]
        %v733 = vld [vmem:[#allocation7 + $0x3b0] sm:$0xff]
        %v734 = vld [vmem:[#allocation7 + $0x3b8] sm:$0xff]
        %v735 = vld [vmem:[#allocation7 + $0x3c0] sm:$0xff]
        %v736 = vld [vmem:[#allocation7 + $0x3c8] sm:$0xff]
        %v737 = vld [vmem:[#allocation7 + $0x3d0] sm:$0xff]
        %v738 = vld [vmem:[#allocation7 + $0x3d8] sm:$0xff]
        %v739 = vld [vmem:[#allocation7 + $0x3e0] sm:$0xff]
        %v740 = vld [vmem:[#allocation7 + $0x3e8] sm:$0xff]
        %v741 = vld [vmem:[#allocation7 + $0x3f0] sm:$0xff]
        %v742 = vld [vmem:[#allocation7 + $0x3f8] sm:$0xff]
        %v743 = vld [vmem:[%s3] sm:$0xf]
        %v745 = vlaneseq
        %v746 = vshrl.u32 %v745, 7
        %v747 = vsub.s32 0, %v746
        %v748 = vrot.slane %v743, %v747
        %v749 = vlaneseq
        %v750 = vshrl.u32 %v749, 7
        %v751 = vsub.s32 1, %v750
        %v752 = vrot.slane %v743, %v751
        %v753 = vlaneseq
        %v754 = vshrl.u32 %v753, 7
        %v755 = vsub.s32 2, %v754
        %v756 = vrot.slane %v743, %v755
        %v757 = vlaneseq
        %v758 = vshrl.u32 %v757, 7
        %v759 = vsub.s32 3, %v758
        %v760 = vrot.slane %v743, %v759
        %v797 = vunpack.c.l.b16 %v567
        %v798 = vunpack.c.h.b16 %v567
        %v799 = vunpack.c.l.b16 %v568
        %v800 = vunpack.c.h.b16 %v568
        %v801 = vunpack.c.l.b16 %v569
        %v802 = vunpack.c.h.b16 %v569
        %v803 = vunpack.c.l.b16 %v570
        %v804 = vunpack.c.h.b16 %v570
        %v805 = vunpack.c.l.b16 %v571
        %v806 = vunpack.c.h.b16 %v571
        %v807 = vunpack.c.l.b16 %v572
        %v808 = vunpack.c.h.b16 %v572
        %v809 = vunpack.c.l.b16 %v573
        %v810 = vunpack.c.h.b16 %v573
        %v811 = vunpack.c.l.b16 %v574
        %v812 = vunpack.c.h.b16 %v574
        %v813 = vunpack.c.l.b16 %v575
        %v814 = vunpack.c.h.b16 %v575
        %v815 = vunpack.c.l.b16 %v576
        %v816 = vunpack.c.h.b16 %v576
        %v817 = vunpack.c.l.b16 %v577
        %v818 = vunpack.c.h.b16 %v577
        %v819 = vunpack.c.l.b16 %v578
        %v820 = vunpack.c.h.b16 %v578
        %v821 = vunpack.c.l.b16 %v579
        %v822 = vunpack.c.h.b16 %v579
        %v823 = vunpack.c.l.b16 %v580
        %v824 = vunpack.c.h.b16 %v580
        %v825 = vunpack.c.l.b16 %v581
        %v826 = vunpack.c.h.b16 %v581
        %v827 = vunpack.c.l.b16 %v582
        %v828 = vunpack.c.h.b16 %v582
        %v829 = vunpack.c.l.b16 %v583
        %v830 = vunpack.c.h.b16 %v583
        %v831 = vunpack.c.l.b16 %v584
        %v832 = vunpack.c.h.b16 %v584
        %v833 = vunpack.c.l.b16 %v585
        %v834 = vunpack.c.h.b16 %v585
        %v835 = vunpack.c.l.b16 %v586
        %v836 = vunpack.c.h.b16 %v586
        %v837 = vunpack.c.l.b16 %v587
        %v838 = vunpack.c.h.b16 %v587
        %v839 = vunpack.c.l.b16 %v588
        %v840 = vunpack.c.h.b16 %v588
        %v841 = vunpack.c.l.b16 %v589
        %v842 = vunpack.c.h.b16 %v589
        %v843 = vunpack.c.l.b16 %v590
        %v844 = vunpack.c.h.b16 %v590
        %v845 = vunpack.c.l.b16 %v591
        %v846 = vunpack.c.h.b16 %v591
        %v847 = vunpack.c.l.b16 %v592
        %v848 = vunpack.c.h.b16 %v592
        %v849 = vunpack.c.l.b16 %v593
        %v850 = vunpack.c.h.b16 %v593
        %v851 = vunpack.c.l.b16 %v594
        %v852 = vunpack.c.h.b16 %v594
        %v853 = vunpack.c.l.b16 %v595
        %v854 = vunpack.c.h.b16 %v595
        %v855 = vunpack.c.l.b16 %v596
        %v856 = vunpack.c.h.b16 %v596
        %v857 = vunpack.c.l.b16 %v597
        %v858 = vunpack.c.h.b16 %v597
        %v859 = vunpack.c.l.b16 %v598
        %v860 = vunpack.c.h.b16 %v598
        %v861 = vpack.c.b16 %v801, %v797
        %v862 = vpack.c.b16 %v802, %v798
        %v863 = vpack.c.b16 %v803, %v799
        %v864 = vpack.c.b16 %v804, %v800
        %v865 = vpack.c.b16 %v809, %v805
        %v866 = vpack.c.b16 %v810, %v806
        %v867 = vpack.c.b16 %v811, %v807
        %v868 = vpack.c.b16 %v812, %v808
        %v869 = vpack.c.b16 %v817, %v813
        %v870 = vpack.c.b16 %v818, %v814
        %v871 = vpack.c.b16 %v819, %v815
        %v872 = vpack.c.b16 %v820, %v816
        %v873 = vpack.c.b16 %v825, %v821
        %v874 = vpack.c.b16 %v826, %v822
        %v875 = vpack.c.b16 %v827, %v823
        %v876 = vpack.c.b16 %v828, %v824
        %v877 = vpack.c.b16 %v833, %v829
        %v878 = vpack.c.b16 %v834, %v830
        %v879 = vpack.c.b16 %v835, %v831
        %v880 = vpack.c.b16 %v836, %v832
        %v881 = vpack.c.b16 %v841, %v837
        %v882 = vpack.c.b16 %v842, %v838
        %v883 = vpack.c.b16 %v843, %v839
        %v884 = vpack.c.b16 %v844, %v840
        %v885 = vpack.c.b16 %v849, %v845
        %v886 = vpack.c.b16 %v850, %v846
        %v887 = vpack.c.b16 %v851, %v847
        %v888 = vpack.c.b16 %v852, %v848
        %v889 = vpack.c.b16 %v857, %v853
        %v890 = vpack.c.b16 %v858, %v854
        %v891 = vpack.c.b16 %v859, %v855
        %v892 = vpack.c.b16 %v860, %v856
        %v1053 = vunpack.c.l.b16 %v615
        %v1054 = vunpack.c.h.b16 %v615
        %v1055 = vunpack.c.l.b16 %v616
        %v1056 = vunpack.c.h.b16 %v616
        %v1057 = vunpack.c.l.b16 %v617
        %v1058 = vunpack.c.h.b16 %v617
        %v1059 = vunpack.c.l.b16 %v618
        %v1060 = vunpack.c.h.b16 %v618
        %v1061 = vunpack.c.l.b16 %v619
        %v1062 = vunpack.c.h.b16 %v619
        %v1063 = vunpack.c.l.b16 %v620
        %v1064 = vunpack.c.h.b16 %v620
        %v1065 = vunpack.c.l.b16 %v621
        %v1066 = vunpack.c.h.b16 %v621
        %v1067 = vunpack.c.l.b16 %v622
        %v1068 = vunpack.c.h.b16 %v622
        %v1069 = vunpack.c.l.b16 %v623
        %v1070 = vunpack.c.h.b16 %v623
        %v1071 = vunpack.c.l.b16 %v624
        %v1072 = vunpack.c.h.b16 %v624
        %v1073 = vunpack.c.l.b16 %v625
        %v1074 = vunpack.c.h.b16 %v625
        %v1075 = vunpack.c.l.b16 %v626
        %v1076 = vunpack.c.h.b16 %v626
        %v1077 = vunpack.c.l.b16 %v627
        %v1078 = vunpack.c.h.b16 %v627
        %v1079 = vunpack.c.l.b16 %v628
        %v1080 = vunpack.c.h.b16 %v628
        %v1081 = vunpack.c.l.b16 %v629
        %v1082 = vunpack.c.h.b16 %v629
        %v1083 = vunpack.c.l.b16 %v630
        %v1084 = vunpack.c.h.b16 %v630
        %v1085 = vunpack.c.l.b16 %v631
        %v1086 = vunpack.c.h.b16 %v631
        %v1087 = vunpack.c.l.b16 %v632
        %v1088 = vunpack.c.h.b16 %v632
        %v1089 = vunpack.c.l.b16 %v633
        %v1090 = vunpack.c.h.b16 %v633
        %v1091 = vunpack.c.l.b16 %v634
        %v1092 = vunpack.c.h.b16 %v634
        %v1093 = vunpack.c.l.b16 %v635
        %v1094 = vunpack.c.h.b16 %v635
        %v1095 = vunpack.c.l.b16 %v636
        %v1096 = vunpack.c.h.b16 %v636
        %v1097 = vunpack.c.l.b16 %v637
        %v1098 = vunpack.c.h.b16 %v637
        %v1099 = vunpack.c.l.b16 %v638
        %v1100 = vunpack.c.h.b16 %v638
        %v1101 = vunpack.c.l.b16 %v639
        %v1102 = vunpack.c.h.b16 %v639
        %v1103 = vunpack.c.l.b16 %v640
        %v1104 = vunpack.c.h.b16 %v640
        %v1105 = vunpack.c.l.b16 %v641
        %v1106 = vunpack.c.h.b16 %v641
        %v1107 = vunpack.c.l.b16 %v642
        %v1108 = vunpack.c.h.b16 %v642
        %v1109 = vunpack.c.l.b16 %v643
        %v1110 = vunpack.c.h.b16 %v643
        %v1111 = vunpack.c.l.b16 %v644
        %v1112 = vunpack.c.h.b16 %v644
        %v1113 = vunpack.c.l.b16 %v645
        %v1114 = vunpack.c.h.b16 %v645
        %v1115 = vunpack.c.l.b16 %v646
        %v1116 = vunpack.c.h.b16 %v646
        %v1117 = vunpack.c.l.b16 %v647
        %v1118 = vunpack.c.h.b16 %v647
        %v1119 = vunpack.c.l.b16 %v648
        %v1120 = vunpack.c.h.b16 %v648
        %v1121 = vunpack.c.l.b16 %v649
        %v1122 = vunpack.c.h.b16 %v649
        %v1123 = vunpack.c.l.b16 %v650
        %v1124 = vunpack.c.h.b16 %v650
        %v1125 = vunpack.c.l.b16 %v651
        %v1126 = vunpack.c.h.b16 %v651
        %v1127 = vunpack.c.l.b16 %v652
        %v1128 = vunpack.c.h.b16 %v652
        %v1129 = vunpack.c.l.b16 %v653
        %v1130 = vunpack.c.h.b16 %v653
        %v1131 = vunpack.c.l.b16 %v654
        %v1132 = vunpack.c.h.b16 %v654
        %v1133 = vunpack.c.l.b16 %v655
        %v1134 = vunpack.c.h.b16 %v655
        %v1135 = vunpack.c.l.b16 %v656
        %v1136 = vunpack.c.h.b16 %v656
        %v1137 = vunpack.c.l.b16 %v657
        %v1138 = vunpack.c.h.b16 %v657
        %v1139 = vunpack.c.l.b16 %v658
        %v1140 = vunpack.c.h.b16 %v658
        %v1141 = vunpack.c.l.b16 %v659
        %v1142 = vunpack.c.h.b16 %v659
        %v1143 = vunpack.c.l.b16 %v660
        %v1144 = vunpack.c.h.b16 %v660
        %v1145 = vunpack.c.l.b16 %v661
        %v1146 = vunpack.c.h.b16 %v661
        %v1147 = vunpack.c.l.b16 %v662
        %v1148 = vunpack.c.h.b16 %v662
        %v1149 = vunpack.c.l.b16 %v663
        %v1150 = vunpack.c.h.b16 %v663
        %v1151 = vunpack.c.l.b16 %v664
        %v1152 = vunpack.c.h.b16 %v664
        %v1153 = vunpack.c.l.b16 %v665
        %v1154 = vunpack.c.h.b16 %v665
        %v1155 = vunpack.c.l.b16 %v666
        %v1156 = vunpack.c.h.b16 %v666
        %v1157 = vunpack.c.l.b16 %v667
        %v1158 = vunpack.c.h.b16 %v667
        %v1159 = vunpack.c.l.b16 %v668
        %v1160 = vunpack.c.h.b16 %v668
        %v1161 = vunpack.c.l.b16 %v669
        %v1162 = vunpack.c.h.b16 %v669
        %v1163 = vunpack.c.l.b16 %v670
        %v1164 = vunpack.c.h.b16 %v670
        %v1165 = vunpack.c.l.b16 %v671
        %v1166 = vunpack.c.h.b16 %v671
        %v1167 = vunpack.c.l.b16 %v672
        %v1168 = vunpack.c.h.b16 %v672
        %v1169 = vunpack.c.l.b16 %v673
        %v1170 = vunpack.c.h.b16 %v673
        %v1171 = vunpack.c.l.b16 %v674
        %v1172 = vunpack.c.h.b16 %v674
        %v1173 = vunpack.c.l.b16 %v675
        %v1174 = vunpack.c.h.b16 %v675
        %v1175 = vunpack.c.l.b16 %v676
        %v1176 = vunpack.c.h.b16 %v676
        %v1177 = vunpack.c.l.b16 %v677
        %v1178 = vunpack.c.h.b16 %v677
        %v1179 = vunpack.c.l.b16 %v678
        %v1180 = vunpack.c.h.b16 %v678
        %v1181 = vunpack.c.l.b16 %v679
        %v1182 = vunpack.c.h.b16 %v679
        %v1183 = vunpack.c.l.b16 %v680
        %v1184 = vunpack.c.h.b16 %v680
        %v1185 = vunpack.c.l.b16 %v681
        %v1186 = vunpack.c.h.b16 %v681
        %v1187 = vunpack.c.l.b16 %v682
        %v1188 = vunpack.c.h.b16 %v682
        %v1189 = vunpack.c.l.b16 %v683
        %v1190 = vunpack.c.h.b16 %v683
        %v1191 = vunpack.c.l.b16 %v684
        %v1192 = vunpack.c.h.b16 %v684
        %v1193 = vunpack.c.l.b16 %v685
        %v1194 = vunpack.c.h.b16 %v685
        %v1195 = vunpack.c.l.b16 %v686
        %v1196 = vunpack.c.h.b16 %v686
        %v1197 = vunpack.c.l.b16 %v687
        %v1198 = vunpack.c.h.b16 %v687
        %v1199 = vunpack.c.l.b16 %v688
        %v1200 = vunpack.c.h.b16 %v688
        %v1201 = vunpack.c.l.b16 %v689
        %v1202 = vunpack.c.h.b16 %v689
        %v1203 = vunpack.c.l.b16 %v690
        %v1204 = vunpack.c.h.b16 %v690
        %v1205 = vunpack.c.l.b16 %v691
        %v1206 = vunpack.c.h.b16 %v691
        %v1207 = vunpack.c.l.b16 %v692
        %v1208 = vunpack.c.h.b16 %v692
        %v1209 = vunpack.c.l.b16 %v693
        %v1210 = vunpack.c.h.b16 %v693
        %v1211 = vunpack.c.l.b16 %v694
        %v1212 = vunpack.c.h.b16 %v694
        %v1213 = vunpack.c.l.b16 %v695
        %v1214 = vunpack.c.h.b16 %v695
        %v1215 = vunpack.c.l.b16 %v696
        %v1216 = vunpack.c.h.b16 %v696
        %v1217 = vunpack.c.l.b16 %v697
        %v1218 = vunpack.c.h.b16 %v697
        %v1219 = vunpack.c.l.b16 %v698
        %v1220 = vunpack.c.h.b16 %v698
        %v1221 = vunpack.c.l.b16 %v699
        %v1222 = vunpack.c.h.b16 %v699
        %v1223 = vunpack.c.l.b16 %v700
        %v1224 = vunpack.c.h.b16 %v700
        %v1225 = vunpack.c.l.b16 %v701
        %v1226 = vunpack.c.h.b16 %v701
        %v1227 = vunpack.c.l.b16 %v702
        %v1228 = vunpack.c.h.b16 %v702
        %v1229 = vunpack.c.l.b16 %v703
        %v1230 = vunpack.c.h.b16 %v703
        %v1231 = vunpack.c.l.b16 %v704
        %v1232 = vunpack.c.h.b16 %v704
        %v1233 = vunpack.c.l.b16 %v705
        %v1234 = vunpack.c.h.b16 %v705
        %v1235 = vunpack.c.l.b16 %v706
        %v1236 = vunpack.c.h.b16 %v706
        %v1237 = vunpack.c.l.b16 %v707
        %v1238 = vunpack.c.h.b16 %v707
        %v1239 = vunpack.c.l.b16 %v708
        %v1240 = vunpack.c.h.b16 %v708
        %v1241 = vunpack.c.l.b16 %v709
        %v1242 = vunpack.c.h.b16 %v709
        %v1243 = vunpack.c.l.b16 %v710
        %v1244 = vunpack.c.h.b16 %v710
        %v1245 = vunpack.c.l.b16 %v711
        %v1246 = vunpack.c.h.b16 %v711
        %v1247 = vunpack.c.l.b16 %v712
        %v1248 = vunpack.c.h.b16 %v712
        %v1249 = vunpack.c.l.b16 %v713
        %v1250 = vunpack.c.h.b16 %v713
        %v1251 = vunpack.c.l.b16 %v714
        %v1252 = vunpack.c.h.b16 %v714
        %v1253 = vunpack.c.l.b16 %v715
        %v1254 = vunpack.c.h.b16 %v715
        %v1255 = vunpack.c.l.b16 %v716
        %v1256 = vunpack.c.h.b16 %v716
        %v1257 = vunpack.c.l.b16 %v717
        %v1258 = vunpack.c.h.b16 %v717
        %v1259 = vunpack.c.l.b16 %v718
        %v1260 = vunpack.c.h.b16 %v718
        %v1261 = vunpack.c.l.b16 %v719
        %v1262 = vunpack.c.h.b16 %v719
        %v1263 = vunpack.c.l.b16 %v720
        %v1264 = vunpack.c.h.b16 %v720
        %v1265 = vunpack.c.l.b16 %v721
        %v1266 = vunpack.c.h.b16 %v721
        %v1267 = vunpack.c.l.b16 %v722
        %v1268 = vunpack.c.h.b16 %v722
        %v1269 = vunpack.c.l.b16 %v723
        %v1270 = vunpack.c.h.b16 %v723
        %v1271 = vunpack.c.l.b16 %v724
        %v1272 = vunpack.c.h.b16 %v724
        %v1273 = vunpack.c.l.b16 %v725
        %v1274 = vunpack.c.h.b16 %v725
        %v1275 = vunpack.c.l.b16 %v726
        %v1276 = vunpack.c.h.b16 %v726
        %v1277 = vunpack.c.l.b16 %v727
        %v1278 = vunpack.c.h.b16 %v727
        %v1279 = vunpack.c.l.b16 %v728
        %v1280 = vunpack.c.h.b16 %v728
        %v1281 = vunpack.c.l.b16 %v729
        %v1282 = vunpack.c.h.b16 %v729
        %v1283 = vunpack.c.l.b16 %v730
        %v1284 = vunpack.c.h.b16 %v730
        %v1285 = vunpack.c.l.b16 %v731
        %v1286 = vunpack.c.h.b16 %v731
        %v1287 = vunpack.c.l.b16 %v732
        %v1288 = vunpack.c.h.b16 %v732
        %v1289 = vunpack.c.l.b16 %v733
        %v1290 = vunpack.c.h.b16 %v733
        %v1291 = vunpack.c.l.b16 %v734
        %v1292 = vunpack.c.h.b16 %v734
        %v1293 = vunpack.c.l.b16 %v735
        %v1294 = vunpack.c.h.b16 %v735
        %v1295 = vunpack.c.l.b16 %v736
        %v1296 = vunpack.c.h.b16 %v736
        %v1297 = vunpack.c.l.b16 %v737
        %v1298 = vunpack.c.h.b16 %v737
        %v1299 = vunpack.c.l.b16 %v738
        %v1300 = vunpack.c.h.b16 %v738
        %v1301 = vunpack.c.l.b16 %v739
        %v1302 = vunpack.c.h.b16 %v739
        %v1303 = vunpack.c.l.b16 %v740
        %v1304 = vunpack.c.h.b16 %v740
        %v1305 = vunpack.c.l.b16 %v741
        %v1306 = vunpack.c.h.b16 %v741
        %v1307 = vunpack.c.l.b16 %v742
        %v1308 = vunpack.c.h.b16 %v742
        %v1309 = vpack.c.b16 %v1057, %v1053
        %v1310 = vpack.c.b16 %v1058, %v1054
        %v1311 = vpack.c.b16 %v1059, %v1055
        %v1312 = vpack.c.b16 %v1060, %v1056
        %v1313 = vpack.c.b16 %v1065, %v1061
        %v1314 = vpack.c.b16 %v1066, %v1062
        %v1315 = vpack.c.b16 %v1067, %v1063
        %v1316 = vpack.c.b16 %v1068, %v1064
        %v1317 = vpack.c.b16 %v1073, %v1069
        %v1318 = vpack.c.b16 %v1074, %v1070
        %v1319 = vpack.c.b16 %v1075, %v1071
        %v1320 = vpack.c.b16 %v1076, %v1072
        %v1321 = vpack.c.b16 %v1081, %v1077
        %v1322 = vpack.c.b16 %v1082, %v1078
        %v1323 = vpack.c.b16 %v1083, %v1079
        %v1324 = vpack.c.b16 %v1084, %v1080
        %v1325 = vpack.c.b16 %v1089, %v1085
        %v1326 = vpack.c.b16 %v1090, %v1086
        %v1327 = vpack.c.b16 %v1091, %v1087
        %v1328 = vpack.c.b16 %v1092, %v1088
        %v1329 = vpack.c.b16 %v1097, %v1093
        %v1330 = vpack.c.b16 %v1098, %v1094
        %v1331 = vpack.c.b16 %v1099, %v1095
        %v1332 = vpack.c.b16 %v1100, %v1096
        %v1333 = vpack.c.b16 %v1105, %v1101
        %v1334 = vpack.c.b16 %v1106, %v1102
        %v1335 = vpack.c.b16 %v1107, %v1103
        %v1336 = vpack.c.b16 %v1108, %v1104
        %v1337 = vpack.c.b16 %v1113, %v1109
        %v1338 = vpack.c.b16 %v1114, %v1110
        %v1339 = vpack.c.b16 %v1115, %v1111
        %v1340 = vpack.c.b16 %v1116, %v1112
        %v1341 = vpack.c.b16 %v1121, %v1117
        %v1342 = vpack.c.b16 %v1122, %v1118
        %v1343 = vpack.c.b16 %v1123, %v1119
        %v1344 = vpack.c.b16 %v1124, %v1120
        %v1345 = vpack.c.b16 %v1129, %v1125
        %v1346 = vpack.c.b16 %v1130, %v1126
        %v1347 = vpack.c.b16 %v1131, %v1127
        %v1348 = vpack.c.b16 %v1132, %v1128
        %v1349 = vpack.c.b16 %v1137, %v1133
        %v1350 = vpack.c.b16 %v1138, %v1134
        %v1351 = vpack.c.b16 %v1139, %v1135
        %v1352 = vpack.c.b16 %v1140, %v1136
        %v1353 = vpack.c.b16 %v1145, %v1141
        %v1354 = vpack.c.b16 %v1146, %v1142
        %v1355 = vpack.c.b16 %v1147, %v1143
        %v1356 = vpack.c.b16 %v1148, %v1144
        %v1357 = vpack.c.b16 %v1153, %v1149
        %v1358 = vpack.c.b16 %v1154, %v1150
        %v1359 = vpack.c.b16 %v1155, %v1151
        %v1360 = vpack.c.b16 %v1156, %v1152
        %v1361 = vpack.c.b16 %v1161, %v1157
        %v1362 = vpack.c.b16 %v1162, %v1158
        %v1363 = vpack.c.b16 %v1163, %v1159
        %v1364 = vpack.c.b16 %v1164, %v1160
        %v1365 = vpack.c.b16 %v1169, %v1165
        %v1366 = vpack.c.b16 %v1170, %v1166
        %v1367 = vpack.c.b16 %v1171, %v1167
        %v1368 = vpack.c.b16 %v1172, %v1168
        %v1369 = vpack.c.b16 %v1177, %v1173
        %v1370 = vpack.c.b16 %v1178, %v1174
        %v1371 = vpack.c.b16 %v1179, %v1175
        %v1372 = vpack.c.b16 %v1180, %v1176
        %v1373 = vpack.c.b16 %v1185, %v1181
        %v1374 = vpack.c.b16 %v1186, %v1182
        %v1375 = vpack.c.b16 %v1187, %v1183
        %v1376 = vpack.c.b16 %v1188, %v1184
        %v1377 = vpack.c.b16 %v1193, %v1189
        %v1378 = vpack.c.b16 %v1194, %v1190
        %v1379 = vpack.c.b16 %v1195, %v1191
        %v1380 = vpack.c.b16 %v1196, %v1192
        %v1381 = vpack.c.b16 %v1201, %v1197
        %v1382 = vpack.c.b16 %v1202, %v1198
        %v1383 = vpack.c.b16 %v1203, %v1199
        %v1384 = vpack.c.b16 %v1204, %v1200
        %v1385 = vpack.c.b16 %v1209, %v1205
        %v1386 = vpack.c.b16 %v1210, %v1206
        %v1387 = vpack.c.b16 %v1211, %v1207
        %v1388 = vpack.c.b16 %v1212, %v1208
        %v1389 = vpack.c.b16 %v1217, %v1213
        %v1390 = vpack.c.b16 %v1218, %v1214
        %v1391 = vpack.c.b16 %v1219, %v1215
        %v1392 = vpack.c.b16 %v1220, %v1216
        %v1393 = vpack.c.b16 %v1225, %v1221
        %v1394 = vpack.c.b16 %v1226, %v1222
        %v1395 = vpack.c.b16 %v1227, %v1223
        %v1396 = vpack.c.b16 %v1228, %v1224
        %v1397 = vpack.c.b16 %v1233, %v1229
        %v1398 = vpack.c.b16 %v1234, %v1230
        %v1399 = vpack.c.b16 %v1235, %v1231
        %v1400 = vpack.c.b16 %v1236, %v1232
        %v1401 = vpack.c.b16 %v1241, %v1237
        %v1402 = vpack.c.b16 %v1242, %v1238
        %v1403 = vpack.c.b16 %v1243, %v1239
        %v1404 = vpack.c.b16 %v1244, %v1240
        %v1405 = vpack.c.b16 %v1249, %v1245
        %v1406 = vpack.c.b16 %v1250, %v1246
        %v1407 = vpack.c.b16 %v1251, %v1247
        %v1408 = vpack.c.b16 %v1252, %v1248
        %v1409 = vpack.c.b16 %v1257, %v1253
        %v1410 = vpack.c.b16 %v1258, %v1254
        %v1411 = vpack.c.b16 %v1259, %v1255
        %v1412 = vpack.c.b16 %v1260, %v1256
        %v1413 = vpack.c.b16 %v1265, %v1261
        %v1414 = vpack.c.b16 %v1266, %v1262
        %v1415 = vpack.c.b16 %v1267, %v1263
        %v1416 = vpack.c.b16 %v1268, %v1264
        %v1417 = vpack.c.b16 %v1273, %v1269
        %v1418 = vpack.c.b16 %v1274, %v1270
        %v1419 = vpack.c.b16 %v1275, %v1271
        %v1420 = vpack.c.b16 %v1276, %v1272
        %v1421 = vpack.c.b16 %v1281, %v1277
        %v1422 = vpack.c.b16 %v1282, %v1278
        %v1423 = vpack.c.b16 %v1283, %v1279
        %v1424 = vpack.c.b16 %v1284, %v1280
        %v1425 = vpack.c.b16 %v1289, %v1285
        %v1426 = vpack.c.b16 %v1290, %v1286
        %v1427 = vpack.c.b16 %v1291, %v1287
        %v1428 = vpack.c.b16 %v1292, %v1288
        %v1429 = vpack.c.b16 %v1297, %v1293
        %v1430 = vpack.c.b16 %v1298, %v1294
        %v1431 = vpack.c.b16 %v1299, %v1295
        %v1432 = vpack.c.b16 %v1300, %v1296
        %v1433 = vpack.c.b16 %v1305, %v1301
        %v1434 = vpack.c.b16 %v1306, %v1302
        %v1435 = vpack.c.b16 %v1307, %v1303
        %v1436 = vpack.c.b16 %v1308, %v1304
        %1565 = vmatprep.subr.bf16.mxu0 %v1338
        %1566 = vmatpush1.bf16.msra.mxu0 %v1337
        %1567 = vmatprep.subr.bf16.mxu0 %v1334
        %1568 = vmatpush1.bf16.msra.mxu0 %v1333
        %1569 = vmatprep.subr.bf16.mxu0 %v1330
        %1570 = vmatpush1.bf16.msra.mxu0 %v1329
        %1571 = vmatprep.subr.bf16.mxu0 %v1326
        %1572 = vmatpush1.bf16.msra.mxu0 %v1325
        %1573 = vmatprep.subr.bf16.mxu0 %v1322
        %1574 = vmatpush1.bf16.msra.mxu0 %v1321
        %1575 = vmatprep.subr.bf16.mxu0 %v1318
        %1576 = vmatpush1.bf16.msra.mxu0 %v1317
        %1577 = vmatprep.subr.bf16.mxu0 %v1314
        %1578 = vmatpush1.bf16.msra.mxu0 %v1313
        %1579 = vmatprep.subr.bf16.mxu0 %v1310
        %1580 = vmatpush1.bf16.msra.mxu0 %v1309
        %1581 = vmatprep.subr.bf16.mxu0 %v1370
        %1582 = vmatpush2.bf16.msra.mxu0 %v1369
        %1583 = vmatprep.subr.bf16.mxu0 %v1366
        %1584 = vmatpush2.bf16.msra.mxu0 %v1365
        %1585 = vmatprep.subr.bf16.mxu0 %v1362
        %1586 = vmatpush2.bf16.msra.mxu0 %v1361
        %1587 = vmatprep.subr.bf16.mxu0 %v1358
        %1588 = vmatpush2.bf16.msra.mxu0 %v1357
        %1589 = vmatprep.subr.bf16.mxu0 %v1354
        %1590 = vmatpush2.bf16.msra.mxu0 %v1353
        %1591 = vmatprep.subr.bf16.mxu0 %v1350
        %1592 = vmatpush2.bf16.msra.mxu0 %v1349
        %1593 = vmatprep.subr.bf16.mxu0 %v1346
        %1594 = vmatpush2.bf16.msra.mxu0 %v1345
        %1595 = vmatprep.subr.bf16.mxu0 %v1342
        %1596 = vmatpush2.bf16.msra.mxu0 %v1341
        %1597 = vmatprep.mubr.bf16.mxu0 %v862
        %1598 = vmatmul.mubr.bf16.gmra.mxu0 %v861
        %v1599 = vpop.f32.mrf.mxu0
        %v1600 = vadd.f32 %v748, %v1599
        %v1601 = vpop.f32.mrf.mxu0
        %v1602 = vadd.f32 %v752, %v1601
        %v1603 = vpop.f32.mrf.mxu0
        %v1604 = vadd.f32 %v748, %v1603
        %v1605 = vpop.f32.mrf.mxu0
        %v1606 = vadd.f32 %v752, %v1605
        %1607 = vmatprep.mubr.bf16.mxu0 %v866
        %1608 = vmatmul.mubr.bf16.gmra.mxu0 %v865
        %v1609 = vpop.f32.mrf.mxu0
        %v1610 = vadd.f32 %v748, %v1609
        %v1611 = vpop.f32.mrf.mxu0
        %v1612 = vadd.f32 %v752, %v1611
        %v1613 = vpop.f32.mrf.mxu0
        %v1614 = vadd.f32 %v748, %v1613
        %v1615 = vpop.f32.mrf.mxu0
        %v1616 = vadd.f32 %v752, %v1615
        %1617 = vmatprep.mubr.bf16.mxu0 %v870
        %1618 = vmatmul.mubr.bf16.gmra.mxu0 %v869
        %v1619 = vpop.f32.mrf.mxu0
        %v1620 = vadd.f32 %v748, %v1619
        %v1621 = vpop.f32.mrf.mxu0
        %v1622 = vadd.f32 %v752, %v1621
        %v1623 = vpop.f32.mrf.mxu0
        %v1624 = vadd.f32 %v748, %v1623
        %v1625 = vpop.f32.mrf.mxu0
        %v1626 = vadd.f32 %v752, %v1625
        %1627 = vmatprep.mubr.bf16.mxu0 %v874
        %1628 = vmatmul.mubr.bf16.gmra.mxu0 %v873
        %v1629 = vpop.f32.mrf.mxu0
        %v1630 = vadd.f32 %v748, %v1629
        %v1631 = vpop.f32.mrf.mxu0
        %v1632 = vadd.f32 %v752, %v1631
        %v1633 = vpop.f32.mrf.mxu0
        %v1634 = vadd.f32 %v748, %v1633
        %v1635 = vpop.f32.mrf.mxu0
        %v1636 = vadd.f32 %v752, %v1635
        %1637 = vmatprep.mubr.bf16.mxu0 %v878
        %1638 = vmatmul.mubr.bf16.gmra.mxu0 %v877
        %v1639 = vpop.f32.mrf.mxu0
        %v1640 = vadd.f32 %v748, %v1639
        %v1641 = vpop.f32.mrf.mxu0
        %v1642 = vadd.f32 %v752, %v1641
        %v1643 = vpop.f32.mrf.mxu0
        %v1644 = vadd.f32 %v748, %v1643
        %v1645 = vpop.f32.mrf.mxu0
        %v1646 = vadd.f32 %v752, %v1645
        %1647 = vmatprep.mubr.bf16.mxu0 %v882
        %1648 = vmatmul.mubr.bf16.gmra.mxu0 %v881
        %v1649 = vpop.f32.mrf.mxu0
        %v1650 = vadd.f32 %v748, %v1649
        %v1651 = vpop.f32.mrf.mxu0
        %v1652 = vadd.f32 %v752, %v1651
        %v1653 = vpop.f32.mrf.mxu0
        %v1654 = vadd.f32 %v748, %v1653
        %v1655 = vpop.f32.mrf.mxu0
        %v1656 = vadd.f32 %v752, %v1655
        %1657 = vmatprep.mubr.bf16.mxu0 %v886
        %1658 = vmatmul.mubr.bf16.gmra.mxu0 %v885
        %v1659 = vpop.f32.mrf.mxu0
        %v1660 = vadd.f32 %v748, %v1659
        %v1661 = vpop.f32.mrf.mxu0
        %v1662 = vadd.f32 %v752, %v1661
        %v1663 = vpop.f32.mrf.mxu0
        %v1664 = vadd.f32 %v748, %v1663
        %v1665 = vpop.f32.mrf.mxu0
        %v1666 = vadd.f32 %v752, %v1665
        %1667 = vmatprep.mubr.bf16.mxu0 %v890
        %1668 = vmatmul.mubr.bf16.gmra.mxu0 %v889
        %v1669 = vpop.f32.mrf.mxu0
        %v1670 = vadd.f32 %v748, %v1669
        %v1671 = vpop.f32.mrf.mxu0
        %v1672 = vadd.f32 %v752, %v1671
        %v1673 = vpop.f32.mrf.mxu0
        %v1674 = vadd.f32 %v748, %v1673
        %v1675 = vpop.f32.mrf.mxu0
        %v1676 = vadd.f32 %v752, %v1675
        %1677 = vdwg.mxu0
        %1678 = vmatprep.subr.bf16.mxu0 %v1402
        %1679 = vmatpush1.bf16.msra.mxu0 %v1401
        %1680 = vmatprep.subr.bf16.mxu0 %v1398
        %1681 = vmatpush1.bf16.msra.mxu0 %v1397
        %1682 = vmatprep.subr.bf16.mxu0 %v1394
        %1683 = vmatpush1.bf16.msra.mxu0 %v1393
        %1684 = vmatprep.subr.bf16.mxu0 %v1390
        %1685 = vmatpush1.bf16.msra.mxu0 %v1389
        %1686 = vmatprep.subr.bf16.mxu0 %v1386
        %1687 = vmatpush1.bf16.msra.mxu0 %v1385
        %1688 = vmatprep.subr.bf16.mxu0 %v1382
        %1689 = vmatpush1.bf16.msra.mxu0 %v1381
        %1690 = vmatprep.subr.bf16.mxu0 %v1378
        %1691 = vmatpush1.bf16.msra.mxu0 %v1377
        %1692 = vmatprep.subr.bf16.mxu0 %v1374
        %1693 = vmatpush1.bf16.msra.mxu0 %v1373
        %1694 = vmatprep.subr.bf16.mxu0 %v1434
        %1695 = vmatpush2.bf16.msra.mxu0 %v1433
        %1696 = vmatprep.subr.bf16.mxu0 %v1430
        %1697 = vmatpush2.bf16.msra.mxu0 %v1429
        %1698 = vmatprep.subr.bf16.mxu0 %v1426
        %1699 = vmatpush2.bf16.msra.mxu0 %v1425
        %1700 = vmatprep.subr.bf16.mxu0 %v1422
        %1701 = vmatpush2.bf16.msra.mxu0 %v1421
        %1702 = vmatprep.subr.bf16.mxu0 %v1418
        %1703 = vmatpush2.bf16.msra.mxu0 %v1417
        %1704 = vmatprep.subr.bf16.mxu0 %v1414
        %1705 = vmatpush2.bf16.msra.mxu0 %v1413
        %1706 = vmatprep.subr.bf16.mxu0 %v1410
        %1707 = vmatpush2.bf16.msra.mxu0 %v1409
        %1708 = vmatprep.subr.bf16.mxu0 %v1406
        %1709 = vmatpush2.bf16.msra.mxu0 %v1405
        %1710 = vmatprep.mubr.bf16.mxu0 %v864
        %1711 = vmatmul.mubr.bf16.gmra.mxu0 %v863
        %v1712 = vpop.f32.mrf.mxu0
        %v1713 = vadd.f32 %v1600, %v1712
        %v1714 = vpop.f32.mrf.mxu0
        %v1715 = vadd.f32 %v1602, %v1714
        %v1716 = vpop.f32.mrf.mxu0
        %v1717 = vadd.f32 %v1604, %v1716
        %v1718 = vpop.f32.mrf.mxu0
        %v1719 = vadd.f32 %v1606, %v1718
        %1720 = vmatprep.mubr.bf16.mxu0 %v868
        %1721 = vmatmul.mubr.bf16.gmra.mxu0 %v867
        %v1722 = vpop.f32.mrf.mxu0
        %v1723 = vadd.f32 %v1610, %v1722
        %v1724 = vpop.f32.mrf.mxu0
        %v1725 = vadd.f32 %v1612, %v1724
        %v1726 = vpop.f32.mrf.mxu0
        %v1727 = vadd.f32 %v1614, %v1726
        %v1728 = vpop.f32.mrf.mxu0
        %v1729 = vadd.f32 %v1616, %v1728
        %1730 = vmatprep.mubr.bf16.mxu0 %v872
        %1731 = vmatmul.mubr.bf16.gmra.mxu0 %v871
        %v1732 = vpop.f32.mrf.mxu0
        %v1733 = vadd.f32 %v1620, %v1732
        %v1734 = vpop.f32.mrf.mxu0
        %v1735 = vadd.f32 %v1622, %v1734
        %v1736 = vpop.f32.mrf.mxu0
        %v1737 = vadd.f32 %v1624, %v1736
        %v1738 = vpop.f32.mrf.mxu0
        %v1739 = vadd.f32 %v1626, %v1738
        %1740 = vmatprep.mubr.bf16.mxu0 %v876
        %1741 = vmatmul.mubr.bf16.gmra.mxu0 %v875
        %v1742 = vpop.f32.mrf.mxu0
        %v1743 = vadd.f32 %v1630, %v1742
        %v1744 = vpop.f32.mrf.mxu0
        %v1745 = vadd.f32 %v1632, %v1744
        %v1746 = vpop.f32.mrf.mxu0
        %v1747 = vadd.f32 %v1634, %v1746
        %v1748 = vpop.f32.mrf.mxu0
        %v1749 = vadd.f32 %v1636, %v1748
        %1750 = vmatprep.mubr.bf16.mxu0 %v880
        %1751 = vmatmul.mubr.bf16.gmra.mxu0 %v879
        %v1752 = vpop.f32.mrf.mxu0
        %v1753 = vadd.f32 %v1640, %v1752
        %v1754 = vpop.f32.mrf.mxu0
        %v1755 = vadd.f32 %v1642, %v1754
        %v1756 = vpop.f32.mrf.mxu0
        %v1757 = vadd.f32 %v1644, %v1756
        %v1758 = vpop.f32.mrf.mxu0
        %v1759 = vadd.f32 %v1646, %v1758
        %1760 = vmatprep.mubr.bf16.mxu0 %v884
        %1761 = vmatmul.mubr.bf16.gmra.mxu0 %v883
        %v1762 = vpop.f32.mrf.mxu0
        %v1763 = vadd.f32 %v1650, %v1762
        %v1764 = vpop.f32.mrf.mxu0
        %v1765 = vadd.f32 %v1652, %v1764
        %v1766 = vpop.f32.mrf.mxu0
        %v1767 = vadd.f32 %v1654, %v1766
        %v1768 = vpop.f32.mrf.mxu0
        %v1769 = vadd.f32 %v1656, %v1768
        %1770 = vmatprep.mubr.bf16.mxu0 %v888
        %1771 = vmatmul.mubr.bf16.gmra.mxu0 %v887
        %v1772 = vpop.f32.mrf.mxu0
        %v1773 = vadd.f32 %v1660, %v1772
        %v1774 = vpop.f32.mrf.mxu0
        %v1775 = vadd.f32 %v1662, %v1774
        %v1776 = vpop.f32.mrf.mxu0
        %v1777 = vadd.f32 %v1664, %v1776
        %v1778 = vpop.f32.mrf.mxu0
        %v1779 = vadd.f32 %v1666, %v1778
        %1780 = vmatprep.mubr.bf16.mxu0 %v892
        %1781 = vmatmul.mubr.bf16.gmra.mxu0 %v891
        %v1782 = vpop.f32.mrf.mxu0
        %v1783 = vadd.f32 %v1670, %v1782
        %v1784 = vpop.f32.mrf.mxu0
        %v1785 = vadd.f32 %v1672, %v1784
        %v1786 = vpop.f32.mrf.mxu0
        %v1787 = vadd.f32 %v1674, %v1786
        %v1788 = vpop.f32.mrf.mxu0
        %v1789 = vadd.f32 %v1676, %v1788
        %1790 = vdwg.mxu0
        %1791 = vmatprep.subr.bf16.mxu0 %v1340
        %1792 = vmatpush1.bf16.msra.mxu0 %v1339
        %1793 = vmatprep.subr.bf16.mxu0 %v1336
        %1794 = vmatpush1.bf16.msra.mxu0 %v1335
        %1795 = vmatprep.subr.bf16.mxu0 %v1332
        %1796 = vmatpush1.bf16.msra.mxu0 %v1331
        %1797 = vmatprep.subr.bf16.mxu0 %v1328
        %1798 = vmatpush1.bf16.msra.mxu0 %v1327
        %1799 = vmatprep.subr.bf16.mxu0 %v1324
        %1800 = vmatpush1.bf16.msra.mxu0 %v1323
        %1801 = vmatprep.subr.bf16.mxu0 %v1320
        %1802 = vmatpush1.bf16.msra.mxu0 %v1319
        %1803 = vmatprep.subr.bf16.mxu0 %v1316
        %1804 = vmatpush1.bf16.msra.mxu0 %v1315
        %1805 = vmatprep.subr.bf16.mxu0 %v1312
        %1806 = vmatpush1.bf16.msra.mxu0 %v1311
        %1807 = vmatprep.subr.bf16.mxu0 %v1372
        %1808 = vmatpush2.bf16.msra.mxu0 %v1371
        %1809 = vmatprep.subr.bf16.mxu0 %v1368
        %1810 = vmatpush2.bf16.msra.mxu0 %v1367
        %1811 = vmatprep.subr.bf16.mxu0 %v1364
        %1812 = vmatpush2.bf16.msra.mxu0 %v1363
        %1813 = vmatprep.subr.bf16.mxu0 %v1360
        %1814 = vmatpush2.bf16.msra.mxu0 %v1359
        %1815 = vmatprep.subr.bf16.mxu0 %v1356
        %1816 = vmatpush2.bf16.msra.mxu0 %v1355
        %1817 = vmatprep.subr.bf16.mxu0 %v1352
        %1818 = vmatpush2.bf16.msra.mxu0 %v1351
        %1819 = vmatprep.subr.bf16.mxu0 %v1348
        %1820 = vmatpush2.bf16.msra.mxu0 %v1347
        %1821 = vmatprep.subr.bf16.mxu0 %v1344
        %1822 = vmatpush2.bf16.msra.mxu0 %v1343
        %1823 = vmatprep.mubr.bf16.mxu0 %v862
        %1824 = vmatmul.mubr.bf16.gmra.mxu0 %v861
        %v1825 = vpop.f32.mrf.mxu0
        %v1826 = vadd.f32 %v756, %v1825
        %v1827 = vpop.f32.mrf.mxu0
        %v1828 = vadd.f32 %v760, %v1827
        %v1829 = vpop.f32.mrf.mxu0
        %v1830 = vadd.f32 %v756, %v1829
        %v1831 = vpop.f32.mrf.mxu0
        %v1832 = vadd.f32 %v760, %v1831
        %1833 = vmatprep.mubr.bf16.mxu0 %v866
        %1834 = vmatmul.mubr.bf16.gmra.mxu0 %v865
        %v1835 = vpop.f32.mrf.mxu0
        %v1836 = vadd.f32 %v756, %v1835
        %v1837 = vpop.f32.mrf.mxu0
        %v1838 = vadd.f32 %v760, %v1837
        %v1839 = vpop.f32.mrf.mxu0
        %v1840 = vadd.f32 %v756, %v1839
        %v1841 = vpop.f32.mrf.mxu0
        %v1842 = vadd.f32 %v760, %v1841
        %1843 = vmatprep.mubr.bf16.mxu0 %v870
        %1844 = vmatmul.mubr.bf16.gmra.mxu0 %v869
        %v1845 = vpop.f32.mrf.mxu0
        %v1846 = vadd.f32 %v756, %v1845
        %v1847 = vpop.f32.mrf.mxu0
        %v1848 = vadd.f32 %v760, %v1847
        %v1849 = vpop.f32.mrf.mxu0
        %v1850 = vadd.f32 %v756, %v1849
        %v1851 = vpop.f32.mrf.mxu0
        %v1852 = vadd.f32 %v760, %v1851
        %1853 = vmatprep.mubr.bf16.mxu0 %v874
        %1854 = vmatmul.mubr.bf16.gmra.mxu0 %v873
        %v1855 = vpop.f32.mrf.mxu0
        %v1856 = vadd.f32 %v756, %v1855
        %v1857 = vpop.f32.mrf.mxu0
        %v1858 = vadd.f32 %v760, %v1857
        %v1859 = vpop.f32.mrf.mxu0
        %v1860 = vadd.f32 %v756, %v1859
        %v1861 = vpop.f32.mrf.mxu0
        %v1862 = vadd.f32 %v760, %v1861
        %1863 = vmatprep.mubr.bf16.mxu0 %v878
        %1864 = vmatmul.mubr.bf16.gmra.mxu0 %v877
        %v1865 = vpop.f32.mrf.mxu0
        %v1866 = vadd.f32 %v756, %v1865
        %v1867 = vpop.f32.mrf.mxu0
        %v1868 = vadd.f32 %v760, %v1867
        %v1869 = vpop.f32.mrf.mxu0
        %v1870 = vadd.f32 %v756, %v1869
        %v1871 = vpop.f32.mrf.mxu0
        %v1872 = vadd.f32 %v760, %v1871
        %1873 = vmatprep.mubr.bf16.mxu0 %v882
        %1874 = vmatmul.mubr.bf16.gmra.mxu0 %v881
        %v1875 = vpop.f32.mrf.mxu0
        %v1876 = vadd.f32 %v756, %v1875
        %v1877 = vpop.f32.mrf.mxu0
        %v1878 = vadd.f32 %v760, %v1877
        %v1879 = vpop.f32.mrf.mxu0
        %v1880 = vadd.f32 %v756, %v1879
        %v1881 = vpop.f32.mrf.mxu0
        %v1882 = vadd.f32 %v760, %v1881
        %1883 = vmatprep.mubr.bf16.mxu0 %v886
        %1884 = vmatmul.mubr.bf16.gmra.mxu0 %v885
        %v1885 = vpop.f32.mrf.mxu0
        %v1886 = vadd.f32 %v756, %v1885
        %v1887 = vpop.f32.mrf.mxu0
        %v1888 = vadd.f32 %v760, %v1887
        %v1889 = vpop.f32.mrf.mxu0
        %v1890 = vadd.f32 %v756, %v1889
        %v1891 = vpop.f32.mrf.mxu0
        %v1892 = vadd.f32 %v760, %v1891
        %1893 = vmatprep.mubr.bf16.mxu0 %v890
        %1894 = vmatmul.mubr.bf16.gmra.mxu0 %v889
        %v1895 = vpop.f32.mrf.mxu0
        %v1896 = vadd.f32 %v756, %v1895
        %v1897 = vpop.f32.mrf.mxu0
        %v1898 = vadd.f32 %v760, %v1897
        %v1899 = vpop.f32.mrf.mxu0
        %v1900 = vadd.f32 %v756, %v1899
        %v1901 = vpop.f32.mrf.mxu0
        %v1902 = vadd.f32 %v760, %v1901
        %1903 = vdwg.mxu0
        %1904 = vmatprep.subr.bf16.mxu0 %v1404
        %1905 = vmatpush1.bf16.msra.mxu0 %v1403
        %1906 = vmatprep.subr.bf16.mxu0 %v1400
        %1907 = vmatpush1.bf16.msra.mxu0 %v1399
        %1908 = vmatprep.subr.bf16.mxu0 %v1396
        %1909 = vmatpush1.bf16.msra.mxu0 %v1395
        %1910 = vmatprep.subr.bf16.mxu0 %v1392
        %1911 = vmatpush1.bf16.msra.mxu0 %v1391
        %1912 = vmatprep.subr.bf16.mxu0 %v1388
        %1913 = vmatpush1.bf16.msra.mxu0 %v1387
        %1914 = vmatprep.subr.bf16.mxu0 %v1384
        %1915 = vmatpush1.bf16.msra.mxu0 %v1383
        %1916 = vmatprep.subr.bf16.mxu0 %v1380
        %1917 = vmatpush1.bf16.msra.mxu0 %v1379
        %1918 = vmatprep.subr.bf16.mxu0 %v1376
        %1919 = vmatpush1.bf16.msra.mxu0 %v1375
        %1920 = vmatprep.subr.bf16.mxu0 %v1436
        %1921 = vmatpush2.bf16.msra.mxu0 %v1435
        %1922 = vmatprep.subr.bf16.mxu0 %v1432
        %1923 = vmatpush2.bf16.msra.mxu0 %v1431
        %1924 = vmatprep.subr.bf16.mxu0 %v1428
        %1925 = vmatpush2.bf16.msra.mxu0 %v1427
        %1926 = vmatprep.subr.bf16.mxu0 %v1424
        %1927 = vmatpush2.bf16.msra.mxu0 %v1423
        %1928 = vmatprep.subr.bf16.mxu0 %v1420
        %1929 = vmatpush2.bf16.msra.mxu0 %v1419
        %1930 = vmatprep.subr.bf16.mxu0 %v1416
        %1931 = vmatpush2.bf16.msra.mxu0 %v1415
        %1932 = vmatprep.subr.bf16.mxu0 %v1412
        %1933 = vmatpush2.bf16.msra.mxu0 %v1411
        %1934 = vmatprep.subr.bf16.mxu0 %v1408
        %1935 = vmatpush2.bf16.msra.mxu0 %v1407
        %1936 = vmatprep.mubr.bf16.mxu0 %v864
        %1937 = vmatmul.mubr.bf16.gmra.mxu0 %v863
        %v1938 = vpop.f32.mrf.mxu0
        %v1939 = vadd.f32 %v1826, %v1938
        %v1940 = vpop.f32.mrf.mxu0
        %v1941 = vadd.f32 %v1828, %v1940
        %v1942 = vpop.f32.mrf.mxu0
        %v1943 = vadd.f32 %v1830, %v1942
        %v1944 = vpop.f32.mrf.mxu0
        %v1945 = vadd.f32 %v1832, %v1944
        %1946 = vmatprep.mubr.bf16.mxu0 %v868
        %1947 = vmatmul.mubr.bf16.gmra.mxu0 %v867
        %v1948 = vpop.f32.mrf.mxu0
        %v1949 = vadd.f32 %v1836, %v1948
        %v1950 = vpop.f32.mrf.mxu0
        %v1951 = vadd.f32 %v1838, %v1950
        %v1952 = vpop.f32.mrf.mxu0
        %v1953 = vadd.f32 %v1840, %v1952
        %v1954 = vpop.f32.mrf.mxu0
        %v1955 = vadd.f32 %v1842, %v1954
        %1956 = vmatprep.mubr.bf16.mxu0 %v872
        %1957 = vmatmul.mubr.bf16.gmra.mxu0 %v871
        %v1958 = vpop.f32.mrf.mxu0
        %v1959 = vadd.f32 %v1846, %v1958
        %v1960 = vpop.f32.mrf.mxu0
        %v1961 = vadd.f32 %v1848, %v1960
        %v1962 = vpop.f32.mrf.mxu0
        %v1963 = vadd.f32 %v1850, %v1962
        %v1964 = vpop.f32.mrf.mxu0
        %v1965 = vadd.f32 %v1852, %v1964
        %1966 = vmatprep.mubr.bf16.mxu0 %v876
        %1967 = vmatmul.mubr.bf16.gmra.mxu0 %v875
        %v1968 = vpop.f32.mrf.mxu0
        %v1969 = vadd.f32 %v1856, %v1968
        %v1970 = vpop.f32.mrf.mxu0
        %v1971 = vadd.f32 %v1858, %v1970
        %v1972 = vpop.f32.mrf.mxu0
        %v1973 = vadd.f32 %v1860, %v1972
        %v1974 = vpop.f32.mrf.mxu0
        %v1975 = vadd.f32 %v1862, %v1974
        %1976 = vmatprep.mubr.bf16.mxu0 %v880
        %1977 = vmatmul.mubr.bf16.gmra.mxu0 %v879
        %v1978 = vpop.f32.mrf.mxu0
        %v1979 = vadd.f32 %v1866, %v1978
        %v1980 = vpop.f32.mrf.mxu0
        %v1981 = vadd.f32 %v1868, %v1980
        %v1982 = vpop.f32.mrf.mxu0
        %v1983 = vadd.f32 %v1870, %v1982
        %v1984 = vpop.f32.mrf.mxu0
        %v1985 = vadd.f32 %v1872, %v1984
        %1986 = vmatprep.mubr.bf16.mxu0 %v884
        %1987 = vmatmul.mubr.bf16.gmra.mxu0 %v883
        %v1988 = vpop.f32.mrf.mxu0
        %v1989 = vadd.f32 %v1876, %v1988
        %v1990 = vpop.f32.mrf.mxu0
        %v1991 = vadd.f32 %v1878, %v1990
        %v1992 = vpop.f32.mrf.mxu0
        %v1993 = vadd.f32 %v1880, %v1992
        %v1994 = vpop.f32.mrf.mxu0
        %v1995 = vadd.f32 %v1882, %v1994
        %1996 = vmatprep.mubr.bf16.mxu0 %v888
        %1997 = vmatmul.mubr.bf16.gmra.mxu0 %v887
        %v1998 = vpop.f32.mrf.mxu0
        %v1999 = vadd.f32 %v1886, %v1998
        %v2000 = vpop.f32.mrf.mxu0
        %v2001 = vadd.f32 %v1888, %v2000
        %v2002 = vpop.f32.mrf.mxu0
        %v2003 = vadd.f32 %v1890, %v2002
        %v2004 = vpop.f32.mrf.mxu0
        %v2005 = vadd.f32 %v1892, %v2004
        %2006 = vmatprep.mubr.bf16.mxu0 %v892
        %2007 = vmatmul.mubr.bf16.gmra.mxu0 %v891
        %v2008 = vpop.f32.mrf.mxu0
        %v2009 = vadd.f32 %v1896, %v2008
        %v2010 = vpop.f32.mrf.mxu0
        %v2011 = vadd.f32 %v1898, %v2010
        %v2012 = vpop.f32.mrf.mxu0
        %v2013 = vadd.f32 %v1900, %v2012
        %v2014 = vpop.f32.mrf.mxu0
        %v2015 = vadd.f32 %v1902, %v2014
        %2016 = vdwg.mxu0
        %v2017 = vtanh.pop %v1713
        %v2018 = vtanh.pop %v1715
        %v2019 = vtanh.pop %v1939
        %v2020 = vtanh.pop %v1941
        %v2021 = vtanh.pop %v1717
        %v2022 = vtanh.pop %v1719
        %v2023 = vtanh.pop %v1943
        %v2024 = vtanh.pop %v1945
        %v2025 = vtanh.pop %v1723
        %v2026 = vtanh.pop %v1725
        %v2027 = vtanh.pop %v1949
        %v2028 = vtanh.pop %v1951
        %v2029 = vtanh.pop %v1727
        %v2030 = vtanh.pop %v1729
        %v2031 = vtanh.pop %v1953
        %v2032 = vtanh.pop %v1955
        %v2033 = vtanh.pop %v1733
        %v2034 = vtanh.pop %v1735
        %v2035 = vtanh.pop %v1959
        %v2036 = vtanh.pop %v1961
        %v2037 = vtanh.pop %v1737
        %v2038 = vtanh.pop %v1739
        %v2039 = vtanh.pop %v1963
        %v2040 = vtanh.pop %v1965
        %v2041 = vtanh.pop %v1743
        %v2042 = vtanh.pop %v1745
        %v2043 = vtanh.pop %v1969
        %v2044 = vtanh.pop %v1971
        %v2045 = vtanh.pop %v1747
        %v2046 = vtanh.pop %v1749
        %v2047 = vtanh.pop %v1973
        %v2048 = vtanh.pop %v1975
        %v2049 = vtanh.pop %v1753
        %v2050 = vtanh.pop %v1755
        %v2051 = vtanh.pop %v1979
        %v2052 = vtanh.pop %v1981
        %v2053 = vtanh.pop %v1757
        %v2054 = vtanh.pop %v1759
        %v2055 = vtanh.pop %v1983
        %v2056 = vtanh.pop %v1985
        %v2057 = vtanh.pop %v1763
        %v2058 = vtanh.pop %v1765
        %v2059 = vtanh.pop %v1989
        %v2060 = vtanh.pop %v1991
        %v2061 = vtanh.pop %v1767
        %v2062 = vtanh.pop %v1769
        %v2063 = vtanh.pop %v1993
        %v2064 = vtanh.pop %v1995
        %v2065 = vtanh.pop %v1773
        %v2066 = vtanh.pop %v1775
        %v2067 = vtanh.pop %v1999
        %v2068 = vtanh.pop %v2001
        %v2069 = vtanh.pop %v1777
        %v2070 = vtanh.pop %v1779
        %v2071 = vtanh.pop %v2003
        %v2072 = vtanh.pop %v2005
        %v2073 = vtanh.pop %v1783
        %v2074 = vtanh.pop %v1785
        %v2075 = vtanh.pop %v2009
        %v2076 = vtanh.pop %v2011
        %v2077 = vtanh.pop %v1787
        %v2078 = vtanh.pop %v1789
        %v2079 = vtanh.pop %v2013
        %v2080 = vtanh.pop %v2015
        %v2081 = vpack.c.bf16 %v2021, %v2017
        %v2082 = vpack.c.bf16 %v2022, %v2018
        %v2083 = vpack.c.bf16 %v2023, %v2019
        %v2084 = vpack.c.bf16 %v2024, %v2020
        %v2085 = vpack.c.bf16 %v2029, %v2025
        %v2086 = vpack.c.bf16 %v2030, %v2026
        %v2087 = vpack.c.bf16 %v2031, %v2027
        %v2088 = vpack.c.bf16 %v2032, %v2028
        %v2089 = vpack.c.bf16 %v2037, %v2033
        %v2090 = vpack.c.bf16 %v2038, %v2034
        %v2091 = vpack.c.bf16 %v2039, %v2035
        %v2092 = vpack.c.bf16 %v2040, %v2036
        %v2093 = vpack.c.bf16 %v2045, %v2041
        %v2094 = vpack.c.bf16 %v2046, %v2042
        %v2095 = vpack.c.bf16 %v2047, %v2043
        %v2096 = vpack.c.bf16 %v2048, %v2044
        %v2097 = vpack.c.bf16 %v2053, %v2049
        %v2098 = vpack.c.bf16 %v2054, %v2050
        %v2099 = vpack.c.bf16 %v2055, %v2051
        %v2100 = vpack.c.bf16 %v2056, %v2052
        %v2101 = vpack.c.bf16 %v2061, %v2057
        %v2102 = vpack.c.bf16 %v2062, %v2058
        %v2103 = vpack.c.bf16 %v2063, %v2059
        %v2104 = vpack.c.bf16 %v2064, %v2060
        %v2105 = vpack.c.bf16 %v2069, %v2065
        %v2106 = vpack.c.bf16 %v2070, %v2066
        %v2107 = vpack.c.bf16 %v2071, %v2067
        %v2108 = vpack.c.bf16 %v2072, %v2068
        %v2109 = vpack.c.bf16 %v2077, %v2073
        %v2110 = vpack.c.bf16 %v2078, %v2074
        %v2111 = vpack.c.bf16 %v2079, %v2075
        %v2112 = vpack.c.bf16 %v2080, %v2076
        %v2113 = vld [vmem:[#allocation8] sm:$0xff]
        %v2114 = vld [vmem:[#allocation8 + $0x8] sm:$0xff]
        %v2115 = vld [vmem:[#allocation8 + $0x10] sm:$0xff]
        %v2116 = vld [vmem:[#allocation8 + $0x18] sm:$0xff]
        %v2117 = vld [vmem:[#allocation8 + $0x20] sm:$0xff]
        %v2118 = vld [vmem:[#allocation8 + $0x28] sm:$0xff]
        %v2119 = vld [vmem:[#allocation8 + $0x30] sm:$0xff]
        %v2120 = vld [vmem:[#allocation8 + $0x38] sm:$0xff]
        %v2121 = vld [vmem:[#allocation8 + $0x40] sm:$0xff]
        %v2122 = vld [vmem:[#allocation8 + $0x48] sm:$0xff]
        %v2123 = vld [vmem:[#allocation8 + $0x50] sm:$0xff]
        %v2124 = vld [vmem:[#allocation8 + $0x58] sm:$0xff]
        %v2125 = vld [vmem:[#allocation8 + $0x60] sm:$0xff]
        %v2126 = vld [vmem:[#allocation8 + $0x68] sm:$0xff]
        %v2127 = vld [vmem:[#allocation8 + $0x70] sm:$0xff]
        %v2128 = vld [vmem:[#allocation8 + $0x78] sm:$0xff]
        %v2129 = vld [vmem:[#allocation8 + $0x80] sm:$0xff]
        %v2130 = vld [vmem:[#allocation8 + $0x88] sm:$0xff]
        %v2131 = vld [vmem:[#allocation8 + $0x90] sm:$0xff]
        %v2132 = vld [vmem:[#allocation8 + $0x98] sm:$0xff]
        %v2133 = vld [vmem:[#allocation8 + $0xa0] sm:$0xff]
        %v2134 = vld [vmem:[#allocation8 + $0xa8] sm:$0xff]
        %v2135 = vld [vmem:[#allocation8 + $0xb0] sm:$0xff]
        %v2136 = vld [vmem:[#allocation8 + $0xb8] sm:$0xff]
        %v2137 = vld [vmem:[#allocation8 + $0xc0] sm:$0xff]
        %v2138 = vld [vmem:[#allocation8 + $0xc8] sm:$0xff]
        %v2139 = vld [vmem:[#allocation8 + $0xd0] sm:$0xff]
        %v2140 = vld [vmem:[#allocation8 + $0xd8] sm:$0xff]
        %v2141 = vld [vmem:[#allocation8 + $0xe0] sm:$0xff]
        %v2142 = vld [vmem:[#allocation8 + $0xe8] sm:$0xff]
        %v2143 = vld [vmem:[#allocation8 + $0xf0] sm:$0xff]
        %v2144 = vld [vmem:[#allocation8 + $0xf8] sm:$0xff]
        %v2145 = vld [vmem:[#allocation8 + $0x100] sm:$0xff]
        %v2146 = vld [vmem:[#allocation8 + $0x108] sm:$0xff]
        %v2147 = vld [vmem:[#allocation8 + $0x110] sm:$0xff]
        %v2148 = vld [vmem:[#allocation8 + $0x118] sm:$0xff]
        %v2149 = vld [vmem:[#allocation8 + $0x120] sm:$0xff]
        %v2150 = vld [vmem:[#allocation8 + $0x128] sm:$0xff]
        %v2151 = vld [vmem:[#allocation8 + $0x130] sm:$0xff]
        %v2152 = vld [vmem:[#allocation8 + $0x138] sm:$0xff]
        %v2153 = vld [vmem:[#allocation8 + $0x140] sm:$0xff]
        %v2154 = vld [vmem:[#allocation8 + $0x148] sm:$0xff]
        %v2155 = vld [vmem:[#allocation8 + $0x150] sm:$0xff]
        %v2156 = vld [vmem:[#allocation8 + $0x158] sm:$0xff]
        %v2157 = vld [vmem:[#allocation8 + $0x160] sm:$0xff]
        %v2158 = vld [vmem:[#allocation8 + $0x168] sm:$0xff]
        %v2159 = vld [vmem:[#allocation8 + $0x170] sm:$0xff]
        %v2160 = vld [vmem:[#allocation8 + $0x178] sm:$0xff]
        %v2161 = vld [vmem:[#allocation8 + $0x180] sm:$0xff]
        %v2162 = vld [vmem:[#allocation8 + $0x188] sm:$0xff]
        %v2163 = vld [vmem:[#allocation8 + $0x190] sm:$0xff]
        %v2164 = vld [vmem:[#allocation8 + $0x198] sm:$0xff]
        %v2165 = vld [vmem:[#allocation8 + $0x1a0] sm:$0xff]
        %v2166 = vld [vmem:[#allocation8 + $0x1a8] sm:$0xff]
        %v2167 = vld [vmem:[#allocation8 + $0x1b0] sm:$0xff]
        %v2168 = vld [vmem:[#allocation8 + $0x1b8] sm:$0xff]
        %v2169 = vld [vmem:[#allocation8 + $0x1c0] sm:$0xff]
        %v2170 = vld [vmem:[#allocation8 + $0x1c8] sm:$0xff]
        %v2171 = vld [vmem:[#allocation8 + $0x1d0] sm:$0xff]
        %v2172 = vld [vmem:[#allocation8 + $0x1d8] sm:$0xff]
        %v2173 = vld [vmem:[#allocation8 + $0x1e0] sm:$0xff]
        %v2174 = vld [vmem:[#allocation8 + $0x1e8] sm:$0xff]
        %v2175 = vld [vmem:[#allocation8 + $0x1f0] sm:$0xff]
        %v2176 = vld [vmem:[#allocation8 + $0x1f8] sm:$0xff]
        %v2177 = vld [vmem:[#allocation10] sm:$0x3]
        %v2179 = vlaneseq
        %v2180 = vshrl.u32 %v2179, 7
        %v2181 = vsub.s32 0, %v2180
        %v2182 = vrot.slane %v2177, %v2181
        %v2183 = vlaneseq
        %v2184 = vshrl.u32 %v2183, 7
        %v2185 = vsub.s32 1, %v2184
        %v2186 = vrot.slane %v2177, %v2185
        %v2253 = vunpack.c.l.b16 %v2113
        %v2254 = vunpack.c.h.b16 %v2113
        %v2255 = vunpack.c.l.b16 %v2114
        %v2256 = vunpack.c.h.b16 %v2114
        %v2257 = vunpack.c.l.b16 %v2115
        %v2258 = vunpack.c.h.b16 %v2115
        %v2259 = vunpack.c.l.b16 %v2116
        %v2260 = vunpack.c.h.b16 %v2116
        %v2261 = vunpack.c.l.b16 %v2117
        %v2262 = vunpack.c.h.b16 %v2117
        %v2263 = vunpack.c.l.b16 %v2118
        %v2264 = vunpack.c.h.b16 %v2118
        %v2265 = vunpack.c.l.b16 %v2119
        %v2266 = vunpack.c.h.b16 %v2119
        %v2267 = vunpack.c.l.b16 %v2120
        %v2268 = vunpack.c.h.b16 %v2120
        %v2269 = vunpack.c.l.b16 %v2121
        %v2270 = vunpack.c.h.b16 %v2121
        %v2271 = vunpack.c.l.b16 %v2122
        %v2272 = vunpack.c.h.b16 %v2122
        %v2273 = vunpack.c.l.b16 %v2123
        %v2274 = vunpack.c.h.b16 %v2123
        %v2275 = vunpack.c.l.b16 %v2124
        %v2276 = vunpack.c.h.b16 %v2124
        %v2277 = vunpack.c.l.b16 %v2125
        %v2278 = vunpack.c.h.b16 %v2125
        %v2279 = vunpack.c.l.b16 %v2126
        %v2280 = vunpack.c.h.b16 %v2126
        %v2281 = vunpack.c.l.b16 %v2127
        %v2282 = vunpack.c.h.b16 %v2127
        %v2283 = vunpack.c.l.b16 %v2128
        %v2284 = vunpack.c.h.b16 %v2128
        %v2285 = vunpack.c.l.b16 %v2129
        %v2286 = vunpack.c.h.b16 %v2129
        %v2287 = vunpack.c.l.b16 %v2130
        %v2288 = vunpack.c.h.b16 %v2130
        %v2289 = vunpack.c.l.b16 %v2131
        %v2290 = vunpack.c.h.b16 %v2131
        %v2291 = vunpack.c.l.b16 %v2132
        %v2292 = vunpack.c.h.b16 %v2132
        %v2293 = vunpack.c.l.b16 %v2133
        %v2294 = vunpack.c.h.b16 %v2133
        %v2295 = vunpack.c.l.b16 %v2134
        %v2296 = vunpack.c.h.b16 %v2134
        %v2297 = vunpack.c.l.b16 %v2135
        %v2298 = vunpack.c.h.b16 %v2135
        %v2299 = vunpack.c.l.b16 %v2136
        %v2300 = vunpack.c.h.b16 %v2136
        %v2301 = vunpack.c.l.b16 %v2137
        %v2302 = vunpack.c.h.b16 %v2137
        %v2303 = vunpack.c.l.b16 %v2138
        %v2304 = vunpack.c.h.b16 %v2138
        %v2305 = vunpack.c.l.b16 %v2139
        %v2306 = vunpack.c.h.b16 %v2139
        %v2307 = vunpack.c.l.b16 %v2140
        %v2308 = vunpack.c.h.b16 %v2140
        %v2309 = vunpack.c.l.b16 %v2141
        %v2310 = vunpack.c.h.b16 %v2141
        %v2311 = vunpack.c.l.b16 %v2142
        %v2312 = vunpack.c.h.b16 %v2142
        %v2313 = vunpack.c.l.b16 %v2143
        %v2314 = vunpack.c.h.b16 %v2143
        %v2315 = vunpack.c.l.b16 %v2144
        %v2316 = vunpack.c.h.b16 %v2144
        %v2317 = vunpack.c.l.b16 %v2145
        %v2318 = vunpack.c.h.b16 %v2145
        %v2319 = vunpack.c.l.b16 %v2146
        %v2320 = vunpack.c.h.b16 %v2146
        %v2321 = vunpack.c.l.b16 %v2147
        %v2322 = vunpack.c.h.b16 %v2147
        %v2323 = vunpack.c.l.b16 %v2148
        %v2324 = vunpack.c.h.b16 %v2148
        %v2325 = vunpack.c.l.b16 %v2149
        %v2326 = vunpack.c.h.b16 %v2149
        %v2327 = vunpack.c.l.b16 %v2150
        %v2328 = vunpack.c.h.b16 %v2150
        %v2329 = vunpack.c.l.b16 %v2151
        %v2330 = vunpack.c.h.b16 %v2151
        %v2331 = vunpack.c.l.b16 %v2152
        %v2332 = vunpack.c.h.b16 %v2152
        %v2333 = vunpack.c.l.b16 %v2153
        %v2334 = vunpack.c.h.b16 %v2153
        %v2335 = vunpack.c.l.b16 %v2154
        %v2336 = vunpack.c.h.b16 %v2154
        %v2337 = vunpack.c.l.b16 %v2155
        %v2338 = vunpack.c.h.b16 %v2155
        %v2339 = vunpack.c.l.b16 %v2156
        %v2340 = vunpack.c.h.b16 %v2156
        %v2341 = vunpack.c.l.b16 %v2157
        %v2342 = vunpack.c.h.b16 %v2157
        %v2343 = vunpack.c.l.b16 %v2158
        %v2344 = vunpack.c.h.b16 %v2158
        %v2345 = vunpack.c.l.b16 %v2159
        %v2346 = vunpack.c.h.b16 %v2159
        %v2347 = vunpack.c.l.b16 %v2160
        %v2348 = vunpack.c.h.b16 %v2160
        %v2349 = vunpack.c.l.b16 %v2161
        %v2350 = vunpack.c.h.b16 %v2161
        %v2351 = vunpack.c.l.b16 %v2162
        %v2352 = vunpack.c.h.b16 %v2162
        %v2353 = vunpack.c.l.b16 %v2163
        %v2354 = vunpack.c.h.b16 %v2163
        %v2355 = vunpack.c.l.b16 %v2164
        %v2356 = vunpack.c.h.b16 %v2164
        %v2357 = vunpack.c.l.b16 %v2165
        %v2358 = vunpack.c.h.b16 %v2165
        %v2359 = vunpack.c.l.b16 %v2166
        %v2360 = vunpack.c.h.b16 %v2166
        %v2361 = vunpack.c.l.b16 %v2167
        %v2362 = vunpack.c.h.b16 %v2167
        %v2363 = vunpack.c.l.b16 %v2168
        %v2364 = vunpack.c.h.b16 %v2168
        %v2365 = vunpack.c.l.b16 %v2169
        %v2366 = vunpack.c.h.b16 %v2169
        %v2367 = vunpack.c.l.b16 %v2170
        %v2368 = vunpack.c.h.b16 %v2170
        %v2369 = vunpack.c.l.b16 %v2171
        %v2370 = vunpack.c.h.b16 %v2171
        %v2371 = vunpack.c.l.b16 %v2172
        %v2372 = vunpack.c.h.b16 %v2172
        %v2373 = vunpack.c.l.b16 %v2173
        %v2374 = vunpack.c.h.b16 %v2173
        %v2375 = vunpack.c.l.b16 %v2174
        %v2376 = vunpack.c.h.b16 %v2174
        %v2377 = vunpack.c.l.b16 %v2175
        %v2378 = vunpack.c.h.b16 %v2175
        %v2379 = vunpack.c.l.b16 %v2176
        %v2380 = vunpack.c.h.b16 %v2176
        %v2381 = vpack.c.b16 %v2255, %v2253
        %v2382 = vpack.c.b16 %v2256, %v2254
        %v2383 = vpack.c.b16 %v2259, %v2257
        %v2384 = vpack.c.b16 %v2260, %v2258
        %v2385 = vpack.c.b16 %v2263, %v2261
        %v2386 = vpack.c.b16 %v2264, %v2262
        %v2387 = vpack.c.b16 %v2267, %v2265
        %v2388 = vpack.c.b16 %v2268, %v2266
        %v2389 = vpack.c.b16 %v2271, %v2269
        %v2390 = vpack.c.b16 %v2272, %v2270
        %v2391 = vpack.c.b16 %v2275, %v2273
        %v2392 = vpack.c.b16 %v2276, %v2274
        %v2393 = vpack.c.b16 %v2279, %v2277
        %v2394 = vpack.c.b16 %v2280, %v2278
        %v2395 = vpack.c.b16 %v2283, %v2281
        %v2396 = vpack.c.b16 %v2284, %v2282
        %v2397 = vpack.c.b16 %v2287, %v2285
        %v2398 = vpack.c.b16 %v2288, %v2286
        %v2399 = vpack.c.b16 %v2291, %v2289
        %v2400 = vpack.c.b16 %v2292, %v2290
        %v2401 = vpack.c.b16 %v2295, %v2293
        %v2402 = vpack.c.b16 %v2296, %v2294
        %v2403 = vpack.c.b16 %v2299, %v2297
        %v2404 = vpack.c.b16 %v2300, %v2298
        %v2405 = vpack.c.b16 %v2303, %v2301
        %v2406 = vpack.c.b16 %v2304, %v2302
        %v2407 = vpack.c.b16 %v2307, %v2305
        %v2408 = vpack.c.b16 %v2308, %v2306
        %v2409 = vpack.c.b16 %v2311, %v2309
        %v2410 = vpack.c.b16 %v2312, %v2310
        %v2411 = vpack.c.b16 %v2315, %v2313
        %v2412 = vpack.c.b16 %v2316, %v2314
        %v2413 = vpack.c.b16 %v2319, %v2317
        %v2414 = vpack.c.b16 %v2320, %v2318
        %v2415 = vpack.c.b16 %v2323, %v2321
        %v2416 = vpack.c.b16 %v2324, %v2322
        %v2417 = vpack.c.b16 %v2327, %v2325
        %v2418 = vpack.c.b16 %v2328, %v2326
        %v2419 = vpack.c.b16 %v2331, %v2329
        %v2420 = vpack.c.b16 %v2332, %v2330
        %v2421 = vpack.c.b16 %v2335, %v2333
        %v2422 = vpack.c.b16 %v2336, %v2334
        %v2423 = vpack.c.b16 %v2339, %v2337
        %v2424 = vpack.c.b16 %v2340, %v2338
        %v2425 = vpack.c.b16 %v2343, %v2341
        %v2426 = vpack.c.b16 %v2344, %v2342
        %v2427 = vpack.c.b16 %v2347, %v2345
        %v2428 = vpack.c.b16 %v2348, %v2346
        %v2429 = vpack.c.b16 %v2351, %v2349
        %v2430 = vpack.c.b16 %v2352, %v2350
        %v2431 = vpack.c.b16 %v2355, %v2353
        %v2432 = vpack.c.b16 %v2356, %v2354
        %v2433 = vpack.c.b16 %v2359, %v2357
        %v2434 = vpack.c.b16 %v2360, %v2358
        %v2435 = vpack.c.b16 %v2363, %v2361
        %v2436 = vpack.c.b16 %v2364, %v2362
        %v2437 = vpack.c.b16 %v2367, %v2365
        %v2438 = vpack.c.b16 %v2368, %v2366
        %v2439 = vpack.c.b16 %v2371, %v2369
        %v2440 = vpack.c.b16 %v2372, %v2370
        %v2441 = vpack.c.b16 %v2375, %v2373
        %v2442 = vpack.c.b16 %v2376, %v2374
        %v2443 = vpack.c.b16 %v2379, %v2377
        %v2444 = vpack.c.b16 %v2380, %v2378
        %2509 = vmatprep.subr.bf16.mxu0 %v2396
        %2510 = vmatpush1.bf16.msra.mxu0 %v2395
        %2511 = vmatprep.subr.bf16.mxu0 %v2394
        %2512 = vmatpush1.bf16.msra.mxu0 %v2393
        %2513 = vmatprep.subr.bf16.mxu0 %v2392
        %2514 = vmatpush1.bf16.msra.mxu0 %v2391
        %2515 = vmatprep.subr.bf16.mxu0 %v2390
        %2516 = vmatpush1.bf16.msra.mxu0 %v2389
        %2517 = vmatprep.subr.bf16.mxu0 %v2388
        %2518 = vmatpush1.bf16.msra.mxu0 %v2387
        %2519 = vmatprep.subr.bf16.mxu0 %v2386
        %2520 = vmatpush1.bf16.msra.mxu0 %v2385
        %2521 = vmatprep.subr.bf16.mxu0 %v2384
        %2522 = vmatpush1.bf16.msra.mxu0 %v2383
        %2523 = vmatprep.subr.bf16.mxu0 %v2382
        %2524 = vmatpush1.bf16.msra.mxu0 %v2381
        %2525 = vmatprep.subr.bf16.mxu0 %v2412
        %2526 = vmatpush2.bf16.msra.mxu0 %v2411
        %2527 = vmatprep.subr.bf16.mxu0 %v2410
        %2528 = vmatpush2.bf16.msra.mxu0 %v2409
        %2529 = vmatprep.subr.bf16.mxu0 %v2408
        %2530 = vmatpush2.bf16.msra.mxu0 %v2407
        %2531 = vmatprep.subr.bf16.mxu0 %v2406
        %2532 = vmatpush2.bf16.msra.mxu0 %v2405
        %2533 = vmatprep.subr.bf16.mxu0 %v2404
        %2534 = vmatpush2.bf16.msra.mxu0 %v2403
        %2535 = vmatprep.subr.bf16.mxu0 %v2402
        %2536 = vmatpush2.bf16.msra.mxu0 %v2401
        %2537 = vmatprep.subr.bf16.mxu0 %v2400
        %2538 = vmatpush2.bf16.msra.mxu0 %v2399
        %2539 = vmatprep.subr.bf16.mxu0 %v2398
        %2540 = vmatpush2.bf16.msra.mxu0 %v2397
        %2541 = vmatprep.mubr.bf16.mxu0 %v2082
        %2542 = vmatmul.mubr.bf16.gmra.mxu0 %v2081
        %v2543 = vpop.f32.mrf.mxu0
        %v2544 = vadd.f32 %v2182, %v2543
        %v2545 = vpop.f32.mrf.mxu0
        %v2546 = vadd.f32 %v2186, %v2545
        %v2547 = vpop.f32.mrf.mxu0
        %v2548 = vadd.f32 %v2182, %v2547
        %v2549 = vpop.f32.mrf.mxu0
        %v2550 = vadd.f32 %v2186, %v2549
        %2551 = vmatprep.mubr.bf16.mxu0 %v2086
        %2552 = vmatmul.mubr.bf16.gmra.mxu0 %v2085
        %v2553 = vpop.f32.mrf.mxu0
        %v2554 = vadd.f32 %v2182, %v2553
        %v2555 = vpop.f32.mrf.mxu0
        %v2556 = vadd.f32 %v2186, %v2555
        %v2557 = vpop.f32.mrf.mxu0
        %v2558 = vadd.f32 %v2182, %v2557
        %v2559 = vpop.f32.mrf.mxu0
        %v2560 = vadd.f32 %v2186, %v2559
        %2561 = vmatprep.mubr.bf16.mxu0 %v2090
        %2562 = vmatmul.mubr.bf16.gmra.mxu0 %v2089
        %v2563 = vpop.f32.mrf.mxu0
        %v2564 = vadd.f32 %v2182, %v2563
        %v2565 = vpop.f32.mrf.mxu0
        %v2566 = vadd.f32 %v2186, %v2565
        %v2567 = vpop.f32.mrf.mxu0
        %v2568 = vadd.f32 %v2182, %v2567
        %v2569 = vpop.f32.mrf.mxu0
        %v2570 = vadd.f32 %v2186, %v2569
        %2571 = vmatprep.mubr.bf16.mxu0 %v2094
        %2572 = vmatmul.mubr.bf16.gmra.mxu0 %v2093
        %v2573 = vpop.f32.mrf.mxu0
        %v2574 = vadd.f32 %v2182, %v2573
        %v2575 = vpop.f32.mrf.mxu0
        %v2576 = vadd.f32 %v2186, %v2575
        %v2577 = vpop.f32.mrf.mxu0
        %v2578 = vadd.f32 %v2182, %v2577
        %v2579 = vpop.f32.mrf.mxu0
        %v2580 = vadd.f32 %v2186, %v2579
        %2581 = vmatprep.mubr.bf16.mxu0 %v2098
        %2582 = vmatmul.mubr.bf16.gmra.mxu0 %v2097
        %v2583 = vpop.f32.mrf.mxu0
        %v2584 = vadd.f32 %v2182, %v2583
        %v2585 = vpop.f32.mrf.mxu0
        %v2586 = vadd.f32 %v2186, %v2585
        %v2587 = vpop.f32.mrf.mxu0
        %v2588 = vadd.f32 %v2182, %v2587
        %v2589 = vpop.f32.mrf.mxu0
        %v2590 = vadd.f32 %v2186, %v2589
        %2591 = vmatprep.mubr.bf16.mxu0 %v2102
        %2592 = vmatmul.mubr.bf16.gmra.mxu0 %v2101
        %v2593 = vpop.f32.mrf.mxu0
        %v2594 = vadd.f32 %v2182, %v2593
        %v2595 = vpop.f32.mrf.mxu0
        %v2596 = vadd.f32 %v2186, %v2595
        %v2597 = vpop.f32.mrf.mxu0
        %v2598 = vadd.f32 %v2182, %v2597
        %v2599 = vpop.f32.mrf.mxu0
        %v2600 = vadd.f32 %v2186, %v2599
        %2601 = vmatprep.mubr.bf16.mxu0 %v2106
        %2602 = vmatmul.mubr.bf16.gmra.mxu0 %v2105
        %v2603 = vpop.f32.mrf.mxu0
        %v2604 = vadd.f32 %v2182, %v2603
        %v2605 = vpop.f32.mrf.mxu0
        %v2606 = vadd.f32 %v2186, %v2605
        %v2607 = vpop.f32.mrf.mxu0
        %v2608 = vadd.f32 %v2182, %v2607
        %v2609 = vpop.f32.mrf.mxu0
        %v2610 = vadd.f32 %v2186, %v2609
        %2611 = vmatprep.mubr.bf16.mxu0 %v2110
        %2612 = vmatmul.mubr.bf16.gmra.mxu0 %v2109
        %v2613 = vpop.f32.mrf.mxu0
        %v2614 = vadd.f32 %v2182, %v2613
        %v2615 = vpop.f32.mrf.mxu0
        %v2616 = vadd.f32 %v2186, %v2615
        %v2617 = vpop.f32.mrf.mxu0
        %v2618 = vadd.f32 %v2182, %v2617
        %v2619 = vpop.f32.mrf.mxu0
        %v2620 = vadd.f32 %v2186, %v2619
        %2621 = vdwg.mxu0
        %2622 = vmatprep.subr.bf16.mxu0 %v2428
        %2623 = vmatpush1.bf16.msra.mxu0 %v2427
        %2624 = vmatprep.subr.bf16.mxu0 %v2426
        %2625 = vmatpush1.bf16.msra.mxu0 %v2425
        %2626 = vmatprep.subr.bf16.mxu0 %v2424
        %2627 = vmatpush1.bf16.msra.mxu0 %v2423
        %2628 = vmatprep.subr.bf16.mxu0 %v2422
        %2629 = vmatpush1.bf16.msra.mxu0 %v2421
        %2630 = vmatprep.subr.bf16.mxu0 %v2420
        %2631 = vmatpush1.bf16.msra.mxu0 %v2419
        %2632 = vmatprep.subr.bf16.mxu0 %v2418
        %2633 = vmatpush1.bf16.msra.mxu0 %v2417
        %2634 = vmatprep.subr.bf16.mxu0 %v2416
        %2635 = vmatpush1.bf16.msra.mxu0 %v2415
        %2636 = vmatprep.subr.bf16.mxu0 %v2414
        %2637 = vmatpush1.bf16.msra.mxu0 %v2413
        %2638 = vmatprep.subr.bf16.mxu0 %v2444
        %2639 = vmatpush2.bf16.msra.mxu0 %v2443
        %2640 = vmatprep.subr.bf16.mxu0 %v2442
        %2641 = vmatpush2.bf16.msra.mxu0 %v2441
        %2642 = vmatprep.subr.bf16.mxu0 %v2440
        %2643 = vmatpush2.bf16.msra.mxu0 %v2439
        %2644 = vmatprep.subr.bf16.mxu0 %v2438
        %2645 = vmatpush2.bf16.msra.mxu0 %v2437
        %2646 = vmatprep.subr.bf16.mxu0 %v2436
        %2647 = vmatpush2.bf16.msra.mxu0 %v2435
        %2648 = vmatprep.subr.bf16.mxu0 %v2434
        %2649 = vmatpush2.bf16.msra.mxu0 %v2433
        %2650 = vmatprep.subr.bf16.mxu0 %v2432
        %2651 = vmatpush2.bf16.msra.mxu0 %v2431
        %2652 = vmatprep.subr.bf16.mxu0 %v2430
        %2653 = vmatpush2.bf16.msra.mxu0 %v2429
        %2654 = vmatprep.mubr.bf16.mxu0 %v2084
        %2655 = vmatmul.mubr.bf16.gmra.mxu0 %v2083
        %v2656 = vpop.f32.mrf.mxu0
        %v2657 = vadd.f32 %v2544, %v2656
        %v2658 = vpop.f32.mrf.mxu0
        %v2659 = vadd.f32 %v2546, %v2658
        %v2660 = vpop.f32.mrf.mxu0
        %v2661 = vadd.f32 %v2548, %v2660
        %v2662 = vpop.f32.mrf.mxu0
        %v2663 = vadd.f32 %v2550, %v2662
        %2664 = vmatprep.mubr.bf16.mxu0 %v2088
        %2665 = vmatmul.mubr.bf16.gmra.mxu0 %v2087
        %v2666 = vpop.f32.mrf.mxu0
        %v2667 = vadd.f32 %v2554, %v2666
        %v2668 = vpop.f32.mrf.mxu0
        %v2669 = vadd.f32 %v2556, %v2668
        %v2670 = vpop.f32.mrf.mxu0
        %v2671 = vadd.f32 %v2558, %v2670
        %v2672 = vpop.f32.mrf.mxu0
        %v2673 = vadd.f32 %v2560, %v2672
        %2674 = vmatprep.mubr.bf16.mxu0 %v2092
        %2675 = vmatmul.mubr.bf16.gmra.mxu0 %v2091
        %v2676 = vpop.f32.mrf.mxu0
        %v2677 = vadd.f32 %v2564, %v2676
        %v2678 = vpop.f32.mrf.mxu0
        %v2679 = vadd.f32 %v2566, %v2678
        %v2680 = vpop.f32.mrf.mxu0
        %v2681 = vadd.f32 %v2568, %v2680
        %v2682 = vpop.f32.mrf.mxu0
        %v2683 = vadd.f32 %v2570, %v2682
        %2684 = vmatprep.mubr.bf16.mxu0 %v2096
        %2685 = vmatmul.mubr.bf16.gmra.mxu0 %v2095
        %v2686 = vpop.f32.mrf.mxu0
        %v2687 = vadd.f32 %v2574, %v2686
        %v2688 = vpop.f32.mrf.mxu0
        %v2689 = vadd.f32 %v2576, %v2688
        %v2690 = vpop.f32.mrf.mxu0
        %v2691 = vadd.f32 %v2578, %v2690
        %v2692 = vpop.f32.mrf.mxu0
        %v2693 = vadd.f32 %v2580, %v2692
        %2694 = vmatprep.mubr.bf16.mxu0 %v2100
        %2695 = vmatmul.mubr.bf16.gmra.mxu0 %v2099
        %v2696 = vpop.f32.mrf.mxu0
        %v2697 = vadd.f32 %v2584, %v2696
        %v2698 = vpop.f32.mrf.mxu0
        %v2699 = vadd.f32 %v2586, %v2698
        %v2700 = vpop.f32.mrf.mxu0
        %v2701 = vadd.f32 %v2588, %v2700
        %v2702 = vpop.f32.mrf.mxu0
        %v2703 = vadd.f32 %v2590, %v2702
        %2704 = vmatprep.mubr.bf16.mxu0 %v2104
        %2705 = vmatmul.mubr.bf16.gmra.mxu0 %v2103
        %v2706 = vpop.f32.mrf.mxu0
        %v2707 = vadd.f32 %v2594, %v2706
        %v2708 = vpop.f32.mrf.mxu0
        %v2709 = vadd.f32 %v2596, %v2708
        %v2710 = vpop.f32.mrf.mxu0
        %v2711 = vadd.f32 %v2598, %v2710
        %v2712 = vpop.f32.mrf.mxu0
        %v2713 = vadd.f32 %v2600, %v2712
        %2714 = vmatprep.mubr.bf16.mxu0 %v2108
        %2715 = vmatmul.mubr.bf16.gmra.mxu0 %v2107
        %v2716 = vpop.f32.mrf.mxu0
        %v2717 = vadd.f32 %v2604, %v2716
        %v2718 = vpop.f32.mrf.mxu0
        %v2719 = vadd.f32 %v2606, %v2718
        %v2720 = vpop.f32.mrf.mxu0
        %v2721 = vadd.f32 %v2608, %v2720
        %v2722 = vpop.f32.mrf.mxu0
        %v2723 = vadd.f32 %v2610, %v2722
        %2724 = vmatprep.mubr.bf16.mxu0 %v2112
        %2725 = vmatmul.mubr.bf16.gmra.mxu0 %v2111
        %v2726 = vpop.f32.mrf.mxu0
        %v2727 = vadd.f32 %v2614, %v2726
        %v2728 = vpop.f32.mrf.mxu0
        %v2729 = vadd.f32 %v2616, %v2728
        %v2730 = vpop.f32.mrf.mxu0
        %v2731 = vadd.f32 %v2618, %v2730
        %v2732 = vpop.f32.mrf.mxu0
        %v2733 = vadd.f32 %v2620, %v2732
        %2734 = vdwg.mxu0
        %v2735 = vmul.f32 %v2659, 0.5
        %v2736 = vmul.f32 %v2663, 0.5
        %v2737 = vmul.f32 %v2669, 0.5
        %v2738 = vmul.f32 %v2673, 0.5
        %v2739 = vmul.f32 %v2679, 0.5
        %v2740 = vmul.f32 %v2683, 0.5
        %v2741 = vmul.f32 %v2689, 0.5
        %v2742 = vmul.f32 %v2693, 0.5
        %v2743 = vmul.f32 %v2699, 0.5
        %v2744 = vmul.f32 %v2703, 0.5
        %v2745 = vmul.f32 %v2709, 0.5
        %v2746 = vmul.f32 %v2713, 0.5
        %v2747 = vmul.f32 %v2719, 0.5
        %v2748 = vmul.f32 %v2723, 0.5
        %v2749 = vmul.f32 %v2729, 0.5
        %v2750 = vmul.f32 %v2733, 0.5
        %v2751 = vmul.f32 %v2735, 1.442695
        %v2752 = vpow.pop %v2751
        %v2753 = vmul.f32 %v2736, 1.442695
        %v2754 = vpow.pop %v2753
        %v2755 = vmul.f32 %v2737, 1.442695
        %v2756 = vpow.pop %v2755
        %v2757 = vmul.f32 %v2738, 1.442695
        %v2758 = vpow.pop %v2757
        %v2759 = vmul.f32 %v2739, 1.442695
        %v2760 = vpow.pop %v2759
        %v2761 = vmul.f32 %v2740, 1.442695
        %v2762 = vpow.pop %v2761
        %v2763 = vmul.f32 %v2741, 1.442695
        %v2764 = vpow.pop %v2763
        %v2765 = vmul.f32 %v2742, 1.442695
        %v2766 = vpow.pop %v2765
        %v2767 = vmul.f32 %v2743, 1.442695
        %v2768 = vpow.pop %v2767
        %v2769 = vmul.f32 %v2744, 1.442695
        %v2770 = vpow.pop %v2769
        %v2771 = vmul.f32 %v2745, 1.442695
        %v2772 = vpow.pop %v2771
        %v2773 = vmul.f32 %v2746, 1.442695
        %v2774 = vpow.pop %v2773
        %v2775 = vmul.f32 %v2747, 1.442695
        %v2776 = vpow.pop %v2775
        %v2777 = vmul.f32 %v2748, 1.442695
        %v2778 = vpow.pop %v2777
        %v2779 = vmul.f32 %v2749, 1.442695
        %v2780 = vpow.pop %v2779
        %v2781 = vmul.f32 %v2750, 1.442695
        %v2782 = vpow.pop %v2781
        %v2783 = vmul.f32 %v599, %v2752
        %v2784 = vmul.f32 %v600, %v2754
        %v2785 = vmul.f32 %v601, %v2756
        %v2786 = vmul.f32 %v602, %v2758
        %v2787 = vmul.f32 %v603, %v2760
        %v2788 = vmul.f32 %v604, %v2762
        %v2789 = vmul.f32 %v605, %v2764
        %v2790 = vmul.f32 %v606, %v2766
        %v2791 = vmul.f32 %v607, %v2768
        %v2792 = vmul.f32 %v608, %v2770
        %v2793 = vmul.f32 %v609, %v2772
        %v2794 = vmul.f32 %v610, %v2774
        %v2795 = vmul.f32 %v611, %v2776
        %v2796 = vmul.f32 %v612, %v2778
        %v2797 = vmul.f32 %v613, %v2780
        %v2798 = vmul.f32 %v614, %v2782
        %v2799 = vadd.f32 %v2783, %v2657
        %v2800 = vadd.f32 %v2784, %v2661
        %v2801 = vadd.f32 %v2785, %v2667
        %v2802 = vadd.f32 %v2786, %v2671
        %v2803 = vadd.f32 %v2787, %v2677
        %v2804 = vadd.f32 %v2788, %v2681
        %v2805 = vadd.f32 %v2789, %v2687
        %v2806 = vadd.f32 %v2790, %v2691
        %v2807 = vadd.f32 %v2791, %v2697
        %v2808 = vadd.f32 %v2792, %v2701
        %v2809 = vadd.f32 %v2793, %v2707
        %v2810 = vadd.f32 %v2794, %v2711
        %v2811 = vadd.f32 %v2795, %v2717
        %v2812 = vadd.f32 %v2796, %v2721
        %v2813 = vadd.f32 %v2797, %v2727
        %v2814 = vadd.f32 %v2798, %v2731
        %v2815 = vpack.c.bf16 %v2800, %v2799
        %v2816 = vpack.c.bf16 %v2802, %v2801
        %v2817 = vpack.c.bf16 %v2804, %v2803
        %v2818 = vpack.c.bf16 %v2806, %v2805
        %v2819 = vpack.c.bf16 %v2808, %v2807
        %v2820 = vpack.c.bf16 %v2810, %v2809
        %v2821 = vpack.c.bf16 %v2812, %v2811
        %v2822 = vpack.c.bf16 %v2814, %v2813
        %v2823 = vld [vmem:[#allocation11] sm:$0xff]
        %v2824 = vld [vmem:[#allocation11 + $0x8] sm:$0xff]
        %v2825 = vld [vmem:[#allocation11 + $0x10] sm:$0xff]
        %v2826 = vld [vmem:[#allocation11 + $0x18] sm:$0xff]
        %v2827 = vld [vmem:[#allocation11 + $0x20] sm:$0xff]
        %v2828 = vld [vmem:[#allocation11 + $0x28] sm:$0xff]
        %v2829 = vld [vmem:[#allocation11 + $0x30] sm:$0xff]
        %v2830 = vld [vmem:[#allocation11 + $0x38] sm:$0xff]
        %v2831 = vld [vmem:[#allocation11 + $0x40] sm:$0xff]
        %v2832 = vld [vmem:[#allocation11 + $0x48] sm:$0xff]
        %v2833 = vld [vmem:[#allocation11 + $0x50] sm:$0xff]
        %v2834 = vld [vmem:[#allocation11 + $0x58] sm:$0xff]
        %v2835 = vld [vmem:[#allocation11 + $0x60] sm:$0xff]
        %v2836 = vld [vmem:[#allocation11 + $0x68] sm:$0xff]
        %v2837 = vld [vmem:[#allocation11 + $0x70] sm:$0xff]
        %v2838 = vld [vmem:[#allocation11 + $0x78] sm:$0xff]
        %v2839 = vld [vmem:[%s7] sm:$0x3]
        %v2841 = vlaneseq
        %v2842 = vshrl.u32 %v2841, 7
        %v2843 = vsub.s32 0, %v2842
        %v2844 = vrot.slane %v2839, %v2843
        %v2845 = vlaneseq
        %v2846 = vshrl.u32 %v2845, 7
        %v2847 = vsub.s32 1, %v2846
        %v2848 = vrot.slane %v2839, %v2847
        %v2867 = vunpack.c.l.b16 %v2823
        %v2868 = vunpack.c.h.b16 %v2823
        %v2869 = vunpack.c.l.b16 %v2824
        %v2870 = vunpack.c.h.b16 %v2824
        %v2871 = vunpack.c.l.b16 %v2825
        %v2872 = vunpack.c.h.b16 %v2825
        %v2873 = vunpack.c.l.b16 %v2826
        %v2874 = vunpack.c.h.b16 %v2826
        %v2875 = vunpack.c.l.b16 %v2827
        %v2876 = vunpack.c.h.b16 %v2827
        %v2877 = vunpack.c.l.b16 %v2828
        %v2878 = vunpack.c.h.b16 %v2828
        %v2879 = vunpack.c.l.b16 %v2829
        %v2880 = vunpack.c.h.b16 %v2829
        %v2881 = vunpack.c.l.b16 %v2830
        %v2882 = vunpack.c.h.b16 %v2830
        %v2883 = vunpack.c.l.b16 %v2831
        %v2884 = vunpack.c.h.b16 %v2831
        %v2885 = vunpack.c.l.b16 %v2832
        %v2886 = vunpack.c.h.b16 %v2832
        %v2887 = vunpack.c.l.b16 %v2833
        %v2888 = vunpack.c.h.b16 %v2833
        %v2889 = vunpack.c.l.b16 %v2834
        %v2890 = vunpack.c.h.b16 %v2834
        %v2891 = vunpack.c.l.b16 %v2835
        %v2892 = vunpack.c.h.b16 %v2835
        %v2893 = vunpack.c.l.b16 %v2836
        %v2894 = vunpack.c.h.b16 %v2836
        %v2895 = vunpack.c.l.b16 %v2837
        %v2896 = vunpack.c.h.b16 %v2837
        %v2897 = vunpack.c.l.b16 %v2838
        %v2898 = vunpack.c.h.b16 %v2838
        %v2899 = vpack.c.b16 %v2869, %v2867
        %v2900 = vpack.c.b16 %v2870, %v2868
        %v2901 = vpack.c.b16 %v2873, %v2871
        %v2902 = vpack.c.b16 %v2874, %v2872
        %v2903 = vpack.c.b16 %v2877, %v2875
        %v2904 = vpack.c.b16 %v2878, %v2876
        %v2905 = vpack.c.b16 %v2881, %v2879
        %v2906 = vpack.c.b16 %v2882, %v2880
        %v2907 = vpack.c.b16 %v2885, %v2883
        %v2908 = vpack.c.b16 %v2886, %v2884
        %v2909 = vpack.c.b16 %v2889, %v2887
        %v2910 = vpack.c.b16 %v2890, %v2888
        %v2911 = vpack.c.b16 %v2893, %v2891
        %v2912 = vpack.c.b16 %v2894, %v2892
        %v2913 = vpack.c.b16 %v2897, %v2895
        %v2914 = vpack.c.b16 %v2898, %v2896
        %2931 = vmatprep.subr.bf16.mxu0 %v2914
        %2932 = vmatpush1.bf16.msra.mxu0 %v2913
        %2933 = vmatprep.subr.bf16.mxu0 %v2912
        %2934 = vmatpush1.bf16.msra.mxu0 %v2911
        %2935 = vmatprep.subr.bf16.mxu0 %v2910
        %2936 = vmatpush1.bf16.msra.mxu0 %v2909
        %2937 = vmatprep.subr.bf16.mxu0 %v2908
        %2938 = vmatpush1.bf16.msra.mxu0 %v2907
        %2939 = vmatprep.subr.bf16.mxu0 %v2906
        %2940 = vmatpush1.bf16.msra.mxu0 %v2905
        %2941 = vmatprep.subr.bf16.mxu0 %v2904
        %2942 = vmatpush1.bf16.msra.mxu0 %v2903
        %2943 = vmatprep.subr.bf16.mxu0 %v2902
        %2944 = vmatpush1.bf16.msra.mxu0 %v2901
        %2945 = vmatprep.subr.bf16.mxu0 %v2900
        %2946 = vmatpush1.bf16.msra.mxu0 %v2899
        %2947 = vmatprep.subr.bf16.mxu0 0
        %2948 = vmatpush2.bf16.msra.mxu0 0
        %2949 = vmatprep.subr.bf16.mxu0 0
        %2950 = vmatpush2.bf16.msra.mxu0 0
        %2951 = vmatprep.subr.bf16.mxu0 0
        %2952 = vmatpush2.bf16.msra.mxu0 0
        %2953 = vmatprep.subr.bf16.mxu0 0
        %2954 = vmatpush2.bf16.msra.mxu0 0
        %2955 = vmatprep.subr.bf16.mxu0 0
        %2956 = vmatpush2.bf16.msra.mxu0 0
        %2957 = vmatprep.subr.bf16.mxu0 0
        %2958 = vmatpush2.bf16.msra.mxu0 0
        %2959 = vmatprep.subr.bf16.mxu0 0
        %2960 = vmatpush2.bf16.msra.mxu0 0
        %2961 = vmatprep.subr.bf16.mxu0 0
        %2962 = vmatpush2.bf16.msra.mxu0 0
        %2963 = vmatprep.mubr.bf16.mxu0 0
        %2964 = vmatmul.mubr.bf16.gmra.mxu0 %v2815
        %v2965 = vpop.f32.mrf.mxu0
        %v2966 = vadd.f32 %v2844, %v2965
        %v2967 = vpop.f32.mrf.mxu0
        %v2968 = vadd.f32 %v2848, %v2967
        %v2969 = vpop.f32.mrf.mxu0
        %v2970 = vadd.f32 %v2844, %v2969
        %v2971 = vpop.f32.mrf.mxu0
        %v2972 = vadd.f32 %v2848, %v2971
        %2973 = vmatprep.mubr.bf16.mxu0 0
        %2974 = vmatmul.mubr.bf16.gmra.mxu0 %v2816
        %v2975 = vpop.f32.mrf.mxu0
        %v2976 = vadd.f32 %v2844, %v2975
        %v2977 = vpop.f32.mrf.mxu0
        %v2978 = vadd.f32 %v2848, %v2977
        %v2979 = vpop.f32.mrf.mxu0
        %v2980 = vadd.f32 %v2844, %v2979
        %v2981 = vpop.f32.mrf.mxu0
        %v2982 = vadd.f32 %v2848, %v2981
        %2983 = vmatprep.mubr.bf16.mxu0 0
        %2984 = vmatmul.mubr.bf16.gmra.mxu0 %v2817
        %v2985 = vpop.f32.mrf.mxu0
        %v2986 = vadd.f32 %v2844, %v2985
        %v2987 = vpop.f32.mrf.mxu0
        %v2988 = vadd.f32 %v2848, %v2987
        %v2989 = vpop.f32.mrf.mxu0
        %v2990 = vadd.f32 %v2844, %v2989
        %v2991 = vpop.f32.mrf.mxu0
        %v2992 = vadd.f32 %v2848, %v2991
        %2993 = vmatprep.mubr.bf16.mxu0 0
        %2994 = vmatmul.mubr.bf16.gmra.mxu0 %v2818
        %v2995 = vpop.f32.mrf.mxu0
        %v2996 = vadd.f32 %v2844, %v2995
        %v2997 = vpop.f32.mrf.mxu0
        %v2998 = vadd.f32 %v2848, %v2997
        %v2999 = vpop.f32.mrf.mxu0
        %v3000 = vadd.f32 %v2844, %v2999
        %v3001 = vpop.f32.mrf.mxu0
        %v3002 = vadd.f32 %v2848, %v3001
        %3003 = vmatprep.mubr.bf16.mxu0 0
        %3004 = vmatmul.mubr.bf16.gmra.mxu0 %v2819
        %v3005 = vpop.f32.mrf.mxu0
        %v3006 = vadd.f32 %v2844, %v3005
        %v3007 = vpop.f32.mrf.mxu0
        %v3008 = vadd.f32 %v2848, %v3007
        %v3009 = vpop.f32.mrf.mxu0
        %v3010 = vadd.f32 %v2844, %v3009
        %v3011 = vpop.f32.mrf.mxu0
        %v3012 = vadd.f32 %v2848, %v3011
        %3013 = vmatprep.mubr.bf16.mxu0 0
        %3014 = vmatmul.mubr.bf16.gmra.mxu0 %v2820
        %v3015 = vpop.f32.mrf.mxu0
        %v3016 = vadd.f32 %v2844, %v3015
        %v3017 = vpop.f32.mrf.mxu0
        %v3018 = vadd.f32 %v2848, %v3017
        %v3019 = vpop.f32.mrf.mxu0
        %v3020 = vadd.f32 %v2844, %v3019
        %v3021 = vpop.f32.mrf.mxu0
        %v3022 = vadd.f32 %v2848, %v3021
        %3023 = vmatprep.mubr.bf16.mxu0 0
        %3024 = vmatmul.mubr.bf16.gmra.mxu0 %v2821
        %v3025 = vpop.f32.mrf.mxu0
        %v3026 = vadd.f32 %v2844, %v3025
        %v3027 = vpop.f32.mrf.mxu0
        %v3028 = vadd.f32 %v2848, %v3027
        %v3029 = vpop.f32.mrf.mxu0
        %v3030 = vadd.f32 %v2844, %v3029
        %v3031 = vpop.f32.mrf.mxu0
        %v3032 = vadd.f32 %v2848, %v3031
        %3033 = vmatprep.mubr.bf16.mxu0 0
        %3034 = vmatmul.mubr.bf16.gmra.mxu0 %v2822
        %v3035 = vpop.f32.mrf.mxu0
        %v3036 = vadd.f32 %v2844, %v3035
        %v3037 = vpop.f32.mrf.mxu0
        %v3038 = vadd.f32 %v2848, %v3037
        %v3039 = vpop.f32.mrf.mxu0
        %v3040 = vadd.f32 %v2844, %v3039
        %v3041 = vpop.f32.mrf.mxu0
        %v3042 = vadd.f32 %v2848, %v3041
        %3043 = vdwg.mxu0
        %v3044 = vtanh.pop %v2966
        %v3045 = vtanh.pop %v2968
        %v3046 = vtanh.pop %v2970
        %v3047 = vtanh.pop %v2972
        %v3048 = vtanh.pop %v2976
        %v3049 = vtanh.pop %v2978
        %v3050 = vtanh.pop %v2980
        %v3051 = vtanh.pop %v2982
        %v3052 = vtanh.pop %v2986
        %v3053 = vtanh.pop %v2988
        %v3054 = vtanh.pop %v2990
        %v3055 = vtanh.pop %v2992
        %v3056 = vtanh.pop %v2996
        %v3057 = vtanh.pop %v2998
        %v3058 = vtanh.pop %v3000
        %v3059 = vtanh.pop %v3002
        %v3060 = vtanh.pop %v3006
        %v3061 = vtanh.pop %v3008
        %v3062 = vtanh.pop %v3010
        %v3063 = vtanh.pop %v3012
        %v3064 = vtanh.pop %v3016
        %v3065 = vtanh.pop %v3018
        %v3066 = vtanh.pop %v3020
        %v3067 = vtanh.pop %v3022
        %v3068 = vtanh.pop %v3026
        %v3069 = vtanh.pop %v3028
        %v3070 = vtanh.pop %v3030
        %v3071 = vtanh.pop %v3032
        %v3072 = vtanh.pop %v3036
        %v3073 = vtanh.pop %v3038
        %v3074 = vtanh.pop %v3040
        %v3075 = vtanh.pop %v3042
        %v3076 = vpack.c.bf16 %v3046, %v3044
        %v3077 = vpack.c.bf16 %v3047, %v3045
        %v3078 = vpack.c.bf16 %v3050, %v3048
        %v3079 = vpack.c.bf16 %v3051, %v3049
        %v3080 = vpack.c.bf16 %v3054, %v3052
        %v3081 = vpack.c.bf16 %v3055, %v3053
        %v3082 = vpack.c.bf16 %v3058, %v3056
        %v3083 = vpack.c.bf16 %v3059, %v3057
        %v3084 = vpack.c.bf16 %v3062, %v3060
        %v3085 = vpack.c.bf16 %v3063, %v3061
        %v3086 = vpack.c.bf16 %v3066, %v3064
        %v3087 = vpack.c.bf16 %v3067, %v3065
        %v3088 = vpack.c.bf16 %v3070, %v3068
        %v3089 = vpack.c.bf16 %v3071, %v3069
        %v3090 = vpack.c.bf16 %v3074, %v3072
        %v3091 = vpack.c.bf16 %v3075, %v3073
        %v3092 = vld [vmem:[#allocation13] sm:$0xff]
        %v3093 = vld [vmem:[#allocation13 + $0x8] sm:$0xff]
        %v3094 = vld [vmem:[#allocation13 + $0x10] sm:$0xff]
        %v3095 = vld [vmem:[#allocation13 + $0x18] sm:$0xff]
        %v3096 = vld [vmem:[#allocation13 + $0x20] sm:$0xff]
        %v3097 = vld [vmem:[#allocation13 + $0x28] sm:$0xff]
        %v3098 = vld [vmem:[#allocation13 + $0x30] sm:$0xff]
        %v3099 = vld [vmem:[#allocation13 + $0x38] sm:$0xff]
        %v3100 = vld [vmem:[#allocation13 + $0x40] sm:$0xff]
        %v3101 = vld [vmem:[#allocation13 + $0x48] sm:$0xff]
        %v3102 = vld [vmem:[#allocation13 + $0x50] sm:$0xff]
        %v3103 = vld [vmem:[#allocation13 + $0x58] sm:$0xff]
        %v3104 = vld [vmem:[#allocation13 + $0x60] sm:$0xff]
        %v3105 = vld [vmem:[#allocation13 + $0x68] sm:$0xff]
        %v3106 = vld [vmem:[#allocation13 + $0x70] sm:$0xff]
        %v3107 = vld [vmem:[#allocation13 + $0x78] sm:$0xff]
        %v3108 = vld [vmem:[#allocation13 + $0x80] sm:$0xff]
        %v3109 = vld [vmem:[#allocation13 + $0x88] sm:$0xff]
        %v3110 = vld [vmem:[#allocation13 + $0x90] sm:$0xff]
        %v3111 = vld [vmem:[#allocation13 + $0x98] sm:$0xff]
        %v3112 = vld [vmem:[#allocation13 + $0xa0] sm:$0xff]
        %v3113 = vld [vmem:[#allocation13 + $0xa8] sm:$0xff]
        %v3114 = vld [vmem:[#allocation13 + $0xb0] sm:$0xff]
        %v3115 = vld [vmem:[#allocation13 + $0xb8] sm:$0xff]
        %v3116 = vld [vmem:[#allocation13 + $0xc0] sm:$0xff]
        %v3117 = vld [vmem:[#allocation13 + $0xc8] sm:$0xff]
        %v3118 = vld [vmem:[#allocation13 + $0xd0] sm:$0xff]
        %v3119 = vld [vmem:[#allocation13 + $0xd8] sm:$0xff]
        %v3120 = vld [vmem:[#allocation13 + $0xe0] sm:$0xff]
        %v3121 = vld [vmem:[#allocation13 + $0xe8] sm:$0xff]
        %v3122 = vld [vmem:[#allocation13 + $0xf0] sm:$0xff]
        %v3123 = vld [vmem:[#allocation13 + $0xf8] sm:$0xff]
        %v3124 = vld [vmem:[#allocation13 + $0x100] sm:$0xff]
        %v3125 = vld [vmem:[#allocation13 + $0x108] sm:$0xff]
        %v3126 = vld [vmem:[#allocation13 + $0x110] sm:$0xff]
        %v3127 = vld [vmem:[#allocation13 + $0x118] sm:$0xff]
        %v3128 = vld [vmem:[#allocation13 + $0x120] sm:$0xff]
        %v3129 = vld [vmem:[#allocation13 + $0x128] sm:$0xff]
        %v3130 = vld [vmem:[#allocation13 + $0x130] sm:$0xff]
        %v3131 = vld [vmem:[#allocation13 + $0x138] sm:$0xff]
        %v3132 = vld [vmem:[#allocation13 + $0x140] sm:$0xff]
        %v3133 = vld [vmem:[#allocation13 + $0x148] sm:$0xff]
        %v3134 = vld [vmem:[#allocation13 + $0x150] sm:$0xff]
        %v3135 = vld [vmem:[#allocation13 + $0x158] sm:$0xff]
        %v3136 = vld [vmem:[#allocation13 + $0x160] sm:$0xff]
        %v3137 = vld [vmem:[#allocation13 + $0x168] sm:$0xff]
        %v3138 = vld [vmem:[#allocation13 + $0x170] sm:$0xff]
        %v3139 = vld [vmem:[#allocation13 + $0x178] sm:$0xff]
        %v3140 = vld [vmem:[#allocation13 + $0x180] sm:$0xff]
        %v3141 = vld [vmem:[#allocation13 + $0x188] sm:$0xff]
        %v3142 = vld [vmem:[#allocation13 + $0x190] sm:$0xff]
        %v3143 = vld [vmem:[#allocation13 + $0x198] sm:$0xff]
        %v3144 = vld [vmem:[#allocation13 + $0x1a0] sm:$0xff]
        %v3145 = vld [vmem:[#allocation13 + $0x1a8] sm:$0xff]
        %v3146 = vld [vmem:[#allocation13 + $0x1b0] sm:$0xff]
        %v3147 = vld [vmem:[#allocation13 + $0x1b8] sm:$0xff]
        %v3148 = vld [vmem:[#allocation13 + $0x1c0] sm:$0xff]
        %v3149 = vld [vmem:[#allocation13 + $0x1c8] sm:$0xff]
        %v3150 = vld [vmem:[#allocation13 + $0x1d0] sm:$0xff]
        %v3151 = vld [vmem:[#allocation13 + $0x1d8] sm:$0xff]
        %v3152 = vld [vmem:[#allocation13 + $0x1e0] sm:$0xff]
        %v3153 = vld [vmem:[#allocation13 + $0x1e8] sm:$0xff]
        %v3154 = vld [vmem:[#allocation13 + $0x1f0] sm:$0xff]
        %v3155 = vld [vmem:[#allocation13 + $0x1f8] sm:$0xff]
        %v3156 = vld [vmem:[%s9] sm:$0xf]
        %v3158 = vlaneseq
        %v3159 = vshrl.u32 %v3158, 7
        %v3160 = vsub.s32 0, %v3159
        %v3161 = vrot.slane %v3156, %v3160
        %v3162 = vlaneseq
        %v3163 = vshrl.u32 %v3162, 7
        %v3164 = vsub.s32 1, %v3163
        %v3165 = vrot.slane %v3156, %v3164
        %v3166 = vlaneseq
        %v3167 = vshrl.u32 %v3166, 7
        %v3168 = vsub.s32 2, %v3167
        %v3169 = vrot.slane %v3156, %v3168
        %v3170 = vlaneseq
        %v3171 = vshrl.u32 %v3170, 7
        %v3172 = vsub.s32 3, %v3171
        %v3173 = vrot.slane %v3156, %v3172
        %v3242 = vunpack.c.l.b16 %v3092
        %v3243 = vunpack.c.h.b16 %v3092
        %v3244 = vunpack.c.l.b16 %v3093
        %v3245 = vunpack.c.h.b16 %v3093
        %v3246 = vunpack.c.l.b16 %v3094
        %v3247 = vunpack.c.h.b16 %v3094
        %v3248 = vunpack.c.l.b16 %v3095
        %v3249 = vunpack.c.h.b16 %v3095
        %v3250 = vunpack.c.l.b16 %v3096
        %v3251 = vunpack.c.h.b16 %v3096
        %v3252 = vunpack.c.l.b16 %v3097
        %v3253 = vunpack.c.h.b16 %v3097
        %v3254 = vunpack.c.l.b16 %v3098
        %v3255 = vunpack.c.h.b16 %v3098
        %v3256 = vunpack.c.l.b16 %v3099
        %v3257 = vunpack.c.h.b16 %v3099
        %v3258 = vunpack.c.l.b16 %v3100
        %v3259 = vunpack.c.h.b16 %v3100
        %v3260 = vunpack.c.l.b16 %v3101
        %v3261 = vunpack.c.h.b16 %v3101
        %v3262 = vunpack.c.l.b16 %v3102
        %v3263 = vunpack.c.h.b16 %v3102
        %v3264 = vunpack.c.l.b16 %v3103
        %v3265 = vunpack.c.h.b16 %v3103
        %v3266 = vunpack.c.l.b16 %v3104
        %v3267 = vunpack.c.h.b16 %v3104
        %v3268 = vunpack.c.l.b16 %v3105
        %v3269 = vunpack.c.h.b16 %v3105
        %v3270 = vunpack.c.l.b16 %v3106
        %v3271 = vunpack.c.h.b16 %v3106
        %v3272 = vunpack.c.l.b16 %v3107
        %v3273 = vunpack.c.h.b16 %v3107
        %v3274 = vunpack.c.l.b16 %v3108
        %v3275 = vunpack.c.h.b16 %v3108
        %v3276 = vunpack.c.l.b16 %v3109
        %v3277 = vunpack.c.h.b16 %v3109
        %v3278 = vunpack.c.l.b16 %v3110
        %v3279 = vunpack.c.h.b16 %v3110
        %v3280 = vunpack.c.l.b16 %v3111
        %v3281 = vunpack.c.h.b16 %v3111
        %v3282 = vunpack.c.l.b16 %v3112
        %v3283 = vunpack.c.h.b16 %v3112
        %v3284 = vunpack.c.l.b16 %v3113
        %v3285 = vunpack.c.h.b16 %v3113
        %v3286 = vunpack.c.l.b16 %v3114
        %v3287 = vunpack.c.h.b16 %v3114
        %v3288 = vunpack.c.l.b16 %v3115
        %v3289 = vunpack.c.h.b16 %v3115
        %v3290 = vunpack.c.l.b16 %v3116
        %v3291 = vunpack.c.h.b16 %v3116
        %v3292 = vunpack.c.l.b16 %v3117
        %v3293 = vunpack.c.h.b16 %v3117
        %v3294 = vunpack.c.l.b16 %v3118
        %v3295 = vunpack.c.h.b16 %v3118
        %v3296 = vunpack.c.l.b16 %v3119
        %v3297 = vunpack.c.h.b16 %v3119
        %v3298 = vunpack.c.l.b16 %v3120
        %v3299 = vunpack.c.h.b16 %v3120
        %v3300 = vunpack.c.l.b16 %v3121
        %v3301 = vunpack.c.h.b16 %v3121
        %v3302 = vunpack.c.l.b16 %v3122
        %v3303 = vunpack.c.h.b16 %v3122
        %v3304 = vunpack.c.l.b16 %v3123
        %v3305 = vunpack.c.h.b16 %v3123
        %v3306 = vunpack.c.l.b16 %v3124
        %v3307 = vunpack.c.h.b16 %v3124
        %v3308 = vunpack.c.l.b16 %v3125
        %v3309 = vunpack.c.h.b16 %v3125
        %v3310 = vunpack.c.l.b16 %v3126
        %v3311 = vunpack.c.h.b16 %v3126
        %v3312 = vunpack.c.l.b16 %v3127
        %v3313 = vunpack.c.h.b16 %v3127
        %v3314 = vunpack.c.l.b16 %v3128
        %v3315 = vunpack.c.h.b16 %v3128
        %v3316 = vunpack.c.l.b16 %v3129
        %v3317 = vunpack.c.h.b16 %v3129
        %v3318 = vunpack.c.l.b16 %v3130
        %v3319 = vunpack.c.h.b16 %v3130
        %v3320 = vunpack.c.l.b16 %v3131
        %v3321 = vunpack.c.h.b16 %v3131
        %v3322 = vunpack.c.l.b16 %v3132
        %v3323 = vunpack.c.h.b16 %v3132
        %v3324 = vunpack.c.l.b16 %v3133
        %v3325 = vunpack.c.h.b16 %v3133
        %v3326 = vunpack.c.l.b16 %v3134
        %v3327 = vunpack.c.h.b16 %v3134
        %v3328 = vunpack.c.l.b16 %v3135
        %v3329 = vunpack.c.h.b16 %v3135
        %v3330 = vunpack.c.l.b16 %v3136
        %v3331 = vunpack.c.h.b16 %v3136
        %v3332 = vunpack.c.l.b16 %v3137
        %v3333 = vunpack.c.h.b16 %v3137
        %v3334 = vunpack.c.l.b16 %v3138
        %v3335 = vunpack.c.h.b16 %v3138
        %v3336 = vunpack.c.l.b16 %v3139
        %v3337 = vunpack.c.h.b16 %v3139
        %v3338 = vunpack.c.l.b16 %v3140
        %v3339 = vunpack.c.h.b16 %v3140
        %v3340 = vunpack.c.l.b16 %v3141
        %v3341 = vunpack.c.h.b16 %v3141
        %v3342 = vunpack.c.l.b16 %v3142
        %v3343 = vunpack.c.h.b16 %v3142
        %v3344 = vunpack.c.l.b16 %v3143
        %v3345 = vunpack.c.h.b16 %v3143
        %v3346 = vunpack.c.l.b16 %v3144
        %v3347 = vunpack.c.h.b16 %v3144
        %v3348 = vunpack.c.l.b16 %v3145
        %v3349 = vunpack.c.h.b16 %v3145
        %v3350 = vunpack.c.l.b16 %v3146
        %v3351 = vunpack.c.h.b16 %v3146
        %v3352 = vunpack.c.l.b16 %v3147
        %v3353 = vunpack.c.h.b16 %v3147
        %v3354 = vunpack.c.l.b16 %v3148
        %v3355 = vunpack.c.h.b16 %v3148
        %v3356 = vunpack.c.l.b16 %v3149
        %v3357 = vunpack.c.h.b16 %v3149
        %v3358 = vunpack.c.l.b16 %v3150
        %v3359 = vunpack.c.h.b16 %v3150
        %v3360 = vunpack.c.l.b16 %v3151
        %v3361 = vunpack.c.h.b16 %v3151
        %v3362 = vunpack.c.l.b16 %v3152
        %v3363 = vunpack.c.h.b16 %v3152
        %v3364 = vunpack.c.l.b16 %v3153
        %v3365 = vunpack.c.h.b16 %v3153
        %v3366 = vunpack.c.l.b16 %v3154
        %v3367 = vunpack.c.h.b16 %v3154
        %v3368 = vunpack.c.l.b16 %v3155
        %v3369 = vunpack.c.h.b16 %v3155
        %v3370 = vpack.c.b16 %v3246, %v3242
        %v3371 = vpack.c.b16 %v3247, %v3243
        %v3372 = vpack.c.b16 %v3248, %v3244
        %v3373 = vpack.c.b16 %v3249, %v3245
        %v3374 = vpack.c.b16 %v3254, %v3250
        %v3375 = vpack.c.b16 %v3255, %v3251
        %v3376 = vpack.c.b16 %v3256, %v3252
        %v3377 = vpack.c.b16 %v3257, %v3253
        %v3378 = vpack.c.b16 %v3262, %v3258
        %v3379 = vpack.c.b16 %v3263, %v3259
        %v3380 = vpack.c.b16 %v3264, %v3260
        %v3381 = vpack.c.b16 %v3265, %v3261
        %v3382 = vpack.c.b16 %v3270, %v3266
        %v3383 = vpack.c.b16 %v3271, %v3267
        %v3384 = vpack.c.b16 %v3272, %v3268
        %v3385 = vpack.c.b16 %v3273, %v3269
        %v3386 = vpack.c.b16 %v3278, %v3274
        %v3387 = vpack.c.b16 %v3279, %v3275
        %v3388 = vpack.c.b16 %v3280, %v3276
        %v3389 = vpack.c.b16 %v3281, %v3277
        %v3390 = vpack.c.b16 %v3286, %v3282
        %v3391 = vpack.c.b16 %v3287, %v3283
        %v3392 = vpack.c.b16 %v3288, %v3284
        %v3393 = vpack.c.b16 %v3289, %v3285
        %v3394 = vpack.c.b16 %v3294, %v3290
        %v3395 = vpack.c.b16 %v3295, %v3291
        %v3396 = vpack.c.b16 %v3296, %v3292
        %v3397 = vpack.c.b16 %v3297, %v3293
        %v3398 = vpack.c.b16 %v3302, %v3298
        %v3399 = vpack.c.b16 %v3303, %v3299
        %v3400 = vpack.c.b16 %v3304, %v3300
        %v3401 = vpack.c.b16 %v3305, %v3301
        %v3402 = vpack.c.b16 %v3310, %v3306
        %v3403 = vpack.c.b16 %v3311, %v3307
        %v3404 = vpack.c.b16 %v3312, %v3308
        %v3405 = vpack.c.b16 %v3313, %v3309
        %v3406 = vpack.c.b16 %v3318, %v3314
        %v3407 = vpack.c.b16 %v3319, %v3315
        %v3408 = vpack.c.b16 %v3320, %v3316
        %v3409 = vpack.c.b16 %v3321, %v3317
        %v3410 = vpack.c.b16 %v3326, %v3322
        %v3411 = vpack.c.b16 %v3327, %v3323
        %v3412 = vpack.c.b16 %v3328, %v3324
        %v3413 = vpack.c.b16 %v3329, %v3325
        %v3414 = vpack.c.b16 %v3334, %v3330
        %v3415 = vpack.c.b16 %v3335, %v3331
        %v3416 = vpack.c.b16 %v3336, %v3332
        %v3417 = vpack.c.b16 %v3337, %v3333
        %v3418 = vpack.c.b16 %v3342, %v3338
        %v3419 = vpack.c.b16 %v3343, %v3339
        %v3420 = vpack.c.b16 %v3344, %v3340
        %v3421 = vpack.c.b16 %v3345, %v3341
        %v3422 = vpack.c.b16 %v3350, %v3346
        %v3423 = vpack.c.b16 %v3351, %v3347
        %v3424 = vpack.c.b16 %v3352, %v3348
        %v3425 = vpack.c.b16 %v3353, %v3349
        %v3426 = vpack.c.b16 %v3358, %v3354
        %v3427 = vpack.c.b16 %v3359, %v3355
        %v3428 = vpack.c.b16 %v3360, %v3356
        %v3429 = vpack.c.b16 %v3361, %v3357
        %v3430 = vpack.c.b16 %v3366, %v3362
        %v3431 = vpack.c.b16 %v3367, %v3363
        %v3432 = vpack.c.b16 %v3368, %v3364
        %v3433 = vpack.c.b16 %v3369, %v3365
        %3498 = vmatprep.subr.bf16.mxu0 %v3399
        %3499 = vmatpush1.bf16.msra.mxu0 %v3398
        %3500 = vmatprep.subr.bf16.mxu0 %v3395
        %3501 = vmatpush1.bf16.msra.mxu0 %v3394
        %3502 = vmatprep.subr.bf16.mxu0 %v3391
        %3503 = vmatpush1.bf16.msra.mxu0 %v3390
        %3504 = vmatprep.subr.bf16.mxu0 %v3387
        %3505 = vmatpush1.bf16.msra.mxu0 %v3386
        %3506 = vmatprep.subr.bf16.mxu0 %v3383
        %3507 = vmatpush1.bf16.msra.mxu0 %v3382
        %3508 = vmatprep.subr.bf16.mxu0 %v3379
        %3509 = vmatpush1.bf16.msra.mxu0 %v3378
        %3510 = vmatprep.subr.bf16.mxu0 %v3375
        %3511 = vmatpush1.bf16.msra.mxu0 %v3374
        %3512 = vmatprep.subr.bf16.mxu0 %v3371
        %3513 = vmatpush1.bf16.msra.mxu0 %v3370
        %3514 = vmatprep.subr.bf16.mxu0 %v3431
        %3515 = vmatpush2.bf16.msra.mxu0 %v3430
        %3516 = vmatprep.subr.bf16.mxu0 %v3427
        %3517 = vmatpush2.bf16.msra.mxu0 %v3426
        %3518 = vmatprep.subr.bf16.mxu0 %v3423
        %3519 = vmatpush2.bf16.msra.mxu0 %v3422
        %3520 = vmatprep.subr.bf16.mxu0 %v3419
        %3521 = vmatpush2.bf16.msra.mxu0 %v3418
        %3522 = vmatprep.subr.bf16.mxu0 %v3415
        %3523 = vmatpush2.bf16.msra.mxu0 %v3414
        %3524 = vmatprep.subr.bf16.mxu0 %v3411
        %3525 = vmatpush2.bf16.msra.mxu0 %v3410
        %3526 = vmatprep.subr.bf16.mxu0 %v3407
        %3527 = vmatpush2.bf16.msra.mxu0 %v3406
        %3528 = vmatprep.subr.bf16.mxu0 %v3403
        %3529 = vmatpush2.bf16.msra.mxu0 %v3402
        %3530 = vmatprep.mubr.bf16.mxu0 %v3077
        %3531 = vmatmul.mubr.bf16.gmra.mxu0 %v3076
        %v3532 = vpop.f32.mrf.mxu0
        %v3533 = vadd.f32 %v3161, %v3532
        %v3534 = vpop.f32.mrf.mxu0
        %v3535 = vadd.f32 %v3165, %v3534
        %v3536 = vpop.f32.mrf.mxu0
        %v3537 = vadd.f32 %v3161, %v3536
        %v3538 = vpop.f32.mrf.mxu0
        %v3539 = vadd.f32 %v3165, %v3538
        %3540 = vmatprep.mubr.bf16.mxu0 %v3079
        %3541 = vmatmul.mubr.bf16.gmra.mxu0 %v3078
        %v3542 = vpop.f32.mrf.mxu0
        %v3543 = vadd.f32 %v3161, %v3542
        %v3544 = vpop.f32.mrf.mxu0
        %v3545 = vadd.f32 %v3165, %v3544
        %v3546 = vpop.f32.mrf.mxu0
        %v3547 = vadd.f32 %v3161, %v3546
        %v3548 = vpop.f32.mrf.mxu0
        %v3549 = vadd.f32 %v3165, %v3548
        %3550 = vmatprep.mubr.bf16.mxu0 %v3081
        %3551 = vmatmul.mubr.bf16.gmra.mxu0 %v3080
        %v3552 = vpop.f32.mrf.mxu0
        %v3553 = vadd.f32 %v3161, %v3552
        %v3554 = vpop.f32.mrf.mxu0
        %v3555 = vadd.f32 %v3165, %v3554
        %v3556 = vpop.f32.mrf.mxu0
        %v3557 = vadd.f32 %v3161, %v3556
        %v3558 = vpop.f32.mrf.mxu0
        %v3559 = vadd.f32 %v3165, %v3558
        %3560 = vmatprep.mubr.bf16.mxu0 %v3083
        %3561 = vmatmul.mubr.bf16.gmra.mxu0 %v3082
        %v3562 = vpop.f32.mrf.mxu0
        %v3563 = vadd.f32 %v3161, %v3562
        %v3564 = vpop.f32.mrf.mxu0
        %v3565 = vadd.f32 %v3165, %v3564
        %v3566 = vpop.f32.mrf.mxu0
        %v3567 = vadd.f32 %v3161, %v3566
        %v3568 = vpop.f32.mrf.mxu0
        %v3569 = vadd.f32 %v3165, %v3568
        %3570 = vmatprep.mubr.bf16.mxu0 %v3085
        %3571 = vmatmul.mubr.bf16.gmra.mxu0 %v3084
        %v3572 = vpop.f32.mrf.mxu0
        %v3573 = vadd.f32 %v3161, %v3572
        %v3574 = vpop.f32.mrf.mxu0
        %v3575 = vadd.f32 %v3165, %v3574
        %v3576 = vpop.f32.mrf.mxu0
        %v3577 = vadd.f32 %v3161, %v3576
        %v3578 = vpop.f32.mrf.mxu0
        %v3579 = vadd.f32 %v3165, %v3578
        %3580 = vmatprep.mubr.bf16.mxu0 %v3087
        %3581 = vmatmul.mubr.bf16.gmra.mxu0 %v3086
        %v3582 = vpop.f32.mrf.mxu0
        %v3583 = vadd.f32 %v3161, %v3582
        %v3584 = vpop.f32.mrf.mxu0
        %v3585 = vadd.f32 %v3165, %v3584
        %v3586 = vpop.f32.mrf.mxu0
        %v3587 = vadd.f32 %v3161, %v3586
        %v3588 = vpop.f32.mrf.mxu0
        %v3589 = vadd.f32 %v3165, %v3588
        %3590 = vmatprep.mubr.bf16.mxu0 %v3089
        %3591 = vmatmul.mubr.bf16.gmra.mxu0 %v3088
        %v3592 = vpop.f32.mrf.mxu0
        %v3593 = vadd.f32 %v3161, %v3592
        %v3594 = vpop.f32.mrf.mxu0
        %v3595 = vadd.f32 %v3165, %v3594
        %v3596 = vpop.f32.mrf.mxu0
        %v3597 = vadd.f32 %v3161, %v3596
        %v3598 = vpop.f32.mrf.mxu0
        %v3599 = vadd.f32 %v3165, %v3598
        %3600 = vmatprep.mubr.bf16.mxu0 %v3091
        %3601 = vmatmul.mubr.bf16.gmra.mxu0 %v3090
        %v3602 = vpop.f32.mrf.mxu0
        %v3603 = vadd.f32 %v3161, %v3602
        %v3604 = vpop.f32.mrf.mxu0
        %v3605 = vadd.f32 %v3165, %v3604
        %v3606 = vpop.f32.mrf.mxu0
        %v3607 = vadd.f32 %v3161, %v3606
        %v3608 = vpop.f32.mrf.mxu0
        %v3609 = vadd.f32 %v3165, %v3608
        %3610 = vdwg.mxu0
        %3611 = vmatprep.subr.bf16.mxu0 %v3401
        %3612 = vmatpush1.bf16.msra.mxu0 %v3400
        %3613 = vmatprep.subr.bf16.mxu0 %v3397
        %3614 = vmatpush1.bf16.msra.mxu0 %v3396
        %3615 = vmatprep.subr.bf16.mxu0 %v3393
        %3616 = vmatpush1.bf16.msra.mxu0 %v3392
        %3617 = vmatprep.subr.bf16.mxu0 %v3389
        %3618 = vmatpush1.bf16.msra.mxu0 %v3388
        %3619 = vmatprep.subr.bf16.mxu0 %v3385
        %3620 = vmatpush1.bf16.msra.mxu0 %v3384
        %3621 = vmatprep.subr.bf16.mxu0 %v3381
        %3622 = vmatpush1.bf16.msra.mxu0 %v3380
        %3623 = vmatprep.subr.bf16.mxu0 %v3377
        %3624 = vmatpush1.bf16.msra.mxu0 %v3376
        %3625 = vmatprep.subr.bf16.mxu0 %v3373
        %3626 = vmatpush1.bf16.msra.mxu0 %v3372
        %3627 = vmatprep.subr.bf16.mxu0 %v3433
        %3628 = vmatpush2.bf16.msra.mxu0 %v3432
        %3629 = vmatprep.subr.bf16.mxu0 %v3429
        %3630 = vmatpush2.bf16.msra.mxu0 %v3428
        %3631 = vmatprep.subr.bf16.mxu0 %v3425
        %3632 = vmatpush2.bf16.msra.mxu0 %v3424
        %3633 = vmatprep.subr.bf16.mxu0 %v3421
        %3634 = vmatpush2.bf16.msra.mxu0 %v3420
        %3635 = vmatprep.subr.bf16.mxu0 %v3417
        %3636 = vmatpush2.bf16.msra.mxu0 %v3416
        %3637 = vmatprep.subr.bf16.mxu0 %v3413
        %3638 = vmatpush2.bf16.msra.mxu0 %v3412
        %3639 = vmatprep.subr.bf16.mxu0 %v3409
        %3640 = vmatpush2.bf16.msra.mxu0 %v3408
        %3641 = vmatprep.subr.bf16.mxu0 %v3405
        %3642 = vmatpush2.bf16.msra.mxu0 %v3404
        %3643 = vmatprep.mubr.bf16.mxu0 %v3077
        %3644 = vmatmul.mubr.bf16.gmra.mxu0 %v3076
        %v3645 = vpop.f32.mrf.mxu0
        %v3646 = vadd.f32 %v3169, %v3645
        %v3647 = vpop.f32.mrf.mxu0
        %v3648 = vadd.f32 %v3173, %v3647
        %v3649 = vpop.f32.mrf.mxu0
        %v3650 = vadd.f32 %v3169, %v3649
        %v3651 = vpop.f32.mrf.mxu0
        %v3652 = vadd.f32 %v3173, %v3651
        %3653 = vmatprep.mubr.bf16.mxu0 %v3079
        %3654 = vmatmul.mubr.bf16.gmra.mxu0 %v3078
        %v3655 = vpop.f32.mrf.mxu0
        %v3656 = vadd.f32 %v3169, %v3655
        %v3657 = vpop.f32.mrf.mxu0
        %v3658 = vadd.f32 %v3173, %v3657
        %v3659 = vpop.f32.mrf.mxu0
        %v3660 = vadd.f32 %v3169, %v3659
        %v3661 = vpop.f32.mrf.mxu0
        %v3662 = vadd.f32 %v3173, %v3661
        %3663 = vmatprep.mubr.bf16.mxu0 %v3081
        %3664 = vmatmul.mubr.bf16.gmra.mxu0 %v3080
        %v3665 = vpop.f32.mrf.mxu0
        %v3666 = vadd.f32 %v3169, %v3665
        %v3667 = vpop.f32.mrf.mxu0
        %v3668 = vadd.f32 %v3173, %v3667
        %v3669 = vpop.f32.mrf.mxu0
        %v3670 = vadd.f32 %v3169, %v3669
        %v3671 = vpop.f32.mrf.mxu0
        %v3672 = vadd.f32 %v3173, %v3671
        %3673 = vmatprep.mubr.bf16.mxu0 %v3083
        %3674 = vmatmul.mubr.bf16.gmra.mxu0 %v3082
        %v3675 = vpop.f32.mrf.mxu0
        %v3676 = vadd.f32 %v3169, %v3675
        %v3677 = vpop.f32.mrf.mxu0
        %v3678 = vadd.f32 %v3173, %v3677
        %v3679 = vpop.f32.mrf.mxu0
        %v3680 = vadd.f32 %v3169, %v3679
        %v3681 = vpop.f32.mrf.mxu0
        %v3682 = vadd.f32 %v3173, %v3681
        %3683 = vmatprep.mubr.bf16.mxu0 %v3085
        %3684 = vmatmul.mubr.bf16.gmra.mxu0 %v3084
        %v3685 = vpop.f32.mrf.mxu0
        %v3686 = vadd.f32 %v3169, %v3685
        %v3687 = vpop.f32.mrf.mxu0
        %v3688 = vadd.f32 %v3173, %v3687
        %v3689 = vpop.f32.mrf.mxu0
        %v3690 = vadd.f32 %v3169, %v3689
        %v3691 = vpop.f32.mrf.mxu0
        %v3692 = vadd.f32 %v3173, %v3691
        %3693 = vmatprep.mubr.bf16.mxu0 %v3087
        %3694 = vmatmul.mubr.bf16.gmra.mxu0 %v3086
        %v3695 = vpop.f32.mrf.mxu0
        %v3696 = vadd.f32 %v3169, %v3695
        %v3697 = vpop.f32.mrf.mxu0
        %v3698 = vadd.f32 %v3173, %v3697
        %v3699 = vpop.f32.mrf.mxu0
        %v3700 = vadd.f32 %v3169, %v3699
        %v3701 = vpop.f32.mrf.mxu0
        %v3702 = vadd.f32 %v3173, %v3701
        %3703 = vmatprep.mubr.bf16.mxu0 %v3089
        %3704 = vmatmul.mubr.bf16.gmra.mxu0 %v3088
        %v3705 = vpop.f32.mrf.mxu0
        %v3706 = vadd.f32 %v3169, %v3705
        %v3707 = vpop.f32.mrf.mxu0
        %v3708 = vadd.f32 %v3173, %v3707
        %v3709 = vpop.f32.mrf.mxu0
        %v3710 = vadd.f32 %v3169, %v3709
        %v3711 = vpop.f32.mrf.mxu0
        %v3712 = vadd.f32 %v3173, %v3711
        %3713 = vmatprep.mubr.bf16.mxu0 %v3091
        %3714 = vmatmul.mubr.bf16.gmra.mxu0 %v3090
        %v3715 = vpop.f32.mrf.mxu0
        %v3716 = vadd.f32 %v3169, %v3715
        %v3717 = vpop.f32.mrf.mxu0
        %v3718 = vadd.f32 %v3173, %v3717
        %v3719 = vpop.f32.mrf.mxu0
        %v3720 = vadd.f32 %v3169, %v3719
        %v3721 = vpop.f32.mrf.mxu0
        %v3722 = vadd.f32 %v3173, %v3721
        %3723 = vdwg.mxu0
        %3724 = vst [vmem:[%s546] sm:$0xff] %v2657
        %3725 = vst [vmem:[%s546 + $0x8] sm:$0xff] %v2661
        %3726 = vst [vmem:[%s546 + $0x10] sm:$0xff] %v2667
        %3727 = vst [vmem:[%s546 + $0x18] sm:$0xff] %v2671
        %3728 = vst [vmem:[%s546 + $0x20] sm:$0xff] %v2677
        %3729 = vst [vmem:[%s546 + $0x28] sm:$0xff] %v2681
        %3730 = vst [vmem:[%s546 + $0x30] sm:$0xff] %v2687
        %3731 = vst [vmem:[%s546 + $0x38] sm:$0xff] %v2691
        %3732 = vst [vmem:[%s546 + $0x40] sm:$0xff] %v2697
        %3733 = vst [vmem:[%s546 + $0x48] sm:$0xff] %v2701
        %3734 = vst [vmem:[%s546 + $0x50] sm:$0xff] %v2707
        %3735 = vst [vmem:[%s546 + $0x58] sm:$0xff] %v2711
        %3736 = vst [vmem:[%s546 + $0x60] sm:$0xff] %v2717
        %3737 = vst [vmem:[%s546 + $0x68] sm:$0xff] %v2721
        %3738 = vst [vmem:[%s546 + $0x70] sm:$0xff] %v2727
        %3739 = vst [vmem:[%s546 + $0x78] sm:$0xff] %v2731
        %3740 = vst [vmem:[%s553] sm:$0xff] %v2659
        %3741 = vst [vmem:[%s553 + $0x8] sm:$0xff] %v2663
        %3742 = vst [vmem:[%s553 + $0x10] sm:$0xff] %v2669
        %3743 = vst [vmem:[%s553 + $0x18] sm:$0xff] %v2673
        %3744 = vst [vmem:[%s553 + $0x20] sm:$0xff] %v2679
        %3745 = vst [vmem:[%s553 + $0x28] sm:$0xff] %v2683
        %3746 = vst [vmem:[%s553 + $0x30] sm:$0xff] %v2689
        %3747 = vst [vmem:[%s553 + $0x38] sm:$0xff] %v2693
        %3748 = vst [vmem:[%s553 + $0x40] sm:$0xff] %v2699
        %3749 = vst [vmem:[%s553 + $0x48] sm:$0xff] %v2703
        %3750 = vst [vmem:[%s553 + $0x50] sm:$0xff] %v2709
        %3751 = vst [vmem:[%s553 + $0x58] sm:$0xff] %v2713
        %3752 = vst [vmem:[%s553 + $0x60] sm:$0xff] %v2719
        %3753 = vst [vmem:[%s553 + $0x68] sm:$0xff] %v2723
        %3754 = vst [vmem:[%s553 + $0x70] sm:$0xff] %v2729
        %3755 = vst [vmem:[%s553 + $0x78] sm:$0xff] %v2733
        %3756 = vst [vmem:[%s560] sm:$0xff] %v3533
        %3757 = vst [vmem:[%s560 + $0x8] sm:$0xff] %v3535
        %3758 = vst [vmem:[%s560 + $0x10] sm:$0xff] %v3646
        %3759 = vst [vmem:[%s560 + $0x18] sm:$0xff] %v3648
        %3760 = vst [vmem:[%s560 + $0x20] sm:$0xff] %v3537
        %3761 = vst [vmem:[%s560 + $0x28] sm:$0xff] %v3539
        %3762 = vst [vmem:[%s560 + $0x30] sm:$0xff] %v3650
        %3763 = vst [vmem:[%s560 + $0x38] sm:$0xff] %v3652
        %3764 = vst [vmem:[%s560 + $0x40] sm:$0xff] %v3543
        %3765 = vst [vmem:[%s560 + $0x48] sm:$0xff] %v3545
        %3766 = vst [vmem:[%s560 + $0x50] sm:$0xff] %v3656
        %3767 = vst [vmem:[%s560 + $0x58] sm:$0xff] %v3658
        %3768 = vst [vmem:[%s560 + $0x60] sm:$0xff] %v3547
        %3769 = vst [vmem:[%s560 + $0x68] sm:$0xff] %v3549
        %3770 = vst [vmem:[%s560 + $0x70] sm:$0xff] %v3660
        %3771 = vst [vmem:[%s560 + $0x78] sm:$0xff] %v3662
        %3772 = vst [vmem:[%s560 + $0x80] sm:$0xff] %v3553
        %3773 = vst [vmem:[%s560 + $0x88] sm:$0xff] %v3555
        %3774 = vst [vmem:[%s560 + $0x90] sm:$0xff] %v3666
        %3775 = vst [vmem:[%s560 + $0x98] sm:$0xff] %v3668
        %3776 = vst [vmem:[%s560 + $0xa0] sm:$0xff] %v3557
        %3777 = vst [vmem:[%s560 + $0xa8] sm:$0xff] %v3559
        %3778 = vst [vmem:[%s560 + $0xb0] sm:$0xff] %v3670
        %3779 = vst [vmem:[%s560 + $0xb8] sm:$0xff] %v3672
        %3780 = vst [vmem:[%s560 + $0xc0] sm:$0xff] %v3563
        %3781 = vst [vmem:[%s560 + $0xc8] sm:$0xff] %v3565
        %3782 = vst [vmem:[%s560 + $0xd0] sm:$0xff] %v3676
        %3783 = vst [vmem:[%s560 + $0xd8] sm:$0xff] %v3678
        %3784 = vst [vmem:[%s560 + $0xe0] sm:$0xff] %v3567
        %3785 = vst [vmem:[%s560 + $0xe8] sm:$0xff] %v3569
        %3786 = vst [vmem:[%s560 + $0xf0] sm:$0xff] %v3680
        %3787 = vst [vmem:[%s560 + $0xf8] sm:$0xff] %v3682
        %3788 = vst [vmem:[%s560 + $0x100] sm:$0xff] %v3573
        %3789 = vst [vmem:[%s560 + $0x108] sm:$0xff] %v3575
        %3790 = vst [vmem:[%s560 + $0x110] sm:$0xff] %v3686
        %3791 = vst [vmem:[%s560 + $0x118] sm:$0xff] %v3688
        %3792 = vst [vmem:[%s560 + $0x120] sm:$0xff] %v3577
        %3793 = vst [vmem:[%s560 + $0x128] sm:$0xff] %v3579
        %3794 = vst [vmem:[%s560 + $0x130] sm:$0xff] %v3690
        %3795 = vst [vmem:[%s560 + $0x138] sm:$0xff] %v3692
        %3796 = vst [vmem:[%s560 + $0x140] sm:$0xff] %v3583
        %3797 = vst [vmem:[%s560 + $0x148] sm:$0xff] %v3585
        %3798 = vst [vmem:[%s560 + $0x150] sm:$0xff] %v3696
        %3799 = vst [vmem:[%s560 + $0x158] sm:$0xff] %v3698
        %3800 = vst [vmem:[%s560 + $0x160] sm:$0xff] %v3587
        %3801 = vst [vmem:[%s560 + $0x168] sm:$0xff] %v3589
        %3802 = vst [vmem:[%s560 + $0x170] sm:$0xff] %v3700
        %3803 = vst [vmem:[%s560 + $0x178] sm:$0xff] %v3702
        %3804 = vst [vmem:[%s560 + $0x180] sm:$0xff] %v3593
        %3805 = vst [vmem:[%s560 + $0x188] sm:$0xff] %v3595
        %3806 = vst [vmem:[%s560 + $0x190] sm:$0xff] %v3706
        %3807 = vst [vmem:[%s560 + $0x198] sm:$0xff] %v3708
        %3808 = vst [vmem:[%s560 + $0x1a0] sm:$0xff] %v3597
        %3809 = vst [vmem:[%s560 + $0x1a8] sm:$0xff] %v3599
        %3810 = vst [vmem:[%s560 + $0x1b0] sm:$0xff] %v3710
        %3811 = vst [vmem:[%s560 + $0x1b8] sm:$0xff] %v3712
        %3812 = vst [vmem:[%s560 + $0x1c0] sm:$0xff] %v3603
        %3813 = vst [vmem:[%s560 + $0x1c8] sm:$0xff] %v3605
        %3814 = vst [vmem:[%s560 + $0x1d0] sm:$0xff] %v3716
        %3815 = vst [vmem:[%s560 + $0x1d8] sm:$0xff] %v3718
        %3816 = vst [vmem:[%s560 + $0x1e0] sm:$0xff] %v3607
        %3817 = vst [vmem:[%s560 + $0x1e8] sm:$0xff] %v3609
        %3818 = vst [vmem:[%s560 + $0x1f0] sm:$0xff] %v3720
        %3819 = vst [vmem:[%s560 + $0x1f8] sm:$0xff] %v3722
        %s3820 = sand.u32 %s266, 1
        %s3821 = scalar_lea.sflag [#allocation4], %s3820
        %s3822 = sand.u32 %s266, 1
        %s3823 = smul.addr %s3822, 128
        %s3824 = scalar_lea.vmem [#allocation14], %s3823
        %s3825 = sand.u32 %s38, 1
        %s3826 = scalar_lea.sflag [#allocation16], %s3825
        %s3827 = sand.u32 %s292, 1
        %s3828 = smul.addr %s3827, 128
        %s3829 = scalar_lea.vmem [#allocation15], %s3828
        %s3830 = sand.u32 %s38, 1
        %s3831 = scalar_lea.sflag [#allocation16], %s3830
        %s3832 = sand.u32 %s318, 1
        %s3833 = smul.addr %s3832, 512
        %s3834 = scalar_lea.vmem [#allocation17], %s3833
        // Predicated region
        $region89: #{tpu_custom_call.1} parent=59 // pred_check
          %p3835 = pneg %p276
        $region90: #{tpu_custom_call.1} parent=59 // pred_check_branch
          %3837 = sbr.rel (%p3835) target = $region92
        $region91: #{tpu_custom_call.1} parent=59 // pred_region
          %s3838 = smul.u32 16, %s38
          %s3840 = ssub.s32 2048, 2048
          %3841 = vsyncadd %s3821, %s3840
          %s3842 = smul.addr %s3838, 128
          %s3843 = scalar_lea.hbm %s10, %s3842
          %s3844 = sshll.u32 %s3824, 4
          %s3845 = int_to_ptr.vmem [resolvable:$true] %s3844
          %3850 = dma.vmem_to_hbm [thread:$0]  %s3845, 2048, %s3843, %s3821, 128, 128, 8
        $region92: #{tpu_custom_call.1} parent=59 // pred_fallthru
          _
        // Predicated region
        $region93: #{tpu_custom_call.1} parent=59 // pred_check
          %p3851 = pneg %p302
        $region94: #{tpu_custom_call.1} parent=59 // pred_check_branch
          %3853 = sbr.rel (%p3851) target = $region96
        $region95: #{tpu_custom_call.1} parent=59 // pred_region
          %s3854 = smul.u32 16, %s38
          %s3856 = ssub.s32 2048, 2048
          %3857 = vsyncadd %s3826, %s3856
          %s3858 = smul.addr %s3854, 128
          %s3859 = scalar_lea.hbm %s11, %s3858
          %s3860 = sshll.u32 %s3829, 4
          %s3861 = int_to_ptr.vmem [resolvable:$true] %s3860
          %3866 = dma.vmem_to_hbm [thread:$0]  %s3861, 2048, %s3859, %s3826, 128, 128, 8
        $region96: #{tpu_custom_call.1} parent=59 // pred_fallthru
          _
        // Predicated region
        $region97: #{tpu_custom_call.1} parent=59 // pred_check
          %p3867 = pneg %p328
        $region98: #{tpu_custom_call.1} parent=59 // pred_check_branch
          %3869 = sbr.rel (%p3867) target = $region100
        $region99: #{tpu_custom_call.1} parent=59 // pred_region
          %s3870 = smul.u32 16, %s38
          %s3872 = ssub.s32 8192, 8192
          %3873 = vsyncadd %s3831, %s3872
          %s3874 = smul.addr %s3870, 4
          %s3875 = smul.addr %s3874, 128
          %s3876 = scalar_lea.hbm %s12, %s3875
          %s3877 = sshll.u32 %s3834, 4
          %s3878 = int_to_ptr.vmem [resolvable:$true] %s3877
          %3883 = dma.vmem_to_hbm [thread:$0]  %s3878, 8192, %s3876, %s3831, 512, 512, 32
        $region100: #{tpu_custom_call.1} parent=59 // pred_fallthru
          _
      $region60: #{tpu_custom_call.1} parent=5 // pred_fallthru
        _
      %p3884 = scmp.le.s32.totalorder 2, %s33
      // Predicated region
      $region101: #{tpu_custom_call.1} parent=5 // pred_check
        %p3885 = pneg %p3884
      $region102: #{tpu_custom_call.1} parent=5 // pred_check_branch
        %3887 = sbr.rel (%p3885) target = $region104
      $region103: #{tpu_custom_call.1} parent=5 // pred_region
        %s3888 = ssub.s32 %s33, 2
        // Predicated region
        $region105: #{tpu_custom_call.1} parent=103 // pred_check
          %p3889 = pneg %p282
        $region106: #{tpu_custom_call.1} parent=103 // pred_check_branch
          %3891 = sbr.rel (%p3889) target = $region108
        $region107: #{tpu_custom_call.1} parent=103 // pred_region
          %s3892 = sand.u32 %s267, 1
          %s3893 = scalar_lea.sflag [#allocation4], %s3892
          %s3894 = sand.u32 %s267, 1
          %s3895 = smul.addr %s3894, 128
          %s3896 = scalar_lea.vmem [#allocation14], %s3895
          %3897 = dma.done %s3893, 2048
        $region108: #{tpu_custom_call.1} parent=103 // pred_fallthru
          _
        // Predicated region
        $region109: #{tpu_custom_call.1} parent=103 // pred_check
          %p3898 = pneg %p308
        $region110: #{tpu_custom_call.1} parent=103 // pred_check_branch
          %3900 = sbr.rel (%p3898) target = $region112
        $region111: #{tpu_custom_call.1} parent=103 // pred_region
          %s3901 = sand.u32 %s39, 1
          %s3902 = scalar_lea.sflag [#allocation16], %s3901
          %s3903 = sand.u32 %s293, 1
          %s3904 = smul.addr %s3903, 128
          %s3905 = scalar_lea.vmem [#allocation15], %s3904
          %3906 = dma.done %s3902, 2048
        $region112: #{tpu_custom_call.1} parent=103 // pred_fallthru
          _
        // Predicated region
        $region113: #{tpu_custom_call.1} parent=103 // pred_check
          %p3907 = pneg %p334
        $region114: #{tpu_custom_call.1} parent=103 // pred_check_branch
          %3909 = sbr.rel (%p3907) target = $region116
        $region115: #{tpu_custom_call.1} parent=103 // pred_region
          %s3910 = sand.u32 %s39, 1
          %s3911 = scalar_lea.sflag [#allocation16], %s3910
          %s3912 = sand.u32 %s319, 1
          %s3913 = smul.addr %s3912, 512
          %s3914 = scalar_lea.vmem [#allocation17], %s3913
          %3915 = dma.done %s3911, 8192
        $region116: #{tpu_custom_call.1} parent=103 // pred_fallthru
          _
      $region104: #{tpu_custom_call.1} parent=5 // pred_fallthru
        _
    $region6: #{tpu_custom_call.1} parent=1 // loop_footer
      %s37 = sadd.s32 1, %s33
    $region7: #{tpu_custom_call.1} parent=1 // loop_footer_branch
      %32 = sbr.rel target = $region3
    $region8: #{tpu_custom_call.1} parent=1 // loop_exit
      _
    %3916 = vsyncpa [#allocation3], 1
    %s3917 = scalar_lea.sflag [#allocation3], 1
    %3918 = vsyncpa %s3917, 1
    %3919 = vsyncpa [#allocation6], 1
    %s3920 = scalar_lea.sflag [#allocation6], 1
    %3921 = vsyncpa %s3920, 1
    %3922 = vsyncpa [#allocation9], 1
    %3923 = vsyncpa [#allocation12], 1
    %3924 = vsyncpa [#allocation4], 1
    %s3925 = scalar_lea.sflag [#allocation4], 1
    %3926 = vsyncpa %s3925, 1
    %3927 = vsyncpa [#allocation16], 1
    %s3928 = scalar_lea.sflag [#allocation16], 1
    %3929 = vsyncpa %s3928, 1

</llo_original>
